<compile_context>
chip_gen: v5e
topology: v5e:2x2
jax: 0.10.0
libtpu: 0.0.40
codegen_flags: <defaults>
</compile_context>

<pallas_src>
import functools
import math

import jax
import jax.numpy as jnp
from jax.experimental import pallas as pl


def _round_up(x, m):
    return ((x + m - 1) // m) * m


def _padded_geometry(h, w):
    """Per-sample padded-image geometry: (HP rows, WP row stride).

    HP >= h+2 and WP >= w+2 (3x3 'same' halo), and HP*WP is a multiple of
    128 so each sample occupies an integer number of 128-lane vregs.
    """
    wp = _round_up(w + 2, 4)
    hp = _round_up(h + 2, 128 // math.gcd(wp, 128))
    return hp, wp


# ---------------------------------------------------------------------------
# Fused Pallas kernel: both branches / all samples in one invocation.
# ---------------------------------------------------------------------------
def _siamese_kernel(x_ref, wc_ref, bc_ref, w1_ref, b1_ref, w2_ref, b2_ref,
                    out_ref, *, n_samples, span, wp):
    """conv3x3(pad=1) + ReLU + flatten + Linear + Linear + sigmoid.

    x_ref  : (C_in, (n_samples+1)*span)  row-flattened, spatially padded
             input; one trailing all-zero dummy slab absorbs tap over-reads.
    wc_ref : (C_out, 9*C_in)   conv weight, tap-major / channel-minor cols
    bc_ref : (C_out, 1)        conv bias
    w1_ref : (C_out*span, hidden)  fc1 weight, zero at padding feature cols
    b1_ref : (1, hidden)
    w2_ref : (hidden, OUT_PAD)
    b2_ref : (1, OUT_PAD)
    out_ref: (n_samples, OUT_PAD)
    """
    total = n_samples * span
    c_out = wc_ref.shape[0]
    x = x_ref[...]                                    # (C_in, FLAT)

    # im2col: 9 lane-shifted views stacked along sublanes -> (9*C_in, total).
    xim = jnp.concatenate(
        [x[:, di * wp + dj: di * wp + dj + total]
         for di in range(3) for dj in range(3)], axis=0)

    # Conv as ONE MXU dot (K = 9*C_in), then bias + ReLU.  Lane-dense output.
    acc = jnp.dot(wc_ref[...], xim, preferred_element_type=jnp.float32)
    acc = jnp.maximum(acc + bc_ref[...], 0.0)         # (C_out, total)

    # Per-sample feature rows.  Every slice start is a multiple of `span`
    # (itself a multiple of 128): whole-vreg copies only, no masked loads.
    feat = jnp.concatenate(
        [jnp.concatenate(
            [acc[co:co + 1, b * span:(b + 1) * span] for co in range(c_out)],
            axis=1)
         for b in range(n_samples)], axis=0)          # (n_samples, C_out*span)

    # fc1 + fc2 + sigmoid through the lane-padded output slab.
    h = jnp.dot(feat, w1_ref[...], preferred_element_type=jnp.float32) + b1_ref[...]
    o = jnp.dot(h, w2_ref[...], preferred_element_type=jnp.float32) + b2_ref[...]
    out_ref[...] = jax.nn.sigmoid(o).astype(out_ref.dtype)


# ---------------------------------------------------------------------------
# One-time weight layout plumbing (call once per parameter set).
# ---------------------------------------------------------------------------
def prepare_params(params, image_hw):
    wc, bc, w1, b1, w2, b2 = params
    h, w = image_hw
    c_out, c_in = wc.shape[0], wc.shape[1]
    hidden = w1.shape[0]
    out_sz = w2.shape[0]
    hp, wp = _padded_geometry(h, w)
    span = hp * wp
    out_pad = _round_up(out_sz, 128)
    f32 = jnp.float32

    # Conv weight columns ordered tap-major / in-channel-minor to match the
    # in-kernel im2col stacking.
    wc36 = wc.astype(f32).transpose(0, 2, 3, 1).reshape(c_out, 9 * c_in)
    bcp = bc.astype(f32).reshape(c_out, 1)

    # fc1 weight: (C_out*span, hidden); zero at spatial-padding columns so
    # conv "garbage" columns (and cross-sample tap over-reads) vanish.
    w1r = w1.astype(f32).T.reshape(c_out, h, w, hidden)
    w1p = jnp.pad(w1r, ((0, 0), (0, hp - h), (0, wp - w), (0, 0)))
    w1big = w1p.reshape(c_out * span, hidden)

    b1r = b1.astype(f32).reshape(1, hidden)
    w2t = jnp.zeros((hidden, out_pad), f32).at[:, :out_sz].set(w2.astype(f32).T)
    b2r = jnp.zeros((1, out_pad), f32).at[0, :out_sz].set(b2.astype(f32))
    return (wc36, bcp, w1big, b1r, w2t, b2r)


# ---------------------------------------------------------------------------
# Per-call wrapper: cheap activation plumbing + ONE pallas_call.
# ---------------------------------------------------------------------------
@functools.partial(jax.jit, static_argnames=("out_size",))
def siamese_forward(x1, x2, prepared, *, out_size):
    wc36, bcp, w1big, b1r, w2t, b2r = prepared
    bsz, c_in, h, w = x1.shape
    c_out = wc36.shape[0]
    hp, wp = _padded_geometry(h, w)
    span = hp * wp
    n_samples = 2 * bsz
    flat = (n_samples + 1) * span        # +1 dummy slab absorbs tap over-reads
    out_pad = w2t.shape[1]

    # Sanity guard on the fastest-growing VMEM term (fc1 weight, lane-padded
    # to 128-wide tiles).  Tile with a grid before this ever trips.
    assert c_out * span * max(w1big.shape[1], 128) * 4 < 8 * 2 ** 20, \
        "fc1 weight too big for full-block VMEM residency; tile the span axis"

    # Both branches folded into batch; channel-major; a single jnp.pad covers
    # the conv halo, the 128-lane span alignment and the trailing dummy slab.
    x = jnp.concatenate([x1, x2], axis=0).astype(jnp.float32)    # (2B,C,H,W)
    x = x.transpose(1, 0, 2, 3)                                  # (C,2B,H,W)
    x = jnp.pad(x, ((0, 0), (0, 1), (1, hp - h - 1), (1, wp - w - 1)))
    x = x.reshape(c_in, flat)                                    # (C, FLAT)

    kernel = functools.partial(_siamese_kernel, n_samples=n_samples,
                               span=span, wp=wp)
    out = pl.pallas_call(
        kernel,
        out_shape=jax.ShapeDtypeStruct((n_samples, out_pad), jnp.float32),
    )(x, wc36, bcp, w1big, b1r, w2t, b2r)

    return out[:bsz, :out_size], out[bsz:, :out_size]


# ---------------------------------------------------------------------------
# Deterministic parameter init + pure-JAX reference
# ---------------------------------------------------------------------------
def init_params(key, c_in, c_out, flat_dim, hidden, out_size):
    ks = jax.random.split(key, 6)
    wc = jax.random.normal(ks[0], (c_out, c_in, 3, 3), jnp.float32) * 0.1
    bc = jax.random.normal(ks[1], (c_out,), jnp.float32) * 0.1
    w1 = jax.random.normal(ks[2], (hidden, flat_dim), jnp.float32) * (1.0 / jnp.sqrt(flat_dim))
    b1 = jax.random.normal(ks[3], (hidden,), jnp.float32) * 0.1
    w2 = jax.random.normal(ks[4], (out_size, hidden), jnp.float32) * (1.0 / jnp.sqrt(hidden))
    b2 = jax.random.normal(ks[5], (out_size,), jnp.float32) * 0.1
    return (wc, bc, w1, b1, w2, b2)


def reference_forward_once(x, params):
    wc, bc, w1, b1, w2, b2 = params
    conv = jax.lax.conv_general_dilated(
        x, wc, window_strides=(1, 1), padding="SAME",
        dimension_numbers=("NCHW", "OIHW", "NCHW"))
    conv = jnp.maximum(conv + bc[None, :, None, None], 0.0)
    feat = conv.reshape(x.shape[0], -1)
    h = feat @ w1.T + b1
    return jax.nn.sigmoid(h @ w2.T + b2)


if __name__ == "__main__":
    B, C, H, W = 2, 4, 16, 16
    C_OUT, HIDDEN, OUT = 8, 32, 16
    FLAT = C_OUT * H * W

    key = jax.random.PRNGKey(0)
    kx1, kx2, kp = jax.random.split(key, 3)
    x1 = jax.random.normal(kx1, (B, C, H, W), jnp.float32)
    x2 = jax.random.normal(kx2, (B, C, H, W), jnp.float32)
    params = init_params(kp, C, C_OUT, FLAT, HIDDEN, OUT)

    prepared = prepare_params(params, (H, W))        # one-time layout plumbing

    out1, out2 = siamese_forward(x1, x2, prepared, out_size=OUT)
    jax.block_until_ready((out1, out2))

    ref1 = reference_forward_once(x1, params)
    ref2 = reference_forward_once(x2, params)
    assert out1.shape == (B, OUT) and out2.shape == (B, OUT)
    assert jnp.allclose(out1, ref1, atol=1e-5, rtol=1e-5)
    assert jnp.allclose(out2, ref2, atol=1e-5, rtol=1e-5)

    print("KERNEL_OK")
</pallas_src>

<mosaic_0001>
module attributes {stable_mosaic.version = 11 : i64} {
  func.func @_siamese_kernel(%arg0: memref<4x3200xf32, #tpu.memory_space<vmem>>, %arg1: memref<8x36xf32, #tpu.memory_space<vmem>>, %arg2: memref<8x1xf32, #tpu.memory_space<vmem>>, %arg3: memref<5120x32xf32, #tpu.memory_space<vmem>>, %arg4: memref<1x32xf32, #tpu.memory_space<vmem>>, %arg5: memref<32x128xf32, #tpu.memory_space<vmem>>, %arg6: memref<1x128xf32, #tpu.memory_space<vmem>>, %arg7: memref<4x128xf32, #tpu.memory_space<vmem>>) attributes {dimension_semantics = [], scalar_prefetch = 0 : i64, scratch_operands = 0 : i64, tpu.core_type = #tpu.core_type<tc>} {
    %c0 = arith.constant 0 : index
    %c0_0 = arith.constant 0 : index
    %0 = vector.load %arg0[%c0, %c0_0] : memref<4x3200xf32, #tpu.memory_space<vmem>>, vector<4x3200xf32>
    %1 = vector.extract_strided_slice %0 {offsets = [0, 0], sizes = [4, 2560], strides = [1, 1]} : vector<4x3200xf32> to vector<4x2560xf32>
    %2 = vector.extract_strided_slice %0 {offsets = [0, 1], sizes = [4, 2560], strides = [1, 1]} : vector<4x3200xf32> to vector<4x2560xf32>
    %3 = vector.extract_strided_slice %0 {offsets = [0, 2], sizes = [4, 2560], strides = [1, 1]} : vector<4x3200xf32> to vector<4x2560xf32>
    %4 = vector.extract_strided_slice %0 {offsets = [0, 20], sizes = [4, 2560], strides = [1, 1]} : vector<4x3200xf32> to vector<4x2560xf32>
    %5 = vector.extract_strided_slice %0 {offsets = [0, 21], sizes = [4, 2560], strides = [1, 1]} : vector<4x3200xf32> to vector<4x2560xf32>
    %6 = vector.extract_strided_slice %0 {offsets = [0, 22], sizes = [4, 2560], strides = [1, 1]} : vector<4x3200xf32> to vector<4x2560xf32>
    %7 = vector.extract_strided_slice %0 {offsets = [0, 40], sizes = [4, 2560], strides = [1, 1]} : vector<4x3200xf32> to vector<4x2560xf32>
    %8 = vector.extract_strided_slice %0 {offsets = [0, 41], sizes = [4, 2560], strides = [1, 1]} : vector<4x3200xf32> to vector<4x2560xf32>
    %9 = vector.extract_strided_slice %0 {offsets = [0, 42], sizes = [4, 2560], strides = [1, 1]} : vector<4x3200xf32> to vector<4x2560xf32>
    %10 = tpu.concatenate %1, %2, %3, %4, %5, %6, %7, %8, %9 in 0 : vector<4x2560xf32>, vector<4x2560xf32>, vector<4x2560xf32>, vector<4x2560xf32>, vector<4x2560xf32>, vector<4x2560xf32>, vector<4x2560xf32>, vector<4x2560xf32>, vector<4x2560xf32> -> vector<36x2560xf32>
    %c0_1 = arith.constant 0 : index
    %c0_2 = arith.constant 0 : index
    %11 = vector.load %arg1[%c0_1, %c0_2] : memref<8x36xf32, #tpu.memory_space<vmem>>, vector<8x36xf32>
    %cst = arith.constant dense<0.000000e+00> : vector<8x2560xf32>
    %12 = tpu.matmul %11, %10, %cst {dimension_numbers = #tpu.dot_dimension_numbers<[1], [0], [0], [1], [0, 0, 1, 1], [], []>} : vector<8x36xf32>, vector<36x2560xf32>, vector<8x2560xf32> -> vector<8x2560xf32>
    %c0_3 = arith.constant 0 : index
    %c0_4 = arith.constant 0 : index
    %13 = vector.load %arg2[%c0_3, %c0_4] : memref<8x1xf32, #tpu.memory_space<vmem>>, vector<8x1xf32>
    %14 = vector.broadcast %13 : vector<8x1xf32> to vector<8x2560xf32>
    %15 = arith.addf %12, %14 : vector<8x2560xf32>
    %cst_5 = arith.constant 0.000000e+00 : f32
    %16 = vector.broadcast %cst_5 : f32 to vector<8x2560xf32>
    %17 = arith.maximumf %15, %16 : vector<8x2560xf32>
    %18 = vector.extract_strided_slice %17 {offsets = [0, 0], sizes = [1, 640], strides = [1, 1]} : vector<8x2560xf32> to vector<1x640xf32>
    %19 = vector.extract_strided_slice %17 {offsets = [1, 0], sizes = [1, 640], strides = [1, 1]} : vector<8x2560xf32> to vector<1x640xf32>
    %20 = vector.extract_strided_slice %17 {offsets = [2, 0], sizes = [1, 640], strides = [1, 1]} : vector<8x2560xf32> to vector<1x640xf32>
    %21 = vector.extract_strided_slice %17 {offsets = [3, 0], sizes = [1, 640], strides = [1, 1]} : vector<8x2560xf32> to vector<1x640xf32>
    %22 = vector.extract_strided_slice %17 {offsets = [4, 0], sizes = [1, 640], strides = [1, 1]} : vector<8x2560xf32> to vector<1x640xf32>
    %23 = vector.extract_strided_slice %17 {offsets = [5, 0], sizes = [1, 640], strides = [1, 1]} : vector<8x2560xf32> to vector<1x640xf32>
    %24 = vector.extract_strided_slice %17 {offsets = [6, 0], sizes = [1, 640], strides = [1, 1]} : vector<8x2560xf32> to vector<1x640xf32>
    %25 = vector.extract_strided_slice %17 {offsets = [7, 0], sizes = [1, 640], strides = [1, 1]} : vector<8x2560xf32> to vector<1x640xf32>
    %26 = tpu.concatenate %18, %19, %20, %21, %22, %23, %24, %25 in 1 : vector<1x640xf32>, vector<1x640xf32>, vector<1x640xf32>, vector<1x640xf32>, vector<1x640xf32>, vector<1x640xf32>, vector<1x640xf32>, vector<1x640xf32> -> vector<1x5120xf32>
    %27 = vector.extract_strided_slice %17 {offsets = [0, 640], sizes = [1, 640], strides = [1, 1]} : vector<8x2560xf32> to vector<1x640xf32>
    %28 = vector.extract_strided_slice %17 {offsets = [1, 640], sizes = [1, 640], strides = [1, 1]} : vector<8x2560xf32> to vector<1x640xf32>
    %29 = vector.extract_strided_slice %17 {offsets = [2, 640], sizes = [1, 640], strides = [1, 1]} : vector<8x2560xf32> to vector<1x640xf32>
    %30 = vector.extract_strided_slice %17 {offsets = [3, 640], sizes = [1, 640], strides = [1, 1]} : vector<8x2560xf32> to vector<1x640xf32>
    %31 = vector.extract_strided_slice %17 {offsets = [4, 640], sizes = [1, 640], strides = [1, 1]} : vector<8x2560xf32> to vector<1x640xf32>
    %32 = vector.extract_strided_slice %17 {offsets = [5, 640], sizes = [1, 640], strides = [1, 1]} : vector<8x2560xf32> to vector<1x640xf32>
    %33 = vector.extract_strided_slice %17 {offsets = [6, 640], sizes = [1, 640], strides = [1, 1]} : vector<8x2560xf32> to vector<1x640xf32>
    %34 = vector.extract_strided_slice %17 {offsets = [7, 640], sizes = [1, 640], strides = [1, 1]} : vector<8x2560xf32> to vector<1x640xf32>
    %35 = tpu.concatenate %27, %28, %29, %30, %31, %32, %33, %34 in 1 : vector<1x640xf32>, vector<1x640xf32>, vector<1x640xf32>, vector<1x640xf32>, vector<1x640xf32>, vector<1x640xf32>, vector<1x640xf32>, vector<1x640xf32> -> vector<1x5120xf32>
    %36 = vector.extract_strided_slice %17 {offsets = [0, 1280], sizes = [1, 640], strides = [1, 1]} : vector<8x2560xf32> to vector<1x640xf32>
    %37 = vector.extract_strided_slice %17 {offsets = [1, 1280], sizes = [1, 640], strides = [1, 1]} : vector<8x2560xf32> to vector<1x640xf32>
    %38 = vector.extract_strided_slice %17 {offsets = [2, 1280], sizes = [1, 640], strides = [1, 1]} : vector<8x2560xf32> to vector<1x640xf32>
    %39 = vector.extract_strided_slice %17 {offsets = [3, 1280], sizes = [1, 640], strides = [1, 1]} : vector<8x2560xf32> to vector<1x640xf32>
    %40 = vector.extract_strided_slice %17 {offsets = [4, 1280], sizes = [1, 640], strides = [1, 1]} : vector<8x2560xf32> to vector<1x640xf32>
    %41 = vector.extract_strided_slice %17 {offsets = [5, 1280], sizes = [1, 640], strides = [1, 1]} : vector<8x2560xf32> to vector<1x640xf32>
    %42 = vector.extract_strided_slice %17 {offsets = [6, 1280], sizes = [1, 640], strides = [1, 1]} : vector<8x2560xf32> to vector<1x640xf32>
    %43 = vector.extract_strided_slice %17 {offsets = [7, 1280], sizes = [1, 640], strides = [1, 1]} : vector<8x2560xf32> to vector<1x640xf32>
    %44 = tpu.concatenate %36, %37, %38, %39, %40, %41, %42, %43 in 1 : vector<1x640xf32>, vector<1x640xf32>, vector<1x640xf32>, vector<1x640xf32>, vector<1x640xf32>, vector<1x640xf32>, vector<1x640xf32>, vector<1x640xf32> -> vector<1x5120xf32>
    %45 = vector.extract_strided_slice %17 {offsets = [0, 1920], sizes = [1, 640], strides = [1, 1]} : vector<8x2560xf32> to vector<1x640xf32>
    %46 = vector.extract_strided_slice %17 {offsets = [1, 1920], sizes = [1, 640], strides = [1, 1]} : vector<8x2560xf32> to vector<1x640xf32>
    %47 = vector.extract_strided_slice %17 {offsets = [2, 1920], sizes = [1, 640], strides = [1, 1]} : vector<8x2560xf32> to vector<1x640xf32>
    %48 = vector.extract_strided_slice %17 {offsets = [3, 1920], sizes = [1, 640], strides = [1, 1]} : vector<8x2560xf32> to vector<1x640xf32>
    %49 = vector.extract_strided_slice %17 {offsets = [4, 1920], sizes = [1, 640], strides = [1, 1]} : vector<8x2560xf32> to vector<1x640xf32>
    %50 = vector.extract_strided_slice %17 {offsets = [5, 1920], sizes = [1, 640], strides = [1, 1]} : vector<8x2560xf32> to vector<1x640xf32>
    %51 = vector.extract_strided_slice %17 {offsets = [6, 1920], sizes = [1, 640], strides = [1, 1]} : vector<8x2560xf32> to vector<1x640xf32>
    %52 = vector.extract_strided_slice %17 {offsets = [7, 1920], sizes = [1, 640], strides = [1, 1]} : vector<8x2560xf32> to vector<1x640xf32>
    %53 = tpu.concatenate %45, %46, %47, %48, %49, %50, %51, %52 in 1 : vector<1x640xf32>, vector<1x640xf32>, vector<1x640xf32>, vector<1x640xf32>, vector<1x640xf32>, vector<1x640xf32>, vector<1x640xf32>, vector<1x640xf32> -> vector<1x5120xf32>
    %54 = tpu.concatenate %26, %35, %44, %53 in 0 : vector<1x5120xf32>, vector<1x5120xf32>, vector<1x5120xf32>, vector<1x5120xf32> -> vector<4x5120xf32>
    %c0_6 = arith.constant 0 : index
    %c0_7 = arith.constant 0 : index
    %55 = vector.load %arg3[%c0_6, %c0_7] : memref<5120x32xf32, #tpu.memory_space<vmem>>, vector<5120x32xf32>
    %cst_8 = arith.constant dense<0.000000e+00> : vector<4x32xf32>
    %56 = tpu.matmul %54, %55, %cst_8 {dimension_numbers = #tpu.dot_dimension_numbers<[1], [0], [0], [1], [0, 0, 1, 1], [], []>} : vector<4x5120xf32>, vector<5120x32xf32>, vector<4x32xf32> -> vector<4x32xf32>
    %c0_9 = arith.constant 0 : index
    %c0_10 = arith.constant 0 : index
    %57 = vector.load %arg4[%c0_9, %c0_10] : memref<1x32xf32, #tpu.memory_space<vmem>>, vector<1x32xf32>
    %58 = vector.broadcast %57 : vector<1x32xf32> to vector<4x32xf32>
    %59 = arith.addf %56, %58 : vector<4x32xf32>
    %c0_11 = arith.constant 0 : index
    %c0_12 = arith.constant 0 : index
    %60 = vector.load %arg5[%c0_11, %c0_12] : memref<32x128xf32, #tpu.memory_space<vmem>>, vector<32x128xf32>
    %cst_13 = arith.constant dense<0.000000e+00> : vector<4x128xf32>
    %61 = tpu.matmul %59, %60, %cst_13 {dimension_numbers = #tpu.dot_dimension_numbers<[1], [0], [0], [1], [0, 0, 1, 1], [], []>} : vector<4x32xf32>, vector<32x128xf32>, vector<4x128xf32> -> vector<4x128xf32>
    %c0_14 = arith.constant 0 : index
    %c0_15 = arith.constant 0 : index
    %62 = vector.load %arg6[%c0_14, %c0_15] : memref<1x128xf32, #tpu.memory_space<vmem>>, vector<1x128xf32>
    %63 = vector.broadcast %62 : vector<1x128xf32> to vector<4x128xf32>
    %64 = arith.addf %61, %63 : vector<4x128xf32>
    %65 = arith.negf %64 : vector<4x128xf32>
    %66 = math.exp %65 : vector<4x128xf32>
    %cst_16 = arith.constant 1.000000e+00 : f32
    %67 = vector.broadcast %cst_16 : f32 to vector<4x128xf32>
    %68 = arith.addf %67, %66 : vector<4x128xf32>
    %69 = arith.divf %67, %68 : vector<4x128xf32>
    %c0_17 = arith.constant 0 : index
    %c0_18 = arith.constant 0 : index
    %70 = vector.load %arg7[%c0_17, %c0_18] : memref<4x128xf32, #tpu.memory_space<vmem>>, vector<4x128xf32>
    tpu.vector_store %arg7[%c0_17, %c0_18], %69 {strides = array<i32>} : memref<4x128xf32, #tpu.memory_space<vmem>>, vector<4x128xf32>,
    return
  }
}

</mosaic_0001>

<llo_original>
// kernel: siamese_forward.1
$region0: #{siamese_forward.1}
  #allocation0 [shape = 'u32[]', space=smem, size = 0x4, offset = 0x4, fixed_abs, tag = 'smem constant byte address 0x4 - core index']
  #allocation1 [shape = 'u32[72,128]{1,0:T(1,128)}', space=vmem, size = 0x9000, scoped, tag = 'internal scratch']
  %s0 = inlined_call_operand.vmem [shape: f32[4,3200], index: 0, kind: input, shape index: {}]
  %s1 = inlined_call_operand.vmem [shape: f32[8,36], index: 1, kind: input, shape index: {}]
  %s2 = inlined_call_operand.vmem [shape: f32[8,1], index: 2, kind: input, shape index: {}]
  %s3 = inlined_call_operand.vmem [shape: f32[5120,32], index: 3, kind: input, shape index: {}]
  %s4 = inlined_call_operand.vmem [shape: f32[1,32], index: 4, kind: input, shape index: {}]
  %s5 = inlined_call_operand.vmem [shape: f32[32,128], index: 5, kind: input, shape index: {}]
  %s6 = inlined_call_operand.vmem [shape: f32[1,128], index: 6, kind: input, shape index: {}]
  %s7 = inlined_call_operand.vmem [shape: f32[4,128], index: 7, kind: output, shape index: {}]
  %s8 = sld [smem:[#allocation0]]
  $region38: #{siamese_forward.1} parent=0
    _
  %s10 = ssub.s32 1, %s8
  %s11 = scalar_select 0, %s10, %s8
  // Predicated region
  $region2: #{siamese_forward.1} parent=0 // pred_check
    _
  $region3: #{siamese_forward.1} parent=0 // pred_check_branch
    %13 = sbr.rel (0) target = $region5
  $region4: #{siamese_forward.1} parent=0 // pred_region
    _
  $region5: #{siamese_forward.1} parent=0 // pred_fallthru
    _
  // Predicated region
  $region6: #{siamese_forward.1} parent=0 // pred_check
    _
  $region7: #{siamese_forward.1} parent=0 // pred_check_branch
    %15 = sbr.rel (0) target = $region9
  $region8: #{siamese_forward.1} parent=0 // pred_region
    _
  $region9: #{siamese_forward.1} parent=0 // pred_fallthru
    _
  // Predicated region
  $region10: #{siamese_forward.1} parent=0 // pred_check
    _
  $region11: #{siamese_forward.1} parent=0 // pred_check_branch
    %17 = sbr.rel (0) target = $region13
  $region12: #{siamese_forward.1} parent=0 // pred_region
    _
  $region13: #{siamese_forward.1} parent=0 // pred_fallthru
    _
  // Predicated region
  $region14: #{siamese_forward.1} parent=0 // pred_check
    _
  $region15: #{siamese_forward.1} parent=0 // pred_check_branch
    %19 = sbr.rel (0) target = $region17
  $region16: #{siamese_forward.1} parent=0 // pred_region
    _
  $region17: #{siamese_forward.1} parent=0 // pred_fallthru
    _
  // Predicated region
  $region18: #{siamese_forward.1} parent=0 // pred_check
    _
  $region19: #{siamese_forward.1} parent=0 // pred_check_branch
    %21 = sbr.rel (0) target = $region21
  $region20: #{siamese_forward.1} parent=0 // pred_region
    _
  $region21: #{siamese_forward.1} parent=0 // pred_fallthru
    _
  // Predicated region
  $region22: #{siamese_forward.1} parent=0 // pred_check
    _
  $region23: #{siamese_forward.1} parent=0 // pred_check_branch
    %23 = sbr.rel (0) target = $region25
  $region24: #{siamese_forward.1} parent=0 // pred_region
    _
  $region25: #{siamese_forward.1} parent=0 // pred_fallthru
    _
  // Predicated region
  $region26: #{siamese_forward.1} parent=0 // pred_check
    _
  $region27: #{siamese_forward.1} parent=0 // pred_check_branch
    %25 = sbr.rel (0) target = $region29
  $region28: #{siamese_forward.1} parent=0 // pred_region
    _
  $region29: #{siamese_forward.1} parent=0 // pred_fallthru
    _
  %v26 = vld [vmem:[%s0] sm:$0xff]
  %v27 = vld [vmem:[%s0 + $0x8] sm:$0xff]
  %v28 = vld [vmem:[%s0 + $0x10] sm:$0xff]
  %v29 = vld [vmem:[%s0 + $0x18] sm:$0xff]
  %v30 = vld [vmem:[%s0 + $0x20] sm:$0xff]
  %v31 = vld [vmem:[%s0 + $0x28] sm:$0xff]
  %v32 = vld [vmem:[%s0 + $0x30] sm:$0xff]
  %v33 = vld [vmem:[%s0 + $0x38] sm:$0xff]
  %v34 = vld [vmem:[%s0 + $0x40] sm:$0xff]
  %v35 = vld [vmem:[%s0 + $0x48] sm:$0xff]
  %v36 = vld [vmem:[%s0 + $0x50] sm:$0xff]
  %47 = vst [vmem:[#allocation1] ss:$2 sm:$0xff] %v26
  %s48 = scalar_lea.vmem [#allocation1], 16
  %49 = vst [vmem:[%s48] ss:$2 sm:$0xff] %v27
  %s50 = scalar_lea.vmem [#allocation1], 32
  %51 = vst [vmem:[%s50] ss:$2 sm:$0xff] %v28
  %s52 = scalar_lea.vmem [#allocation1], 48
  %53 = vst [vmem:[%s52] ss:$2 sm:$0xff] %v29
  %v54 = vld.sshfl [vmem:[#allocation1] sm:$0xff pattern:$0x75316420]
  %v55 = vld.sshfl [vmem:[#allocation1 + $0x8] sm:$0xff pattern:$0x75316420]
  %v56 = vld.sshfl [vmem:[#allocation1 + $0x10] sm:$0xff pattern:$0x75316420]
  %v57 = vld.sshfl [vmem:[#allocation1 + $0x18] sm:$0xff pattern:$0x75316420]
  %v58 = vld.sshfl [vmem:[#allocation1 + $0x20] sm:$0xff pattern:$0x75316420]
  %v59 = vld.sshfl [vmem:[#allocation1 + $0x28] sm:$0xff pattern:$0x75316420]
  %v60 = vld.sshfl [vmem:[#allocation1 + $0x30] sm:$0xff pattern:$0x75316420]
  %v61 = vld.sshfl [vmem:[#allocation1 + $0x38] sm:$0xff pattern:$0x75316420]
  %62 = vst [vmem:[#allocation1] ss:$2 sm:$0xff] %v30
  %63 = vst [vmem:[%s48] ss:$2 sm:$0xff] %v31
  %64 = vst [vmem:[%s50] ss:$2 sm:$0xff] %v32
  %65 = vst [vmem:[%s52] ss:$2 sm:$0xff] %v33
  %v66 = vld.sshfl [vmem:[#allocation1] sm:$0xff pattern:$0x75316420]
  %v67 = vld.sshfl [vmem:[#allocation1 + $0x8] sm:$0xff pattern:$0x75316420]
  %v68 = vld.sshfl [vmem:[#allocation1 + $0x10] sm:$0xff pattern:$0x75316420]
  %v69 = vld.sshfl [vmem:[#allocation1 + $0x18] sm:$0xff pattern:$0x75316420]
  %v70 = vld.sshfl [vmem:[#allocation1 + $0x20] sm:$0xff pattern:$0x75316420]
  %v71 = vld.sshfl [vmem:[#allocation1 + $0x28] sm:$0xff pattern:$0x75316420]
  %v72 = vld.sshfl [vmem:[#allocation1 + $0x30] sm:$0xff pattern:$0x75316420]
  %v73 = vld.sshfl [vmem:[#allocation1 + $0x38] sm:$0xff pattern:$0x75316420]
  %74 = vst [vmem:[#allocation1] ss:$2 sm:$0xff] %v34
  %75 = vst [vmem:[%s48] ss:$2 sm:$0xff] %v35
  %v76 = vld.sshfl [vmem:[#allocation1] sm:$0xff pattern:$0x75316420]
  %v77 = vld.sshfl [vmem:[#allocation1 + $0x8] sm:$0xff pattern:$0x75316420]
  %v78 = vld.sshfl [vmem:[#allocation1 + $0x10] sm:$0xff pattern:$0x75316420]
  %v79 = vld.sshfl [vmem:[#allocation1 + $0x18] sm:$0xff pattern:$0x75316420]
  %s101 = scalar_lea.vmem [#allocation1], 1
  %102 = vst [vmem:[%s101] ss:$2 sm:$0xff] %v26
  %s103 = scalar_lea.vmem [#allocation1], 17
  %104 = vst [vmem:[%s103] ss:$2 sm:$0xff] %v27
  %s105 = scalar_lea.vmem [#allocation1], 33
  %106 = vst [vmem:[%s105] ss:$2 sm:$0xff] %v28
  %s107 = scalar_lea.vmem [#allocation1], 49
  %108 = vst [vmem:[%s107] ss:$2 sm:$0xff] %v29
  %v109 = vld.sshfl [vmem:[#allocation1] sm:$0xff pattern:$0x75316420]
  %v110 = vld.sshfl [vmem:[#allocation1 + $0x8] sm:$0xff pattern:$0x75316420]
  %v111 = vld.sshfl [vmem:[#allocation1 + $0x10] sm:$0xff pattern:$0x75316420]
  %v112 = vld.sshfl [vmem:[#allocation1 + $0x18] sm:$0xff pattern:$0x75316420]
  %v113 = vld.sshfl [vmem:[#allocation1 + $0x20] sm:$0xff pattern:$0x75316420]
  %v114 = vld.sshfl [vmem:[#allocation1 + $0x28] sm:$0xff pattern:$0x75316420]
  %v115 = vld.sshfl [vmem:[#allocation1 + $0x30] sm:$0xff pattern:$0x75316420]
  %v116 = vld.sshfl [vmem:[#allocation1 + $0x38] sm:$0xff pattern:$0x75316420]
  %117 = vst [vmem:[%s101] ss:$2 sm:$0xff] %v30
  %118 = vst [vmem:[%s103] ss:$2 sm:$0xff] %v31
  %119 = vst [vmem:[%s105] ss:$2 sm:$0xff] %v32
  %120 = vst [vmem:[%s107] ss:$2 sm:$0xff] %v33
  %v121 = vld.sshfl [vmem:[#allocation1] sm:$0xff pattern:$0x75316420]
  %v122 = vld.sshfl [vmem:[#allocation1 + $0x8] sm:$0xff pattern:$0x75316420]
  %v123 = vld.sshfl [vmem:[#allocation1 + $0x10] sm:$0xff pattern:$0x75316420]
  %v124 = vld.sshfl [vmem:[#allocation1 + $0x18] sm:$0xff pattern:$0x75316420]
  %v125 = vld.sshfl [vmem:[#allocation1 + $0x20] sm:$0xff pattern:$0x75316420]
  %v126 = vld.sshfl [vmem:[#allocation1 + $0x28] sm:$0xff pattern:$0x75316420]
  %v127 = vld.sshfl [vmem:[#allocation1 + $0x30] sm:$0xff pattern:$0x75316420]
  %v128 = vld.sshfl [vmem:[#allocation1 + $0x38] sm:$0xff pattern:$0x75316420]
  %129 = vst [vmem:[%s101] ss:$2 sm:$0xff] %v34
  %130 = vst [vmem:[%s103] ss:$2 sm:$0xff] %v35
  %131 = vst [vmem:[%s105] ss:$2 sm:$0xff] %v36
  %v132 = vld.sshfl [vmem:[#allocation1] sm:$0xff pattern:$0x75316420]
  %v133 = vld.sshfl [vmem:[#allocation1 + $0x8] sm:$0xff pattern:$0x75316420]
  %v134 = vld.sshfl [vmem:[#allocation1 + $0x10] sm:$0xff pattern:$0x75316420]
  %v135 = vld.sshfl [vmem:[#allocation1 + $0x18] sm:$0xff pattern:$0x75316420]
  %v136 = vld.sshfl [vmem:[#allocation1 + $0x20] sm:$0xff pattern:$0x75316420]
  %137 = vrot.lane.b32.xlu0 %v109, 127
  %v138 = vpop.permute.xlu0 %137
  %139 = vrot.lane.b32.xlu0 %v110, 127
  %v140 = vpop.permute.xlu0 %139
  %141 = vrot.lane.b32.xlu0 %v111, 127
  %v142 = vpop.permute.xlu0 %141
  %143 = vrot.lane.b32.xlu0 %v112, 127
  %v144 = vpop.permute.xlu0 %143
  %145 = vrot.lane.b32.xlu0 %v113, 127
  %v146 = vpop.permute.xlu0 %145
  %147 = vrot.lane.b32.xlu0 %v114, 127
  %v148 = vpop.permute.xlu0 %147
  %149 = vrot.lane.b32.xlu0 %v115, 127
  %v150 = vpop.permute.xlu0 %149
  %151 = vrot.lane.b32.xlu0 %v116, 127
  %v152 = vpop.permute.xlu0 %151
  %153 = vrot.lane.b32.xlu0 %v121, 127
  %v154 = vpop.permute.xlu0 %153
  %155 = vrot.lane.b32.xlu0 %v122, 127
  %v156 = vpop.permute.xlu0 %155
  %157 = vrot.lane.b32.xlu0 %v123, 127
  %v158 = vpop.permute.xlu0 %157
  %159 = vrot.lane.b32.xlu0 %v124, 127
  %v160 = vpop.permute.xlu0 %159
  %161 = vrot.lane.b32.xlu0 %v125, 127
  %v162 = vpop.permute.xlu0 %161
  %163 = vrot.lane.b32.xlu0 %v126, 127
  %v164 = vpop.permute.xlu0 %163
  %165 = vrot.lane.b32.xlu0 %v127, 127
  %v166 = vpop.permute.xlu0 %165
  %167 = vrot.lane.b32.xlu0 %v128, 127
  %v168 = vpop.permute.xlu0 %167
  %169 = vrot.lane.b32.xlu0 %v132, 127
  %v170 = vpop.permute.xlu0 %169
  %171 = vrot.lane.b32.xlu0 %v133, 127
  %v172 = vpop.permute.xlu0 %171
  %173 = vrot.lane.b32.xlu0 %v134, 127
  %v174 = vpop.permute.xlu0 %173
  %175 = vrot.lane.b32.xlu0 %v135, 127
  %v176 = vpop.permute.xlu0 %175
  %177 = vrot.lane.b32.xlu0 %v136, 127
  %v178 = vpop.permute.xlu0 %177
  %vm179 = vcmask 1039360
  %v180 = vsel %vm179, %v138, %v140
  %v181 = vsel %vm179, %v140, %v142
  %v182 = vsel %vm179, %v142, %v144
  %v183 = vsel %vm179, %v144, %v146
  %v184 = vsel %vm179, %v146, %v148
  %v185 = vsel %vm179, %v148, %v150
  %v186 = vsel %vm179, %v150, %v152
  %v187 = vsel %vm179, %v152, %v154
  %v188 = vsel %vm179, %v154, %v156
  %v189 = vsel %vm179, %v156, %v158
  %v190 = vsel %vm179, %v158, %v160
  %v191 = vsel %vm179, %v160, %v162
  %v192 = vsel %vm179, %v162, %v164
  %v193 = vsel %vm179, %v164, %v166
  %v194 = vsel %vm179, %v166, %v168
  %v195 = vsel %vm179, %v168, %v170
  %v196 = vsel %vm179, %v170, %v172
  %v197 = vsel %vm179, %v172, %v174
  %v198 = vsel %vm179, %v174, %v176
  %v199 = vsel %vm179, %v176, %v178
  %220 = vst [vmem:[#allocation1] ss:$2 sm:$0xff] %v26
  %s221 = scalar_lea.vmem [#allocation1], 16
  %222 = vst [vmem:[%s221] ss:$2 sm:$0xff] %v27
  %s223 = scalar_lea.vmem [#allocation1], 32
  %224 = vst [vmem:[%s223] ss:$2 sm:$0xff] %v28
  %s225 = scalar_lea.vmem [#allocation1], 48
  %226 = vst [vmem:[%s225] ss:$2 sm:$0xff] %v29
  %v227 = vld.sshfl [vmem:[#allocation1] sm:$0xff pattern:$0x75316420]
  %v228 = vld.sshfl [vmem:[#allocation1 + $0x8] sm:$0xff pattern:$0x75316420]
  %v229 = vld.sshfl [vmem:[#allocation1 + $0x10] sm:$0xff pattern:$0x75316420]
  %v230 = vld.sshfl [vmem:[#allocation1 + $0x18] sm:$0xff pattern:$0x75316420]
  %v231 = vld.sshfl [vmem:[#allocation1 + $0x20] sm:$0xff pattern:$0x75316420]
  %v232 = vld.sshfl [vmem:[#allocation1 + $0x28] sm:$0xff pattern:$0x75316420]
  %v233 = vld.sshfl [vmem:[#allocation1 + $0x30] sm:$0xff pattern:$0x75316420]
  %v234 = vld.sshfl [vmem:[#allocation1 + $0x38] sm:$0xff pattern:$0x75316420]
  %235 = vst [vmem:[#allocation1] ss:$2 sm:$0xff] %v30
  %236 = vst [vmem:[%s221] ss:$2 sm:$0xff] %v31
  %237 = vst [vmem:[%s223] ss:$2 sm:$0xff] %v32
  %238 = vst [vmem:[%s225] ss:$2 sm:$0xff] %v33
  %v239 = vld.sshfl [vmem:[#allocation1] sm:$0xff pattern:$0x75316420]
  %v240 = vld.sshfl [vmem:[#allocation1 + $0x8] sm:$0xff pattern:$0x75316420]
  %v241 = vld.sshfl [vmem:[#allocation1 + $0x10] sm:$0xff pattern:$0x75316420]
  %v242 = vld.sshfl [vmem:[#allocation1 + $0x18] sm:$0xff pattern:$0x75316420]
  %v243 = vld.sshfl [vmem:[#allocation1 + $0x20] sm:$0xff pattern:$0x75316420]
  %v244 = vld.sshfl [vmem:[#allocation1 + $0x28] sm:$0xff pattern:$0x75316420]
  %v245 = vld.sshfl [vmem:[#allocation1 + $0x30] sm:$0xff pattern:$0x75316420]
  %v246 = vld.sshfl [vmem:[#allocation1 + $0x38] sm:$0xff pattern:$0x75316420]
  %247 = vst [vmem:[#allocation1] ss:$2 sm:$0xff] %v34
  %248 = vst [vmem:[%s221] ss:$2 sm:$0xff] %v35
  %249 = vst [vmem:[%s223] ss:$2 sm:$0xff] %v36
  %v250 = vld.sshfl [vmem:[#allocation1] sm:$0xff pattern:$0x75316420]
  %v251 = vld.sshfl [vmem:[#allocation1 + $0x8] sm:$0xff pattern:$0x75316420]
  %v252 = vld.sshfl [vmem:[#allocation1 + $0x10] sm:$0xff pattern:$0x75316420]
  %v253 = vld.sshfl [vmem:[#allocation1 + $0x18] sm:$0xff pattern:$0x75316420]
  %v254 = vld.sshfl [vmem:[#allocation1 + $0x20] sm:$0xff pattern:$0x75316420]
  %255 = vrot.lane.b32.xlu0 %v227, 126
  %v256 = vpop.permute.xlu0 %255
  %257 = vrot.lane.b32.xlu0 %v228, 126
  %v258 = vpop.permute.xlu0 %257
  %259 = vrot.lane.b32.xlu0 %v229, 126
  %v260 = vpop.permute.xlu0 %259
  %261 = vrot.lane.b32.xlu0 %v230, 126
  %v262 = vpop.permute.xlu0 %261
  %263 = vrot.lane.b32.xlu0 %v231, 126
  %v264 = vpop.permute.xlu0 %263
  %265 = vrot.lane.b32.xlu0 %v232, 126
  %v266 = vpop.permute.xlu0 %265
  %267 = vrot.lane.b32.xlu0 %v233, 126
  %v268 = vpop.permute.xlu0 %267
  %269 = vrot.lane.b32.xlu0 %v234, 126
  %v270 = vpop.permute.xlu0 %269
  %271 = vrot.lane.b32.xlu0 %v239, 126
  %v272 = vpop.permute.xlu0 %271
  %273 = vrot.lane.b32.xlu0 %v240, 126
  %v274 = vpop.permute.xlu0 %273
  %275 = vrot.lane.b32.xlu0 %v241, 126
  %v276 = vpop.permute.xlu0 %275
  %277 = vrot.lane.b32.xlu0 %v242, 126
  %v278 = vpop.permute.xlu0 %277
  %279 = vrot.lane.b32.xlu0 %v243, 126
  %v280 = vpop.permute.xlu0 %279
  %281 = vrot.lane.b32.xlu0 %v244, 126
  %v282 = vpop.permute.xlu0 %281
  %283 = vrot.lane.b32.xlu0 %v245, 126
  %v284 = vpop.permute.xlu0 %283
  %285 = vrot.lane.b32.xlu0 %v246, 126
  %v286 = vpop.permute.xlu0 %285
  %287 = vrot.lane.b32.xlu0 %v250, 126
  %v288 = vpop.permute.xlu0 %287
  %289 = vrot.lane.b32.xlu0 %v251, 126
  %v290 = vpop.permute.xlu0 %289
  %291 = vrot.lane.b32.xlu0 %v252, 126
  %v292 = vpop.permute.xlu0 %291
  %293 = vrot.lane.b32.xlu0 %v253, 126
  %v294 = vpop.permute.xlu0 %293
  %295 = vrot.lane.b32.xlu0 %v254, 126
  %v296 = vpop.permute.xlu0 %295
  %vm297 = vcmask 1031168
  %v298 = vsel %vm297, %v256, %v258
  %v299 = vsel %vm297, %v258, %v260
  %v300 = vsel %vm297, %v260, %v262
  %v301 = vsel %vm297, %v262, %v264
  %v302 = vsel %vm297, %v264, %v266
  %v303 = vsel %vm297, %v266, %v268
  %v304 = vsel %vm297, %v268, %v270
  %v305 = vsel %vm297, %v270, %v272
  %v306 = vsel %vm297, %v272, %v274
  %v307 = vsel %vm297, %v274, %v276
  %v308 = vsel %vm297, %v276, %v278
  %v309 = vsel %vm297, %v278, %v280
  %v310 = vsel %vm297, %v280, %v282
  %v311 = vsel %vm297, %v282, %v284
  %v312 = vsel %vm297, %v284, %v286
  %v313 = vsel %vm297, %v286, %v288
  %v314 = vsel %vm297, %v288, %v290
  %v315 = vsel %vm297, %v290, %v292
  %v316 = vsel %vm297, %v292, %v294
  %v317 = vsel %vm297, %v294, %v296
  %s338 = scalar_lea.vmem [#allocation1], 1
  %339 = vst [vmem:[%s338] ss:$2 sm:$0xff] %v26
  %s340 = scalar_lea.vmem [#allocation1], 17
  %341 = vst [vmem:[%s340] ss:$2 sm:$0xff] %v27
  %s342 = scalar_lea.vmem [#allocation1], 33
  %343 = vst [vmem:[%s342] ss:$2 sm:$0xff] %v28
  %s344 = scalar_lea.vmem [#allocation1], 49
  %345 = vst [vmem:[%s344] ss:$2 sm:$0xff] %v29
  %v346 = vld.sshfl [vmem:[#allocation1] sm:$0xff pattern:$0x75316420]
  %v347 = vld.sshfl [vmem:[#allocation1 + $0x8] sm:$0xff pattern:$0x75316420]
  %v348 = vld.sshfl [vmem:[#allocation1 + $0x10] sm:$0xff pattern:$0x75316420]
  %v349 = vld.sshfl [vmem:[#allocation1 + $0x18] sm:$0xff pattern:$0x75316420]
  %v350 = vld.sshfl [vmem:[#allocation1 + $0x20] sm:$0xff pattern:$0x75316420]
  %v351 = vld.sshfl [vmem:[#allocation1 + $0x28] sm:$0xff pattern:$0x75316420]
  %v352 = vld.sshfl [vmem:[#allocation1 + $0x30] sm:$0xff pattern:$0x75316420]
  %v353 = vld.sshfl [vmem:[#allocation1 + $0x38] sm:$0xff pattern:$0x75316420]
  %354 = vst [vmem:[%s338] ss:$2 sm:$0xff] %v30
  %355 = vst [vmem:[%s340] ss:$2 sm:$0xff] %v31
  %356 = vst [vmem:[%s342] ss:$2 sm:$0xff] %v32
  %357 = vst [vmem:[%s344] ss:$2 sm:$0xff] %v33
  %v358 = vld.sshfl [vmem:[#allocation1] sm:$0xff pattern:$0x75316420]
  %v359 = vld.sshfl [vmem:[#allocation1 + $0x8] sm:$0xff pattern:$0x75316420]
  %v360 = vld.sshfl [vmem:[#allocation1 + $0x10] sm:$0xff pattern:$0x75316420]
  %v361 = vld.sshfl [vmem:[#allocation1 + $0x18] sm:$0xff pattern:$0x75316420]
  %v362 = vld.sshfl [vmem:[#allocation1 + $0x20] sm:$0xff pattern:$0x75316420]
  %v363 = vld.sshfl [vmem:[#allocation1 + $0x28] sm:$0xff pattern:$0x75316420]
  %v364 = vld.sshfl [vmem:[#allocation1 + $0x30] sm:$0xff pattern:$0x75316420]
  %v365 = vld.sshfl [vmem:[#allocation1 + $0x38] sm:$0xff pattern:$0x75316420]
  %366 = vst [vmem:[%s338] ss:$2 sm:$0xff] %v34
  %367 = vst [vmem:[%s340] ss:$2 sm:$0xff] %v35
  %368 = vst [vmem:[%s342] ss:$2 sm:$0xff] %v36
  %v369 = vld.sshfl [vmem:[#allocation1] sm:$0xff pattern:$0x75316420]
  %v370 = vld.sshfl [vmem:[#allocation1 + $0x8] sm:$0xff pattern:$0x75316420]
  %v371 = vld.sshfl [vmem:[#allocation1 + $0x10] sm:$0xff pattern:$0x75316420]
  %v372 = vld.sshfl [vmem:[#allocation1 + $0x18] sm:$0xff pattern:$0x75316420]
  %v373 = vld.sshfl [vmem:[#allocation1 + $0x20] sm:$0xff pattern:$0x75316420]
  %374 = vrot.lane.b32.xlu0 %v346, 108
  %v375 = vpop.permute.xlu0 %374
  %376 = vrot.lane.b32.xlu0 %v347, 108
  %v377 = vpop.permute.xlu0 %376
  %378 = vrot.lane.b32.xlu0 %v348, 108
  %v379 = vpop.permute.xlu0 %378
  %380 = vrot.lane.b32.xlu0 %v349, 108
  %v381 = vpop.permute.xlu0 %380
  %382 = vrot.lane.b32.xlu0 %v350, 108
  %v383 = vpop.permute.xlu0 %382
  %384 = vrot.lane.b32.xlu0 %v351, 108
  %v385 = vpop.permute.xlu0 %384
  %386 = vrot.lane.b32.xlu0 %v352, 108
  %v387 = vpop.permute.xlu0 %386
  %388 = vrot.lane.b32.xlu0 %v353, 108
  %v389 = vpop.permute.xlu0 %388
  %390 = vrot.lane.b32.xlu0 %v358, 108
  %v391 = vpop.permute.xlu0 %390
  %392 = vrot.lane.b32.xlu0 %v359, 108
  %v393 = vpop.permute.xlu0 %392
  %394 = vrot.lane.b32.xlu0 %v360, 108
  %v395 = vpop.permute.xlu0 %394
  %396 = vrot.lane.b32.xlu0 %v361, 108
  %v397 = vpop.permute.xlu0 %396
  %398 = vrot.lane.b32.xlu0 %v362, 108
  %v399 = vpop.permute.xlu0 %398
  %400 = vrot.lane.b32.xlu0 %v363, 108
  %v401 = vpop.permute.xlu0 %400
  %402 = vrot.lane.b32.xlu0 %v364, 108
  %v403 = vpop.permute.xlu0 %402
  %404 = vrot.lane.b32.xlu0 %v365, 108
  %v405 = vpop.permute.xlu0 %404
  %406 = vrot.lane.b32.xlu0 %v369, 108
  %v407 = vpop.permute.xlu0 %406
  %408 = vrot.lane.b32.xlu0 %v370, 108
  %v409 = vpop.permute.xlu0 %408
  %410 = vrot.lane.b32.xlu0 %v371, 108
  %v411 = vpop.permute.xlu0 %410
  %412 = vrot.lane.b32.xlu0 %v372, 108
  %v413 = vpop.permute.xlu0 %412
  %414 = vrot.lane.b32.xlu0 %v373, 108
  %v415 = vpop.permute.xlu0 %414
  %vm416 = vcmask 883712
  %v417 = vsel %vm416, %v375, %v377
  %v418 = vsel %vm416, %v377, %v379
  %v419 = vsel %vm416, %v379, %v381
  %v420 = vsel %vm416, %v381, %v383
  %v421 = vsel %vm416, %v383, %v385
  %v422 = vsel %vm416, %v385, %v387
  %v423 = vsel %vm416, %v387, %v389
  %v424 = vsel %vm416, %v389, %v391
  %v425 = vsel %vm416, %v391, %v393
  %v426 = vsel %vm416, %v393, %v395
  %v427 = vsel %vm416, %v395, %v397
  %v428 = vsel %vm416, %v397, %v399
  %v429 = vsel %vm416, %v399, %v401
  %v430 = vsel %vm416, %v401, %v403
  %v431 = vsel %vm416, %v403, %v405
  %v432 = vsel %vm416, %v405, %v407
  %v433 = vsel %vm416, %v407, %v409
  %v434 = vsel %vm416, %v409, %v411
  %v435 = vsel %vm416, %v411, %v413
  %v436 = vsel %vm416, %v413, %v415
  %457 = vst [vmem:[#allocation1] ss:$2 sm:$0xff] %v26
  %s458 = scalar_lea.vmem [#allocation1], 16
  %459 = vst [vmem:[%s458] ss:$2 sm:$0xff] %v27
  %s460 = scalar_lea.vmem [#allocation1], 32
  %461 = vst [vmem:[%s460] ss:$2 sm:$0xff] %v28
  %s462 = scalar_lea.vmem [#allocation1], 48
  %463 = vst [vmem:[%s462] ss:$2 sm:$0xff] %v29
  %v464 = vld.sshfl [vmem:[#allocation1] sm:$0xff pattern:$0x75316420]
  %v465 = vld.sshfl [vmem:[#allocation1 + $0x8] sm:$0xff pattern:$0x75316420]
  %v466 = vld.sshfl [vmem:[#allocation1 + $0x10] sm:$0xff pattern:$0x75316420]
  %v467 = vld.sshfl [vmem:[#allocation1 + $0x18] sm:$0xff pattern:$0x75316420]
  %v468 = vld.sshfl [vmem:[#allocation1 + $0x20] sm:$0xff pattern:$0x75316420]
  %v469 = vld.sshfl [vmem:[#allocation1 + $0x28] sm:$0xff pattern:$0x75316420]
  %v470 = vld.sshfl [vmem:[#allocation1 + $0x30] sm:$0xff pattern:$0x75316420]
  %v471 = vld.sshfl [vmem:[#allocation1 + $0x38] sm:$0xff pattern:$0x75316420]
  %472 = vst [vmem:[#allocation1] ss:$2 sm:$0xff] %v30
  %473 = vst [vmem:[%s458] ss:$2 sm:$0xff] %v31
  %474 = vst [vmem:[%s460] ss:$2 sm:$0xff] %v32
  %475 = vst [vmem:[%s462] ss:$2 sm:$0xff] %v33
  %v476 = vld.sshfl [vmem:[#allocation1] sm:$0xff pattern:$0x75316420]
  %v477 = vld.sshfl [vmem:[#allocation1 + $0x8] sm:$0xff pattern:$0x75316420]
  %v478 = vld.sshfl [vmem:[#allocation1 + $0x10] sm:$0xff pattern:$0x75316420]
  %v479 = vld.sshfl [vmem:[#allocation1 + $0x18] sm:$0xff pattern:$0x75316420]
  %v480 = vld.sshfl [vmem:[#allocation1 + $0x20] sm:$0xff pattern:$0x75316420]
  %v481 = vld.sshfl [vmem:[#allocation1 + $0x28] sm:$0xff pattern:$0x75316420]
  %v482 = vld.sshfl [vmem:[#allocation1 + $0x30] sm:$0xff pattern:$0x75316420]
  %v483 = vld.sshfl [vmem:[#allocation1 + $0x38] sm:$0xff pattern:$0x75316420]
  %484 = vst [vmem:[#allocation1] ss:$2 sm:$0xff] %v34
  %485 = vst [vmem:[%s458] ss:$2 sm:$0xff] %v35
  %486 = vst [vmem:[%s460] ss:$2 sm:$0xff] %v36
  %v487 = vld.sshfl [vmem:[#allocation1] sm:$0xff pattern:$0x75316420]
  %v488 = vld.sshfl [vmem:[#allocation1 + $0x8] sm:$0xff pattern:$0x75316420]
  %v489 = vld.sshfl [vmem:[#allocation1 + $0x10] sm:$0xff pattern:$0x75316420]
  %v490 = vld.sshfl [vmem:[#allocation1 + $0x18] sm:$0xff pattern:$0x75316420]
  %v491 = vld.sshfl [vmem:[#allocation1 + $0x20] sm:$0xff pattern:$0x75316420]
  %492 = vrot.lane.b32.xlu0 %v464, 107
  %v493 = vpop.permute.xlu0 %492
  %494 = vrot.lane.b32.xlu0 %v465, 107
  %v495 = vpop.permute.xlu0 %494
  %496 = vrot.lane.b32.xlu0 %v466, 107
  %v497 = vpop.permute.xlu0 %496
  %498 = vrot.lane.b32.xlu0 %v467, 107
  %v499 = vpop.permute.xlu0 %498
  %500 = vrot.lane.b32.xlu0 %v468, 107
  %v501 = vpop.permute.xlu0 %500
  %502 = vrot.lane.b32.xlu0 %v469, 107
  %v503 = vpop.permute.xlu0 %502
  %504 = vrot.lane.b32.xlu0 %v470, 107
  %v505 = vpop.permute.xlu0 %504
  %506 = vrot.lane.b32.xlu0 %v471, 107
  %v507 = vpop.permute.xlu0 %506
  %508 = vrot.lane.b32.xlu0 %v476, 107
  %v509 = vpop.permute.xlu0 %508
  %510 = vrot.lane.b32.xlu0 %v477, 107
  %v511 = vpop.permute.xlu0 %510
  %512 = vrot.lane.b32.xlu0 %v478, 107
  %v513 = vpop.permute.xlu0 %512
  %514 = vrot.lane.b32.xlu0 %v479, 107
  %v515 = vpop.permute.xlu0 %514
  %516 = vrot.lane.b32.xlu0 %v480, 107
  %v517 = vpop.permute.xlu0 %516
  %518 = vrot.lane.b32.xlu0 %v481, 107
  %v519 = vpop.permute.xlu0 %518
  %520 = vrot.lane.b32.xlu0 %v482, 107
  %v521 = vpop.permute.xlu0 %520
  %522 = vrot.lane.b32.xlu0 %v483, 107
  %v523 = vpop.permute.xlu0 %522
  %524 = vrot.lane.b32.xlu0 %v487, 107
  %v525 = vpop.permute.xlu0 %524
  %526 = vrot.lane.b32.xlu0 %v488, 107
  %v527 = vpop.permute.xlu0 %526
  %528 = vrot.lane.b32.xlu0 %v489, 107
  %v529 = vpop.permute.xlu0 %528
  %530 = vrot.lane.b32.xlu0 %v490, 107
  %v531 = vpop.permute.xlu0 %530
  %532 = vrot.lane.b32.xlu0 %v491, 107
  %v533 = vpop.permute.xlu0 %532
  %vm534 = vcmask 875520
  %v535 = vsel %vm534, %v493, %v495
  %v536 = vsel %vm534, %v495, %v497
  %v537 = vsel %vm534, %v497, %v499
  %v538 = vsel %vm534, %v499, %v501
  %v539 = vsel %vm534, %v501, %v503
  %v540 = vsel %vm534, %v503, %v505
  %v541 = vsel %vm534, %v505, %v507
  %v542 = vsel %vm534, %v507, %v509
  %v543 = vsel %vm534, %v509, %v511
  %v544 = vsel %vm534, %v511, %v513
  %v545 = vsel %vm534, %v513, %v515
  %v546 = vsel %vm534, %v515, %v517
  %v547 = vsel %vm534, %v517, %v519
  %v548 = vsel %vm534, %v519, %v521
  %v549 = vsel %vm534, %v521, %v523
  %v550 = vsel %vm534, %v523, %v525
  %v551 = vsel %vm534, %v525, %v527
  %v552 = vsel %vm534, %v527, %v529
  %v553 = vsel %vm534, %v529, %v531
  %v554 = vsel %vm534, %v531, %v533
  %s575 = scalar_lea.vmem [#allocation1], 1
  %576 = vst [vmem:[%s575] ss:$2 sm:$0xff] %v26
  %s577 = scalar_lea.vmem [#allocation1], 17
  %578 = vst [vmem:[%s577] ss:$2 sm:$0xff] %v27
  %s579 = scalar_lea.vmem [#allocation1], 33
  %580 = vst [vmem:[%s579] ss:$2 sm:$0xff] %v28
  %s581 = scalar_lea.vmem [#allocation1], 49
  %582 = vst [vmem:[%s581] ss:$2 sm:$0xff] %v29
  %v583 = vld.sshfl [vmem:[#allocation1] sm:$0xff pattern:$0x75316420]
  %v584 = vld.sshfl [vmem:[#allocation1 + $0x8] sm:$0xff pattern:$0x75316420]
  %v585 = vld.sshfl [vmem:[#allocation1 + $0x10] sm:$0xff pattern:$0x75316420]
  %v586 = vld.sshfl [vmem:[#allocation1 + $0x18] sm:$0xff pattern:$0x75316420]
  %v587 = vld.sshfl [vmem:[#allocation1 + $0x20] sm:$0xff pattern:$0x75316420]
  %v588 = vld.sshfl [vmem:[#allocation1 + $0x28] sm:$0xff pattern:$0x75316420]
  %v589 = vld.sshfl [vmem:[#allocation1 + $0x30] sm:$0xff pattern:$0x75316420]
  %v590 = vld.sshfl [vmem:[#allocation1 + $0x38] sm:$0xff pattern:$0x75316420]
  %591 = vst [vmem:[%s575] ss:$2 sm:$0xff] %v30
  %592 = vst [vmem:[%s577] ss:$2 sm:$0xff] %v31
  %593 = vst [vmem:[%s579] ss:$2 sm:$0xff] %v32
  %594 = vst [vmem:[%s581] ss:$2 sm:$0xff] %v33
  %v595 = vld.sshfl [vmem:[#allocation1] sm:$0xff pattern:$0x75316420]
  %v596 = vld.sshfl [vmem:[#allocation1 + $0x8] sm:$0xff pattern:$0x75316420]
  %v597 = vld.sshfl [vmem:[#allocation1 + $0x10] sm:$0xff pattern:$0x75316420]
  %v598 = vld.sshfl [vmem:[#allocation1 + $0x18] sm:$0xff pattern:$0x75316420]
  %v599 = vld.sshfl [vmem:[#allocation1 + $0x20] sm:$0xff pattern:$0x75316420]
  %v600 = vld.sshfl [vmem:[#allocation1 + $0x28] sm:$0xff pattern:$0x75316420]
  %v601 = vld.sshfl [vmem:[#allocation1 + $0x30] sm:$0xff pattern:$0x75316420]
  %v602 = vld.sshfl [vmem:[#allocation1 + $0x38] sm:$0xff pattern:$0x75316420]
  %603 = vst [vmem:[%s575] ss:$2 sm:$0xff] %v34
  %604 = vst [vmem:[%s577] ss:$2 sm:$0xff] %v35
  %605 = vst [vmem:[%s579] ss:$2 sm:$0xff] %v36
  %v606 = vld.sshfl [vmem:[#allocation1] sm:$0xff pattern:$0x75316420]
  %v607 = vld.sshfl [vmem:[#allocation1 + $0x8] sm:$0xff pattern:$0x75316420]
  %v608 = vld.sshfl [vmem:[#allocation1 + $0x10] sm:$0xff pattern:$0x75316420]
  %v609 = vld.sshfl [vmem:[#allocation1 + $0x18] sm:$0xff pattern:$0x75316420]
  %v610 = vld.sshfl [vmem:[#allocation1 + $0x20] sm:$0xff pattern:$0x75316420]
  %611 = vrot.lane.b32.xlu0 %v583, 106
  %v612 = vpop.permute.xlu0 %611
  %613 = vrot.lane.b32.xlu0 %v584, 106
  %v614 = vpop.permute.xlu0 %613
  %615 = vrot.lane.b32.xlu0 %v585, 106
  %v616 = vpop.permute.xlu0 %615
  %617 = vrot.lane.b32.xlu0 %v586, 106
  %v618 = vpop.permute.xlu0 %617
  %619 = vrot.lane.b32.xlu0 %v587, 106
  %v620 = vpop.permute.xlu0 %619
  %621 = vrot.lane.b32.xlu0 %v588, 106
  %v622 = vpop.permute.xlu0 %621
  %623 = vrot.lane.b32.xlu0 %v589, 106
  %v624 = vpop.permute.xlu0 %623
  %625 = vrot.lane.b32.xlu0 %v590, 106
  %v626 = vpop.permute.xlu0 %625
  %627 = vrot.lane.b32.xlu0 %v595, 106
  %v628 = vpop.permute.xlu0 %627
  %629 = vrot.lane.b32.xlu0 %v596, 106
  %v630 = vpop.permute.xlu0 %629
  %631 = vrot.lane.b32.xlu0 %v597, 106
  %v632 = vpop.permute.xlu0 %631
  %633 = vrot.lane.b32.xlu0 %v598, 106
  %v634 = vpop.permute.xlu0 %633
  %635 = vrot.lane.b32.xlu0 %v599, 106
  %v636 = vpop.permute.xlu0 %635
  %637 = vrot.lane.b32.xlu0 %v600, 106
  %v638 = vpop.permute.xlu0 %637
  %639 = vrot.lane.b32.xlu0 %v601, 106
  %v640 = vpop.permute.xlu0 %639
  %641 = vrot.lane.b32.xlu0 %v602, 106
  %v642 = vpop.permute.xlu0 %641
  %643 = vrot.lane.b32.xlu0 %v606, 106
  %v644 = vpop.permute.xlu0 %643
  %645 = vrot.lane.b32.xlu0 %v607, 106
  %v646 = vpop.permute.xlu0 %645
  %647 = vrot.lane.b32.xlu0 %v608, 106
  %v648 = vpop.permute.xlu0 %647
  %649 = vrot.lane.b32.xlu0 %v609, 106
  %v650 = vpop.permute.xlu0 %649
  %651 = vrot.lane.b32.xlu0 %v610, 106
  %v652 = vpop.permute.xlu0 %651
  %vm653 = vcmask 867328
  %v654 = vsel %vm653, %v612, %v614
  %v655 = vsel %vm653, %v614, %v616
  %v656 = vsel %vm653, %v616, %v618
  %v657 = vsel %vm653, %v618, %v620
  %v658 = vsel %vm653, %v620, %v622
  %v659 = vsel %vm653, %v622, %v624
  %v660 = vsel %vm653, %v624, %v626
  %v661 = vsel %vm653, %v626, %v628
  %v662 = vsel %vm653, %v628, %v630
  %v663 = vsel %vm653, %v630, %v632
  %v664 = vsel %vm653, %v632, %v634
  %v665 = vsel %vm653, %v634, %v636
  %v666 = vsel %vm653, %v636, %v638
  %v667 = vsel %vm653, %v638, %v640
  %v668 = vsel %vm653, %v640, %v642
  %v669 = vsel %vm653, %v642, %v644
  %v670 = vsel %vm653, %v644, %v646
  %v671 = vsel %vm653, %v646, %v648
  %v672 = vsel %vm653, %v648, %v650
  %v673 = vsel %vm653, %v650, %v652
  %694 = vst [vmem:[#allocation1] ss:$2 sm:$0xff] %v26
  %s695 = scalar_lea.vmem [#allocation1], 16
  %696 = vst [vmem:[%s695] ss:$2 sm:$0xff] %v27
  %s697 = scalar_lea.vmem [#allocation1], 32
  %698 = vst [vmem:[%s697] ss:$2 sm:$0xff] %v28
  %s699 = scalar_lea.vmem [#allocation1], 48
  %700 = vst [vmem:[%s699] ss:$2 sm:$0xff] %v29
  %v701 = vld.sshfl [vmem:[#allocation1] sm:$0xff pattern:$0x75316420]
  %v702 = vld.sshfl [vmem:[#allocation1 + $0x8] sm:$0xff pattern:$0x75316420]
  %v703 = vld.sshfl [vmem:[#allocation1 + $0x10] sm:$0xff pattern:$0x75316420]
  %v704 = vld.sshfl [vmem:[#allocation1 + $0x18] sm:$0xff pattern:$0x75316420]
  %v705 = vld.sshfl [vmem:[#allocation1 + $0x20] sm:$0xff pattern:$0x75316420]
  %v706 = vld.sshfl [vmem:[#allocation1 + $0x28] sm:$0xff pattern:$0x75316420]
  %v707 = vld.sshfl [vmem:[#allocation1 + $0x30] sm:$0xff pattern:$0x75316420]
  %v708 = vld.sshfl [vmem:[#allocation1 + $0x38] sm:$0xff pattern:$0x75316420]
  %709 = vst [vmem:[#allocation1] ss:$2 sm:$0xff] %v30
  %710 = vst [vmem:[%s695] ss:$2 sm:$0xff] %v31
  %711 = vst [vmem:[%s697] ss:$2 sm:$0xff] %v32
  %712 = vst [vmem:[%s699] ss:$2 sm:$0xff] %v33
  %v713 = vld.sshfl [vmem:[#allocation1] sm:$0xff pattern:$0x75316420]
  %v714 = vld.sshfl [vmem:[#allocation1 + $0x8] sm:$0xff pattern:$0x75316420]
  %v715 = vld.sshfl [vmem:[#allocation1 + $0x10] sm:$0xff pattern:$0x75316420]
  %v716 = vld.sshfl [vmem:[#allocation1 + $0x18] sm:$0xff pattern:$0x75316420]
  %v717 = vld.sshfl [vmem:[#allocation1 + $0x20] sm:$0xff pattern:$0x75316420]
  %v718 = vld.sshfl [vmem:[#allocation1 + $0x28] sm:$0xff pattern:$0x75316420]
  %v719 = vld.sshfl [vmem:[#allocation1 + $0x30] sm:$0xff pattern:$0x75316420]
  %v720 = vld.sshfl [vmem:[#allocation1 + $0x38] sm:$0xff pattern:$0x75316420]
  %721 = vst [vmem:[#allocation1] ss:$2 sm:$0xff] %v34
  %722 = vst [vmem:[%s695] ss:$2 sm:$0xff] %v35
  %723 = vst [vmem:[%s697] ss:$2 sm:$0xff] %v36
  %v724 = vld.sshfl [vmem:[#allocation1] sm:$0xff pattern:$0x75316420]
  %v725 = vld.sshfl [vmem:[#allocation1 + $0x8] sm:$0xff pattern:$0x75316420]
  %v726 = vld.sshfl [vmem:[#allocation1 + $0x10] sm:$0xff pattern:$0x75316420]
  %v727 = vld.sshfl [vmem:[#allocation1 + $0x18] sm:$0xff pattern:$0x75316420]
  %v728 = vld.sshfl [vmem:[#allocation1 + $0x20] sm:$0xff pattern:$0x75316420]
  %729 = vrot.lane.b32.xlu0 %v701, 88
  %v730 = vpop.permute.xlu0 %729
  %731 = vrot.lane.b32.xlu0 %v702, 88
  %v732 = vpop.permute.xlu0 %731
  %733 = vrot.lane.b32.xlu0 %v703, 88
  %v734 = vpop.permute.xlu0 %733
  %735 = vrot.lane.b32.xlu0 %v704, 88
  %v736 = vpop.permute.xlu0 %735
  %737 = vrot.lane.b32.xlu0 %v705, 88
  %v738 = vpop.permute.xlu0 %737
  %739 = vrot.lane.b32.xlu0 %v706, 88
  %v740 = vpop.permute.xlu0 %739
  %741 = vrot.lane.b32.xlu0 %v707, 88
  %v742 = vpop.permute.xlu0 %741
  %743 = vrot.lane.b32.xlu0 %v708, 88
  %v744 = vpop.permute.xlu0 %743
  %745 = vrot.lane.b32.xlu0 %v713, 88
  %v746 = vpop.permute.xlu0 %745
  %747 = vrot.lane.b32.xlu0 %v714, 88
  %v748 = vpop.permute.xlu0 %747
  %749 = vrot.lane.b32.xlu0 %v715, 88
  %v750 = vpop.permute.xlu0 %749
  %751 = vrot.lane.b32.xlu0 %v716, 88
  %v752 = vpop.permute.xlu0 %751
  %753 = vrot.lane.b32.xlu0 %v717, 88
  %v754 = vpop.permute.xlu0 %753
  %755 = vrot.lane.b32.xlu0 %v718, 88
  %v756 = vpop.permute.xlu0 %755
  %757 = vrot.lane.b32.xlu0 %v719, 88
  %v758 = vpop.permute.xlu0 %757
  %759 = vrot.lane.b32.xlu0 %v720, 88
  %v760 = vpop.permute.xlu0 %759
  %761 = vrot.lane.b32.xlu0 %v724, 88
  %v762 = vpop.permute.xlu0 %761
  %763 = vrot.lane.b32.xlu0 %v725, 88
  %v764 = vpop.permute.xlu0 %763
  %765 = vrot.lane.b32.xlu0 %v726, 88
  %v766 = vpop.permute.xlu0 %765
  %767 = vrot.lane.b32.xlu0 %v727, 88
  %v768 = vpop.permute.xlu0 %767
  %769 = vrot.lane.b32.xlu0 %v728, 88
  %v770 = vpop.permute.xlu0 %769
  %vm771 = vcmask 719872
  %v772 = vsel %vm771, %v730, %v732
  %v773 = vsel %vm771, %v732, %v734
  %v774 = vsel %vm771, %v734, %v736
  %v775 = vsel %vm771, %v736, %v738
  %v776 = vsel %vm771, %v738, %v740
  %v777 = vsel %vm771, %v740, %v742
  %v778 = vsel %vm771, %v742, %v744
  %v779 = vsel %vm771, %v744, %v746
  %v780 = vsel %vm771, %v746, %v748
  %v781 = vsel %vm771, %v748, %v750
  %v782 = vsel %vm771, %v750, %v752
  %v783 = vsel %vm771, %v752, %v754
  %v784 = vsel %vm771, %v754, %v756
  %v785 = vsel %vm771, %v756, %v758
  %v786 = vsel %vm771, %v758, %v760
  %v787 = vsel %vm771, %v760, %v762
  %v788 = vsel %vm771, %v762, %v764
  %v789 = vsel %vm771, %v764, %v766
  %v790 = vsel %vm771, %v766, %v768
  %v791 = vsel %vm771, %v768, %v770
  %s812 = scalar_lea.vmem [#allocation1], 1
  %813 = vst [vmem:[%s812] ss:$2 sm:$0xff] %v26
  %s814 = scalar_lea.vmem [#allocation1], 17
  %815 = vst [vmem:[%s814] ss:$2 sm:$0xff] %v27
  %s816 = scalar_lea.vmem [#allocation1], 33
  %817 = vst [vmem:[%s816] ss:$2 sm:$0xff] %v28
  %s818 = scalar_lea.vmem [#allocation1], 49
  %819 = vst [vmem:[%s818] ss:$2 sm:$0xff] %v29
  %v820 = vld.sshfl [vmem:[#allocation1] sm:$0xff pattern:$0x75316420]
  %v821 = vld.sshfl [vmem:[#allocation1 + $0x8] sm:$0xff pattern:$0x75316420]
  %v822 = vld.sshfl [vmem:[#allocation1 + $0x10] sm:$0xff pattern:$0x75316420]
  %v823 = vld.sshfl [vmem:[#allocation1 + $0x18] sm:$0xff pattern:$0x75316420]
  %v824 = vld.sshfl [vmem:[#allocation1 + $0x20] sm:$0xff pattern:$0x75316420]
  %v825 = vld.sshfl [vmem:[#allocation1 + $0x28] sm:$0xff pattern:$0x75316420]
  %v826 = vld.sshfl [vmem:[#allocation1 + $0x30] sm:$0xff pattern:$0x75316420]
  %v827 = vld.sshfl [vmem:[#allocation1 + $0x38] sm:$0xff pattern:$0x75316420]
  %828 = vst [vmem:[%s812] ss:$2 sm:$0xff] %v30
  %829 = vst [vmem:[%s814] ss:$2 sm:$0xff] %v31
  %830 = vst [vmem:[%s816] ss:$2 sm:$0xff] %v32
  %831 = vst [vmem:[%s818] ss:$2 sm:$0xff] %v33
  %v832 = vld.sshfl [vmem:[#allocation1] sm:$0xff pattern:$0x75316420]
  %v833 = vld.sshfl [vmem:[#allocation1 + $0x8] sm:$0xff pattern:$0x75316420]
  %v834 = vld.sshfl [vmem:[#allocation1 + $0x10] sm:$0xff pattern:$0x75316420]
  %v835 = vld.sshfl [vmem:[#allocation1 + $0x18] sm:$0xff pattern:$0x75316420]
  %v836 = vld.sshfl [vmem:[#allocation1 + $0x20] sm:$0xff pattern:$0x75316420]
  %v837 = vld.sshfl [vmem:[#allocation1 + $0x28] sm:$0xff pattern:$0x75316420]
  %v838 = vld.sshfl [vmem:[#allocation1 + $0x30] sm:$0xff pattern:$0x75316420]
  %v839 = vld.sshfl [vmem:[#allocation1 + $0x38] sm:$0xff pattern:$0x75316420]
  %840 = vst [vmem:[%s812] ss:$2 sm:$0xff] %v34
  %841 = vst [vmem:[%s814] ss:$2 sm:$0xff] %v35
  %842 = vst [vmem:[%s816] ss:$2 sm:$0xff] %v36
  %v843 = vld.sshfl [vmem:[#allocation1] sm:$0xff pattern:$0x75316420]
  %v844 = vld.sshfl [vmem:[#allocation1 + $0x8] sm:$0xff pattern:$0x75316420]
  %v845 = vld.sshfl [vmem:[#allocation1 + $0x10] sm:$0xff pattern:$0x75316420]
  %v846 = vld.sshfl [vmem:[#allocation1 + $0x18] sm:$0xff pattern:$0x75316420]
  %v847 = vld.sshfl [vmem:[#allocation1 + $0x20] sm:$0xff pattern:$0x75316420]
  %848 = vrot.lane.b32.xlu0 %v820, 87
  %v849 = vpop.permute.xlu0 %848
  %850 = vrot.lane.b32.xlu0 %v821, 87
  %v851 = vpop.permute.xlu0 %850
  %852 = vrot.lane.b32.xlu0 %v822, 87
  %v853 = vpop.permute.xlu0 %852
  %854 = vrot.lane.b32.xlu0 %v823, 87
  %v855 = vpop.permute.xlu0 %854
  %856 = vrot.lane.b32.xlu0 %v824, 87
  %v857 = vpop.permute.xlu0 %856
  %858 = vrot.lane.b32.xlu0 %v825, 87
  %v859 = vpop.permute.xlu0 %858
  %860 = vrot.lane.b32.xlu0 %v826, 87
  %v861 = vpop.permute.xlu0 %860
  %862 = vrot.lane.b32.xlu0 %v827, 87
  %v863 = vpop.permute.xlu0 %862
  %864 = vrot.lane.b32.xlu0 %v832, 87
  %v865 = vpop.permute.xlu0 %864
  %866 = vrot.lane.b32.xlu0 %v833, 87
  %v867 = vpop.permute.xlu0 %866
  %868 = vrot.lane.b32.xlu0 %v834, 87
  %v869 = vpop.permute.xlu0 %868
  %870 = vrot.lane.b32.xlu0 %v835, 87
  %v871 = vpop.permute.xlu0 %870
  %872 = vrot.lane.b32.xlu0 %v836, 87
  %v873 = vpop.permute.xlu0 %872
  %874 = vrot.lane.b32.xlu0 %v837, 87
  %v875 = vpop.permute.xlu0 %874
  %876 = vrot.lane.b32.xlu0 %v838, 87
  %v877 = vpop.permute.xlu0 %876
  %878 = vrot.lane.b32.xlu0 %v839, 87
  %v879 = vpop.permute.xlu0 %878
  %880 = vrot.lane.b32.xlu0 %v843, 87
  %v881 = vpop.permute.xlu0 %880
  %882 = vrot.lane.b32.xlu0 %v844, 87
  %v883 = vpop.permute.xlu0 %882
  %884 = vrot.lane.b32.xlu0 %v845, 87
  %v885 = vpop.permute.xlu0 %884
  %886 = vrot.lane.b32.xlu0 %v846, 87
  %v887 = vpop.permute.xlu0 %886
  %888 = vrot.lane.b32.xlu0 %v847, 87
  %v889 = vpop.permute.xlu0 %888
  %vm890 = vcmask 711680
  %v891 = vsel %vm890, %v849, %v851
  %v892 = vsel %vm890, %v851, %v853
  %v893 = vsel %vm890, %v853, %v855
  %v894 = vsel %vm890, %v855, %v857
  %v895 = vsel %vm890, %v857, %v859
  %v896 = vsel %vm890, %v859, %v861
  %v897 = vsel %vm890, %v861, %v863
  %v898 = vsel %vm890, %v863, %v865
  %v899 = vsel %vm890, %v865, %v867
  %v900 = vsel %vm890, %v867, %v869
  %v901 = vsel %vm890, %v869, %v871
  %v902 = vsel %vm890, %v871, %v873
  %v903 = vsel %vm890, %v873, %v875
  %v904 = vsel %vm890, %v875, %v877
  %v905 = vsel %vm890, %v877, %v879
  %v906 = vsel %vm890, %v879, %v881
  %v907 = vsel %vm890, %v881, %v883
  %v908 = vsel %vm890, %v883, %v885
  %v909 = vsel %vm890, %v885, %v887
  %v910 = vsel %vm890, %v887, %v889
  %931 = vst [vmem:[#allocation1] ss:$2 sm:$0xff] %v26
  %s932 = scalar_lea.vmem [#allocation1], 16
  %933 = vst [vmem:[%s932] ss:$2 sm:$0xff] %v27
  %s934 = scalar_lea.vmem [#allocation1], 32
  %935 = vst [vmem:[%s934] ss:$2 sm:$0xff] %v28
  %s936 = scalar_lea.vmem [#allocation1], 48
  %937 = vst [vmem:[%s936] ss:$2 sm:$0xff] %v29
  %v938 = vld.sshfl [vmem:[#allocation1] sm:$0xff pattern:$0x75316420]
  %v939 = vld.sshfl [vmem:[#allocation1 + $0x8] sm:$0xff pattern:$0x75316420]
  %v940 = vld.sshfl [vmem:[#allocation1 + $0x10] sm:$0xff pattern:$0x75316420]
  %v941 = vld.sshfl [vmem:[#allocation1 + $0x18] sm:$0xff pattern:$0x75316420]
  %v942 = vld.sshfl [vmem:[#allocation1 + $0x20] sm:$0xff pattern:$0x75316420]
  %v943 = vld.sshfl [vmem:[#allocation1 + $0x28] sm:$0xff pattern:$0x75316420]
  %v944 = vld.sshfl [vmem:[#allocation1 + $0x30] sm:$0xff pattern:$0x75316420]
  %v945 = vld.sshfl [vmem:[#allocation1 + $0x38] sm:$0xff pattern:$0x75316420]
  %946 = vst [vmem:[#allocation1] ss:$2 sm:$0xff] %v30
  %947 = vst [vmem:[%s932] ss:$2 sm:$0xff] %v31
  %948 = vst [vmem:[%s934] ss:$2 sm:$0xff] %v32
  %949 = vst [vmem:[%s936] ss:$2 sm:$0xff] %v33
  %v950 = vld.sshfl [vmem:[#allocation1] sm:$0xff pattern:$0x75316420]
  %v951 = vld.sshfl [vmem:[#allocation1 + $0x8] sm:$0xff pattern:$0x75316420]
  %v952 = vld.sshfl [vmem:[#allocation1 + $0x10] sm:$0xff pattern:$0x75316420]
  %v953 = vld.sshfl [vmem:[#allocation1 + $0x18] sm:$0xff pattern:$0x75316420]
  %v954 = vld.sshfl [vmem:[#allocation1 + $0x20] sm:$0xff pattern:$0x75316420]
  %v955 = vld.sshfl [vmem:[#allocation1 + $0x28] sm:$0xff pattern:$0x75316420]
  %v956 = vld.sshfl [vmem:[#allocation1 + $0x30] sm:$0xff pattern:$0x75316420]
  %v957 = vld.sshfl [vmem:[#allocation1 + $0x38] sm:$0xff pattern:$0x75316420]
  %958 = vst [vmem:[#allocation1] ss:$2 sm:$0xff] %v34
  %959 = vst [vmem:[%s932] ss:$2 sm:$0xff] %v35
  %960 = vst [vmem:[%s934] ss:$2 sm:$0xff] %v36
  %v961 = vld.sshfl [vmem:[#allocation1] sm:$0xff pattern:$0x75316420]
  %v962 = vld.sshfl [vmem:[#allocation1 + $0x8] sm:$0xff pattern:$0x75316420]
  %v963 = vld.sshfl [vmem:[#allocation1 + $0x10] sm:$0xff pattern:$0x75316420]
  %v964 = vld.sshfl [vmem:[#allocation1 + $0x18] sm:$0xff pattern:$0x75316420]
  %v965 = vld.sshfl [vmem:[#allocation1 + $0x20] sm:$0xff pattern:$0x75316420]
  %966 = vrot.lane.b32.xlu0 %v938, 86
  %v967 = vpop.permute.xlu0 %966
  %968 = vrot.lane.b32.xlu0 %v939, 86
  %v969 = vpop.permute.xlu0 %968
  %970 = vrot.lane.b32.xlu0 %v940, 86
  %v971 = vpop.permute.xlu0 %970
  %972 = vrot.lane.b32.xlu0 %v941, 86
  %v973 = vpop.permute.xlu0 %972
  %974 = vrot.lane.b32.xlu0 %v942, 86
  %v975 = vpop.permute.xlu0 %974
  %976 = vrot.lane.b32.xlu0 %v943, 86
  %v977 = vpop.permute.xlu0 %976
  %978 = vrot.lane.b32.xlu0 %v944, 86
  %v979 = vpop.permute.xlu0 %978
  %980 = vrot.lane.b32.xlu0 %v945, 86
  %v981 = vpop.permute.xlu0 %980
  %982 = vrot.lane.b32.xlu0 %v950, 86
  %v983 = vpop.permute.xlu0 %982
  %984 = vrot.lane.b32.xlu0 %v951, 86
  %v985 = vpop.permute.xlu0 %984
  %986 = vrot.lane.b32.xlu0 %v952, 86
  %v987 = vpop.permute.xlu0 %986
  %988 = vrot.lane.b32.xlu0 %v953, 86
  %v989 = vpop.permute.xlu0 %988
  %990 = vrot.lane.b32.xlu0 %v954, 86
  %v991 = vpop.permute.xlu0 %990
  %992 = vrot.lane.b32.xlu0 %v955, 86
  %v993 = vpop.permute.xlu0 %992
  %994 = vrot.lane.b32.xlu0 %v956, 86
  %v995 = vpop.permute.xlu0 %994
  %996 = vrot.lane.b32.xlu0 %v957, 86
  %v997 = vpop.permute.xlu0 %996
  %998 = vrot.lane.b32.xlu0 %v961, 86
  %v999 = vpop.permute.xlu0 %998
  %1000 = vrot.lane.b32.xlu0 %v962, 86
  %v1001 = vpop.permute.xlu0 %1000
  %1002 = vrot.lane.b32.xlu0 %v963, 86
  %v1003 = vpop.permute.xlu0 %1002
  %1004 = vrot.lane.b32.xlu0 %v964, 86
  %v1005 = vpop.permute.xlu0 %1004
  %1006 = vrot.lane.b32.xlu0 %v965, 86
  %v1007 = vpop.permute.xlu0 %1006
  %vm1008 = vcmask 703488
  %v1009 = vsel %vm1008, %v967, %v969
  %v1010 = vsel %vm1008, %v969, %v971
  %v1011 = vsel %vm1008, %v971, %v973
  %v1012 = vsel %vm1008, %v973, %v975
  %v1013 = vsel %vm1008, %v975, %v977
  %v1014 = vsel %vm1008, %v977, %v979
  %v1015 = vsel %vm1008, %v979, %v981
  %v1016 = vsel %vm1008, %v981, %v983
  %v1017 = vsel %vm1008, %v983, %v985
  %v1018 = vsel %vm1008, %v985, %v987
  %v1019 = vsel %vm1008, %v987, %v989
  %v1020 = vsel %vm1008, %v989, %v991
  %v1021 = vsel %vm1008, %v991, %v993
  %v1022 = vsel %vm1008, %v993, %v995
  %v1023 = vsel %vm1008, %v995, %v997
  %v1024 = vsel %vm1008, %v997, %v999
  %v1025 = vsel %vm1008, %v999, %v1001
  %v1026 = vsel %vm1008, %v1001, %v1003
  %v1027 = vsel %vm1008, %v1003, %v1005
  %v1028 = vsel %vm1008, %v1005, %v1007
  %vm1029 = vcmask 1043456
  %v1030 = vsel %vm1029, %v54, %v180
  %v1031 = vsel %vm1029, %v55, %v181
  %v1032 = vsel %vm1029, %v56, %v182
  %v1033 = vsel %vm1029, %v57, %v183
  %v1034 = vsel %vm1029, %v58, %v184
  %v1035 = vsel %vm1029, %v59, %v185
  %v1036 = vsel %vm1029, %v60, %v186
  %v1037 = vsel %vm1029, %v61, %v187
  %v1038 = vsel %vm1029, %v66, %v188
  %v1039 = vsel %vm1029, %v67, %v189
  %v1040 = vsel %vm1029, %v68, %v190
  %v1041 = vsel %vm1029, %v69, %v191
  %v1042 = vsel %vm1029, %v70, %v192
  %v1043 = vsel %vm1029, %v71, %v193
  %v1044 = vsel %vm1029, %v72, %v194
  %v1045 = vsel %vm1029, %v73, %v195
  %v1046 = vsel %vm1029, %v76, %v196
  %v1047 = vsel %vm1029, %v77, %v197
  %v1048 = vsel %vm1029, %v78, %v198
  %v1049 = vsel %vm1029, %v79, %v199
  %v1050 = vsel %vm1029, %v298, %v417
  %v1051 = vsel %vm1029, %v299, %v418
  %v1052 = vsel %vm1029, %v300, %v419
  %v1053 = vsel %vm1029, %v301, %v420
  %v1054 = vsel %vm1029, %v302, %v421
  %v1055 = vsel %vm1029, %v303, %v422
  %v1056 = vsel %vm1029, %v304, %v423
  %v1057 = vsel %vm1029, %v305, %v424
  %v1058 = vsel %vm1029, %v306, %v425
  %v1059 = vsel %vm1029, %v307, %v426
  %v1060 = vsel %vm1029, %v308, %v427
  %v1061 = vsel %vm1029, %v309, %v428
  %v1062 = vsel %vm1029, %v310, %v429
  %v1063 = vsel %vm1029, %v311, %v430
  %v1064 = vsel %vm1029, %v312, %v431
  %v1065 = vsel %vm1029, %v313, %v432
  %v1066 = vsel %vm1029, %v314, %v433
  %v1067 = vsel %vm1029, %v315, %v434
  %v1068 = vsel %vm1029, %v316, %v435
  %v1069 = vsel %vm1029, %v317, %v436
  %v1070 = vsel %vm1029, %v535, %v654
  %v1071 = vsel %vm1029, %v536, %v655
  %v1072 = vsel %vm1029, %v537, %v656
  %v1073 = vsel %vm1029, %v538, %v657
  %v1074 = vsel %vm1029, %v539, %v658
  %v1075 = vsel %vm1029, %v540, %v659
  %v1076 = vsel %vm1029, %v541, %v660
  %v1077 = vsel %vm1029, %v542, %v661
  %v1078 = vsel %vm1029, %v543, %v662
  %v1079 = vsel %vm1029, %v544, %v663
  %v1080 = vsel %vm1029, %v545, %v664
  %v1081 = vsel %vm1029, %v546, %v665
  %v1082 = vsel %vm1029, %v547, %v666
  %v1083 = vsel %vm1029, %v548, %v667
  %v1084 = vsel %vm1029, %v549, %v668
  %v1085 = vsel %vm1029, %v550, %v669
  %v1086 = vsel %vm1029, %v551, %v670
  %v1087 = vsel %vm1029, %v552, %v671
  %v1088 = vsel %vm1029, %v553, %v672
  %v1089 = vsel %vm1029, %v554, %v673
  %v1090 = vsel %vm1029, %v772, %v891
  %v1091 = vsel %vm1029, %v773, %v892
  %v1092 = vsel %vm1029, %v774, %v893
  %v1093 = vsel %vm1029, %v775, %v894
  %v1094 = vsel %vm1029, %v776, %v895
  %v1095 = vsel %vm1029, %v777, %v896
  %v1096 = vsel %vm1029, %v778, %v897
  %v1097 = vsel %vm1029, %v779, %v898
  %v1098 = vsel %vm1029, %v780, %v899
  %v1099 = vsel %vm1029, %v781, %v900
  %v1100 = vsel %vm1029, %v782, %v901
  %v1101 = vsel %vm1029, %v783, %v902
  %v1102 = vsel %vm1029, %v784, %v903
  %v1103 = vsel %vm1029, %v785, %v904
  %v1104 = vsel %vm1029, %v786, %v905
  %v1105 = vsel %vm1029, %v787, %v906
  %v1106 = vsel %vm1029, %v788, %v907
  %v1107 = vsel %vm1029, %v789, %v908
  %v1108 = vsel %vm1029, %v790, %v909
  %v1109 = vsel %vm1029, %v791, %v910
  %v1110 = vld [vmem:[%s1] sm:$0xff]
  %v1111 = vld [vmem:[%s2] sm:$0xff]
  %1113 = vset.pattern.permute.xlu0 0
  %1114 = vperm.xlu0 %1113, %v1111
  %v1115 = vpop.permute.xlu0 %1114
  %vm1117 = vcmask 293888
  %v1119 = vsel %vm1117, %v1110, 0
  %v1121 = vsel %vm1029, %v1009, 0
  %v1123 = vsel %vm1029, %v1010, 0
  %v1125 = vsel %vm1029, %v1011, 0
  %v1127 = vsel %vm1029, %v1012, 0
  %v1129 = vsel %vm1029, %v1013, 0
  %v1131 = vsel %vm1029, %v1014, 0
  %v1133 = vsel %vm1029, %v1015, 0
  %v1135 = vsel %vm1029, %v1016, 0
  %v1137 = vsel %vm1029, %v1017, 0
  %v1139 = vsel %vm1029, %v1018, 0
  %v1141 = vsel %vm1029, %v1019, 0
  %v1143 = vsel %vm1029, %v1020, 0
  %v1145 = vsel %vm1029, %v1021, 0
  %v1147 = vsel %vm1029, %v1022, 0
  %v1149 = vsel %vm1029, %v1023, 0
  %v1151 = vsel %vm1029, %v1024, 0
  %v1153 = vsel %vm1029, %v1025, 0
  %v1155 = vsel %vm1029, %v1026, 0
  %v1157 = vsel %vm1029, %v1027, 0
  %v1159 = vsel %vm1029, %v1028, 0
  %1161 = vmatpush.msra.mxu0 0.0
  %1162 = vmatpush.msra.mxu0 0.0
  %1163 = vmatpush.msra.mxu0 0.0
  %1164 = vmatpush.msra.mxu0 0.0
  %1165 = vmatpush.msra.mxu0 0.0
  %1166 = vmatpush.msra.mxu0 0.0
  %1167 = vmatpush.msra.mxu0 0.0
  %1168 = vmatpush.msra.mxu0 0.0
  %1169 = vmatpush.msra.mxu0 0.0
  %1170 = vmatpush.msra.mxu0 0.0
  %1171 = vmatpush.msra.mxu0 0.0
  %1172 = vmatpush.msra.mxu0 %v1121
  %1173 = vmatpush.msra.mxu0 %v1090
  %1174 = vmatpush.msra.mxu0 %v1070
  %1175 = vmatpush.msra.mxu0 %v1050
  %1176 = vmatpush.msra.mxu0 %v1030
  %1177 = vmatmul.f32.gmra.mxu0 %v1119
  %v1178 = vpop.f32.mrf.mxu0
  %v1179 = vadd.f32 %v1115, %v1178
  %1180 = vdwg.mxu0
  %1181 = vmatpush.msra.mxu0 0.0
  %1182 = vmatpush.msra.mxu0 0.0
  %1183 = vmatpush.msra.mxu0 0.0
  %1184 = vmatpush.msra.mxu0 0.0
  %1185 = vmatpush.msra.mxu0 0.0
  %1186 = vmatpush.msra.mxu0 0.0
  %1187 = vmatpush.msra.mxu0 0.0
  %1188 = vmatpush.msra.mxu0 0.0
  %1189 = vmatpush.msra.mxu0 0.0
  %1190 = vmatpush.msra.mxu0 0.0
  %1191 = vmatpush.msra.mxu0 0.0
  %1192 = vmatpush.msra.mxu0 %v1123
  %1193 = vmatpush.msra.mxu0 %v1091
  %1194 = vmatpush.msra.mxu0 %v1071
  %1195 = vmatpush.msra.mxu0 %v1051
  %1196 = vmatpush.msra.mxu0 %v1031
  %1197 = vmatmul.f32.gmra.mxu0 %v1119
  %v1198 = vpop.f32.mrf.mxu0
  %v1199 = vadd.f32 %v1115, %v1198
  %1200 = vdwg.mxu0
  %1201 = vmatpush.msra.mxu0 0.0
  %1202 = vmatpush.msra.mxu0 0.0
  %1203 = vmatpush.msra.mxu0 0.0
  %1204 = vmatpush.msra.mxu0 0.0
  %1205 = vmatpush.msra.mxu0 0.0
  %1206 = vmatpush.msra.mxu0 0.0
  %1207 = vmatpush.msra.mxu0 0.0
  %1208 = vmatpush.msra.mxu0 0.0
  %1209 = vmatpush.msra.mxu0 0.0
  %1210 = vmatpush.msra.mxu0 0.0
  %1211 = vmatpush.msra.mxu0 0.0
  %1212 = vmatpush.msra.mxu0 %v1125
  %1213 = vmatpush.msra.mxu0 %v1092
  %1214 = vmatpush.msra.mxu0 %v1072
  %1215 = vmatpush.msra.mxu0 %v1052
  %1216 = vmatpush.msra.mxu0 %v1032
  %1217 = vmatmul.f32.gmra.mxu0 %v1119
  %v1218 = vpop.f32.mrf.mxu0
  %v1219 = vadd.f32 %v1115, %v1218
  %1220 = vdwg.mxu0
  %1221 = vmatpush.msra.mxu0 0.0
  %1222 = vmatpush.msra.mxu0 0.0
  %1223 = vmatpush.msra.mxu0 0.0
  %1224 = vmatpush.msra.mxu0 0.0
  %1225 = vmatpush.msra.mxu0 0.0
  %1226 = vmatpush.msra.mxu0 0.0
  %1227 = vmatpush.msra.mxu0 0.0
  %1228 = vmatpush.msra.mxu0 0.0
  %1229 = vmatpush.msra.mxu0 0.0
  %1230 = vmatpush.msra.mxu0 0.0
  %1231 = vmatpush.msra.mxu0 0.0
  %1232 = vmatpush.msra.mxu0 %v1127
  %1233 = vmatpush.msra.mxu0 %v1093
  %1234 = vmatpush.msra.mxu0 %v1073
  %1235 = vmatpush.msra.mxu0 %v1053
  %1236 = vmatpush.msra.mxu0 %v1033
  %1237 = vmatmul.f32.gmra.mxu0 %v1119
  %v1238 = vpop.f32.mrf.mxu0
  %v1239 = vadd.f32 %v1115, %v1238
  %1240 = vdwg.mxu0
  %1241 = vmatpush.msra.mxu0 0.0
  %1242 = vmatpush.msra.mxu0 0.0
  %1243 = vmatpush.msra.mxu0 0.0
  %1244 = vmatpush.msra.mxu0 0.0
  %1245 = vmatpush.msra.mxu0 0.0
  %1246 = vmatpush.msra.mxu0 0.0
  %1247 = vmatpush.msra.mxu0 0.0
  %1248 = vmatpush.msra.mxu0 0.0
  %1249 = vmatpush.msra.mxu0 0.0
  %1250 = vmatpush.msra.mxu0 0.0
  %1251 = vmatpush.msra.mxu0 0.0
  %1252 = vmatpush.msra.mxu0 %v1129
  %1253 = vmatpush.msra.mxu0 %v1094
  %1254 = vmatpush.msra.mxu0 %v1074
  %1255 = vmatpush.msra.mxu0 %v1054
  %1256 = vmatpush.msra.mxu0 %v1034
  %1257 = vmatmul.f32.gmra.mxu0 %v1119
  %v1258 = vpop.f32.mrf.mxu0
  %v1259 = vadd.f32 %v1115, %v1258
  %1260 = vdwg.mxu0
  %1261 = vmatpush.msra.mxu0 0.0
  %1262 = vmatpush.msra.mxu0 0.0
  %1263 = vmatpush.msra.mxu0 0.0
  %1264 = vmatpush.msra.mxu0 0.0
  %1265 = vmatpush.msra.mxu0 0.0
  %1266 = vmatpush.msra.mxu0 0.0
  %1267 = vmatpush.msra.mxu0 0.0
  %1268 = vmatpush.msra.mxu0 0.0
  %1269 = vmatpush.msra.mxu0 0.0
  %1270 = vmatpush.msra.mxu0 0.0
  %1271 = vmatpush.msra.mxu0 0.0
  %1272 = vmatpush.msra.mxu0 %v1131
  %1273 = vmatpush.msra.mxu0 %v1095
  %1274 = vmatpush.msra.mxu0 %v1075
  %1275 = vmatpush.msra.mxu0 %v1055
  %1276 = vmatpush.msra.mxu0 %v1035
  %1277 = vmatmul.f32.gmra.mxu0 %v1119
  %v1278 = vpop.f32.mrf.mxu0
  %v1279 = vadd.f32 %v1115, %v1278
  %1280 = vdwg.mxu0
  %1281 = vmatpush.msra.mxu0 0.0
  %1282 = vmatpush.msra.mxu0 0.0
  %1283 = vmatpush.msra.mxu0 0.0
  %1284 = vmatpush.msra.mxu0 0.0
  %1285 = vmatpush.msra.mxu0 0.0
  %1286 = vmatpush.msra.mxu0 0.0
  %1287 = vmatpush.msra.mxu0 0.0
  %1288 = vmatpush.msra.mxu0 0.0
  %1289 = vmatpush.msra.mxu0 0.0
  %1290 = vmatpush.msra.mxu0 0.0
  %1291 = vmatpush.msra.mxu0 0.0
  %1292 = vmatpush.msra.mxu0 %v1133
  %1293 = vmatpush.msra.mxu0 %v1096
  %1294 = vmatpush.msra.mxu0 %v1076
  %1295 = vmatpush.msra.mxu0 %v1056
  %1296 = vmatpush.msra.mxu0 %v1036
  %1297 = vmatmul.f32.gmra.mxu0 %v1119
  %v1298 = vpop.f32.mrf.mxu0
  %v1299 = vadd.f32 %v1115, %v1298
  %1300 = vdwg.mxu0
  %1301 = vmatpush.msra.mxu0 0.0
  %1302 = vmatpush.msra.mxu0 0.0
  %1303 = vmatpush.msra.mxu0 0.0
  %1304 = vmatpush.msra.mxu0 0.0
  %1305 = vmatpush.msra.mxu0 0.0
  %1306 = vmatpush.msra.mxu0 0.0
  %1307 = vmatpush.msra.mxu0 0.0
  %1308 = vmatpush.msra.mxu0 0.0
  %1309 = vmatpush.msra.mxu0 0.0
  %1310 = vmatpush.msra.mxu0 0.0
  %1311 = vmatpush.msra.mxu0 0.0
  %1312 = vmatpush.msra.mxu0 %v1135
  %1313 = vmatpush.msra.mxu0 %v1097
  %1314 = vmatpush.msra.mxu0 %v1077
  %1315 = vmatpush.msra.mxu0 %v1057
  %1316 = vmatpush.msra.mxu0 %v1037
  %1317 = vmatmul.f32.gmra.mxu0 %v1119
  %v1318 = vpop.f32.mrf.mxu0
  %v1319 = vadd.f32 %v1115, %v1318
  %1320 = vdwg.mxu0
  %1321 = vmatpush.msra.mxu0 0.0
  %1322 = vmatpush.msra.mxu0 0.0
  %1323 = vmatpush.msra.mxu0 0.0
  %1324 = vmatpush.msra.mxu0 0.0
  %1325 = vmatpush.msra.mxu0 0.0
  %1326 = vmatpush.msra.mxu0 0.0
  %1327 = vmatpush.msra.mxu0 0.0
  %1328 = vmatpush.msra.mxu0 0.0
  %1329 = vmatpush.msra.mxu0 0.0
  %1330 = vmatpush.msra.mxu0 0.0
  %1331 = vmatpush.msra.mxu0 0.0
  %1332 = vmatpush.msra.mxu0 %v1137
  %1333 = vmatpush.msra.mxu0 %v1098
  %1334 = vmatpush.msra.mxu0 %v1078
  %1335 = vmatpush.msra.mxu0 %v1058
  %1336 = vmatpush.msra.mxu0 %v1038
  %1337 = vmatmul.f32.gmra.mxu0 %v1119
  %v1338 = vpop.f32.mrf.mxu0
  %v1339 = vadd.f32 %v1115, %v1338
  %1340 = vdwg.mxu0
  %1341 = vmatpush.msra.mxu0 0.0
  %1342 = vmatpush.msra.mxu0 0.0
  %1343 = vmatpush.msra.mxu0 0.0
  %1344 = vmatpush.msra.mxu0 0.0
  %1345 = vmatpush.msra.mxu0 0.0
  %1346 = vmatpush.msra.mxu0 0.0
  %1347 = vmatpush.msra.mxu0 0.0
  %1348 = vmatpush.msra.mxu0 0.0
  %1349 = vmatpush.msra.mxu0 0.0
  %1350 = vmatpush.msra.mxu0 0.0
  %1351 = vmatpush.msra.mxu0 0.0
  %1352 = vmatpush.msra.mxu0 %v1139
  %1353 = vmatpush.msra.mxu0 %v1099
  %1354 = vmatpush.msra.mxu0 %v1079
  %1355 = vmatpush.msra.mxu0 %v1059
  %1356 = vmatpush.msra.mxu0 %v1039
  %1357 = vmatmul.f32.gmra.mxu0 %v1119
  %v1358 = vpop.f32.mrf.mxu0
  %v1359 = vadd.f32 %v1115, %v1358
  %1360 = vdwg.mxu0
  %1361 = vmatpush.msra.mxu0 0.0
  %1362 = vmatpush.msra.mxu0 0.0
  %1363 = vmatpush.msra.mxu0 0.0
  %1364 = vmatpush.msra.mxu0 0.0
  %1365 = vmatpush.msra.mxu0 0.0
  %1366 = vmatpush.msra.mxu0 0.0
  %1367 = vmatpush.msra.mxu0 0.0
  %1368 = vmatpush.msra.mxu0 0.0
  %1369 = vmatpush.msra.mxu0 0.0
  %1370 = vmatpush.msra.mxu0 0.0
  %1371 = vmatpush.msra.mxu0 0.0
  %1372 = vmatpush.msra.mxu0 %v1141
  %1373 = vmatpush.msra.mxu0 %v1100
  %1374 = vmatpush.msra.mxu0 %v1080
  %1375 = vmatpush.msra.mxu0 %v1060
  %1376 = vmatpush.msra.mxu0 %v1040
  %1377 = vmatmul.f32.gmra.mxu0 %v1119
  %v1378 = vpop.f32.mrf.mxu0
  %v1379 = vadd.f32 %v1115, %v1378
  %1380 = vdwg.mxu0
  %1381 = vmatpush.msra.mxu0 0.0
  %1382 = vmatpush.msra.mxu0 0.0
  %1383 = vmatpush.msra.mxu0 0.0
  %1384 = vmatpush.msra.mxu0 0.0
  %1385 = vmatpush.msra.mxu0 0.0
  %1386 = vmatpush.msra.mxu0 0.0
  %1387 = vmatpush.msra.mxu0 0.0
  %1388 = vmatpush.msra.mxu0 0.0
  %1389 = vmatpush.msra.mxu0 0.0
  %1390 = vmatpush.msra.mxu0 0.0
  %1391 = vmatpush.msra.mxu0 0.0
  %1392 = vmatpush.msra.mxu0 %v1143
  %1393 = vmatpush.msra.mxu0 %v1101
  %1394 = vmatpush.msra.mxu0 %v1081
  %1395 = vmatpush.msra.mxu0 %v1061
  %1396 = vmatpush.msra.mxu0 %v1041
  %1397 = vmatmul.f32.gmra.mxu0 %v1119
  %v1398 = vpop.f32.mrf.mxu0
  %v1399 = vadd.f32 %v1115, %v1398
  %1400 = vdwg.mxu0
  %1401 = vmatpush.msra.mxu0 0.0
  %1402 = vmatpush.msra.mxu0 0.0
  %1403 = vmatpush.msra.mxu0 0.0
  %1404 = vmatpush.msra.mxu0 0.0
  %1405 = vmatpush.msra.mxu0 0.0
  %1406 = vmatpush.msra.mxu0 0.0
  %1407 = vmatpush.msra.mxu0 0.0
  %1408 = vmatpush.msra.mxu0 0.0
  %1409 = vmatpush.msra.mxu0 0.0
  %1410 = vmatpush.msra.mxu0 0.0
  %1411 = vmatpush.msra.mxu0 0.0
  %1412 = vmatpush.msra.mxu0 %v1145
  %1413 = vmatpush.msra.mxu0 %v1102
  %1414 = vmatpush.msra.mxu0 %v1082
  %1415 = vmatpush.msra.mxu0 %v1062
  %1416 = vmatpush.msra.mxu0 %v1042
  %1417 = vmatmul.f32.gmra.mxu0 %v1119
  %v1418 = vpop.f32.mrf.mxu0
  %v1419 = vadd.f32 %v1115, %v1418
  %1420 = vdwg.mxu0
  %1421 = vmatpush.msra.mxu0 0.0
  %1422 = vmatpush.msra.mxu0 0.0
  %1423 = vmatpush.msra.mxu0 0.0
  %1424 = vmatpush.msra.mxu0 0.0
  %1425 = vmatpush.msra.mxu0 0.0
  %1426 = vmatpush.msra.mxu0 0.0
  %1427 = vmatpush.msra.mxu0 0.0
  %1428 = vmatpush.msra.mxu0 0.0
  %1429 = vmatpush.msra.mxu0 0.0
  %1430 = vmatpush.msra.mxu0 0.0
  %1431 = vmatpush.msra.mxu0 0.0
  %1432 = vmatpush.msra.mxu0 %v1147
  %1433 = vmatpush.msra.mxu0 %v1103
  %1434 = vmatpush.msra.mxu0 %v1083
  %1435 = vmatpush.msra.mxu0 %v1063
  %1436 = vmatpush.msra.mxu0 %v1043
  %1437 = vmatmul.f32.gmra.mxu0 %v1119
  %v1438 = vpop.f32.mrf.mxu0
  %v1439 = vadd.f32 %v1115, %v1438
  %1440 = vdwg.mxu0
  %1441 = vmatpush.msra.mxu0 0.0
  %1442 = vmatpush.msra.mxu0 0.0
  %1443 = vmatpush.msra.mxu0 0.0
  %1444 = vmatpush.msra.mxu0 0.0
  %1445 = vmatpush.msra.mxu0 0.0
  %1446 = vmatpush.msra.mxu0 0.0
  %1447 = vmatpush.msra.mxu0 0.0
  %1448 = vmatpush.msra.mxu0 0.0
  %1449 = vmatpush.msra.mxu0 0.0
  %1450 = vmatpush.msra.mxu0 0.0
  %1451 = vmatpush.msra.mxu0 0.0
  %1452 = vmatpush.msra.mxu0 %v1149
  %1453 = vmatpush.msra.mxu0 %v1104
  %1454 = vmatpush.msra.mxu0 %v1084
  %1455 = vmatpush.msra.mxu0 %v1064
  %1456 = vmatpush.msra.mxu0 %v1044
  %1457 = vmatmul.f32.gmra.mxu0 %v1119
  %v1458 = vpop.f32.mrf.mxu0
  %v1459 = vadd.f32 %v1115, %v1458
  %1460 = vdwg.mxu0
  %1461 = vmatpush.msra.mxu0 0.0
  %1462 = vmatpush.msra.mxu0 0.0
  %1463 = vmatpush.msra.mxu0 0.0
  %1464 = vmatpush.msra.mxu0 0.0
  %1465 = vmatpush.msra.mxu0 0.0
  %1466 = vmatpush.msra.mxu0 0.0
  %1467 = vmatpush.msra.mxu0 0.0
  %1468 = vmatpush.msra.mxu0 0.0
  %1469 = vmatpush.msra.mxu0 0.0
  %1470 = vmatpush.msra.mxu0 0.0
  %1471 = vmatpush.msra.mxu0 0.0
  %1472 = vmatpush.msra.mxu0 %v1151
  %1473 = vmatpush.msra.mxu0 %v1105
  %1474 = vmatpush.msra.mxu0 %v1085
  %1475 = vmatpush.msra.mxu0 %v1065
  %1476 = vmatpush.msra.mxu0 %v1045
  %1477 = vmatmul.f32.gmra.mxu0 %v1119
  %v1478 = vpop.f32.mrf.mxu0
  %v1479 = vadd.f32 %v1115, %v1478
  %1480 = vdwg.mxu0
  %1481 = vmatpush.msra.mxu0 0.0
  %1482 = vmatpush.msra.mxu0 0.0
  %1483 = vmatpush.msra.mxu0 0.0
  %1484 = vmatpush.msra.mxu0 0.0
  %1485 = vmatpush.msra.mxu0 0.0
  %1486 = vmatpush.msra.mxu0 0.0
  %1487 = vmatpush.msra.mxu0 0.0
  %1488 = vmatpush.msra.mxu0 0.0
  %1489 = vmatpush.msra.mxu0 0.0
  %1490 = vmatpush.msra.mxu0 0.0
  %1491 = vmatpush.msra.mxu0 0.0
  %1492 = vmatpush.msra.mxu0 %v1153
  %1493 = vmatpush.msra.mxu0 %v1106
  %1494 = vmatpush.msra.mxu0 %v1086
  %1495 = vmatpush.msra.mxu0 %v1066
  %1496 = vmatpush.msra.mxu0 %v1046
  %1497 = vmatmul.f32.gmra.mxu0 %v1119
  %v1498 = vpop.f32.mrf.mxu0
  %v1499 = vadd.f32 %v1115, %v1498
  %1500 = vdwg.mxu0
  %1501 = vmatpush.msra.mxu0 0.0
  %1502 = vmatpush.msra.mxu0 0.0
  %1503 = vmatpush.msra.mxu0 0.0
  %1504 = vmatpush.msra.mxu0 0.0
  %1505 = vmatpush.msra.mxu0 0.0
  %1506 = vmatpush.msra.mxu0 0.0
  %1507 = vmatpush.msra.mxu0 0.0
  %1508 = vmatpush.msra.mxu0 0.0
  %1509 = vmatpush.msra.mxu0 0.0
  %1510 = vmatpush.msra.mxu0 0.0
  %1511 = vmatpush.msra.mxu0 0.0
  %1512 = vmatpush.msra.mxu0 %v1155
  %1513 = vmatpush.msra.mxu0 %v1107
  %1514 = vmatpush.msra.mxu0 %v1087
  %1515 = vmatpush.msra.mxu0 %v1067
  %1516 = vmatpush.msra.mxu0 %v1047
  %1517 = vmatmul.f32.gmra.mxu0 %v1119
  %v1518 = vpop.f32.mrf.mxu0
  %v1519 = vadd.f32 %v1115, %v1518
  %1520 = vdwg.mxu0
  %1521 = vmatpush.msra.mxu0 0.0
  %1522 = vmatpush.msra.mxu0 0.0
  %1523 = vmatpush.msra.mxu0 0.0
  %1524 = vmatpush.msra.mxu0 0.0
  %1525 = vmatpush.msra.mxu0 0.0
  %1526 = vmatpush.msra.mxu0 0.0
  %1527 = vmatpush.msra.mxu0 0.0
  %1528 = vmatpush.msra.mxu0 0.0
  %1529 = vmatpush.msra.mxu0 0.0
  %1530 = vmatpush.msra.mxu0 0.0
  %1531 = vmatpush.msra.mxu0 0.0
  %1532 = vmatpush.msra.mxu0 %v1157
  %1533 = vmatpush.msra.mxu0 %v1108
  %1534 = vmatpush.msra.mxu0 %v1088
  %1535 = vmatpush.msra.mxu0 %v1068
  %1536 = vmatpush.msra.mxu0 %v1048
  %1537 = vmatmul.f32.gmra.mxu0 %v1119
  %v1538 = vpop.f32.mrf.mxu0
  %v1539 = vadd.f32 %v1115, %v1538
  %1540 = vdwg.mxu0
  %1541 = vmatpush.msra.mxu0 0.0
  %1542 = vmatpush.msra.mxu0 0.0
  %1543 = vmatpush.msra.mxu0 0.0
  %1544 = vmatpush.msra.mxu0 0.0
  %1545 = vmatpush.msra.mxu0 0.0
  %1546 = vmatpush.msra.mxu0 0.0
  %1547 = vmatpush.msra.mxu0 0.0
  %1548 = vmatpush.msra.mxu0 0.0
  %1549 = vmatpush.msra.mxu0 0.0
  %1550 = vmatpush.msra.mxu0 0.0
  %1551 = vmatpush.msra.mxu0 0.0
  %1552 = vmatpush.msra.mxu0 %v1159
  %1553 = vmatpush.msra.mxu0 %v1109
  %1554 = vmatpush.msra.mxu0 %v1089
  %1555 = vmatpush.msra.mxu0 %v1069
  %1556 = vmatpush.msra.mxu0 %v1049
  %1557 = vmatmul.f32.gmra.mxu0 %v1119
  %v1558 = vpop.f32.mrf.mxu0
  %v1559 = vadd.f32 %v1115, %v1558
  %1560 = vdwg.mxu0
  %v1561 = vmax.f32 %v1179, 0.0
  %v1562 = vmax.f32 %v1199, 0.0
  %v1563 = vmax.f32 %v1219, 0.0
  %v1564 = vmax.f32 %v1239, 0.0
  %v1565 = vmax.f32 %v1259, 0.0
  %v1566 = vmax.f32 %v1279, 0.0
  %v1567 = vmax.f32 %v1299, 0.0
  %v1568 = vmax.f32 %v1319, 0.0
  %v1569 = vmax.f32 %v1339, 0.0
  %v1570 = vmax.f32 %v1359, 0.0
  %v1571 = vmax.f32 %v1379, 0.0
  %v1572 = vmax.f32 %v1399, 0.0
  %v1573 = vmax.f32 %v1419, 0.0
  %v1574 = vmax.f32 %v1439, 0.0
  %v1575 = vmax.f32 %v1459, 0.0
  %v1576 = vmax.f32 %v1479, 0.0
  %v1577 = vmax.f32 %v1499, 0.0
  %v1578 = vmax.f32 %v1519, 0.0
  %v1579 = vmax.f32 %v1539, 0.0
  %v1580 = vmax.f32 %v1559, 0.0
  %v1586 = vrot.slane %v1561, 1
  %v1587 = vrot.slane %v1562, 1
  %v1588 = vrot.slane %v1563, 1
  %v1589 = vrot.slane %v1564, 1
  %v1590 = vrot.slane %v1565, 1
  %v1596 = vrot.slane %v1561, 2
  %v1597 = vrot.slane %v1562, 2
  %v1598 = vrot.slane %v1563, 2
  %v1599 = vrot.slane %v1564, 2
  %v1600 = vrot.slane %v1565, 2
  %v1606 = vrot.slane %v1561, 3
  %v1607 = vrot.slane %v1562, 3
  %v1608 = vrot.slane %v1563, 3
  %v1609 = vrot.slane %v1564, 3
  %v1610 = vrot.slane %v1565, 3
  %v1616 = vrot.slane %v1561, 4
  %v1617 = vrot.slane %v1562, 4
  %v1618 = vrot.slane %v1563, 4
  %v1619 = vrot.slane %v1564, 4
  %v1620 = vrot.slane %v1565, 4
  %v1626 = vrot.slane %v1561, 5
  %v1627 = vrot.slane %v1562, 5
  %v1628 = vrot.slane %v1563, 5
  %v1629 = vrot.slane %v1564, 5
  %v1630 = vrot.slane %v1565, 5
  %v1636 = vrot.slane %v1561, 6
  %v1637 = vrot.slane %v1562, 6
  %v1638 = vrot.slane %v1563, 6
  %v1639 = vrot.slane %v1564, 6
  %v1640 = vrot.slane %v1565, 6
  %v1646 = vrot.slane %v1561, 7
  %v1647 = vrot.slane %v1562, 7
  %v1648 = vrot.slane %v1563, 7
  %v1649 = vrot.slane %v1564, 7
  %v1650 = vrot.slane %v1565, 7
  %v1661 = vrot.slane %v1566, 1
  %v1662 = vrot.slane %v1567, 1
  %v1663 = vrot.slane %v1568, 1
  %v1664 = vrot.slane %v1569, 1
  %v1665 = vrot.slane %v1570, 1
  %v1666 = vrot.slane %v1566, 2
  %v1667 = vrot.slane %v1567, 2
  %v1668 = vrot.slane %v1568, 2
  %v1669 = vrot.slane %v1569, 2
  %v1670 = vrot.slane %v1570, 2
  %v1671 = vrot.slane %v1566, 3
  %v1672 = vrot.slane %v1567, 3
  %v1673 = vrot.slane %v1568, 3
  %v1674 = vrot.slane %v1569, 3
  %v1675 = vrot.slane %v1570, 3
  %v1676 = vrot.slane %v1566, 4
  %v1677 = vrot.slane %v1567, 4
  %v1678 = vrot.slane %v1568, 4
  %v1679 = vrot.slane %v1569, 4
  %v1680 = vrot.slane %v1570, 4
  %v1681 = vrot.slane %v1566, 5
  %v1682 = vrot.slane %v1567, 5
  %v1683 = vrot.slane %v1568, 5
  %v1684 = vrot.slane %v1569, 5
  %v1685 = vrot.slane %v1570, 5
  %v1686 = vrot.slane %v1566, 6
  %v1687 = vrot.slane %v1567, 6
  %v1688 = vrot.slane %v1568, 6
  %v1689 = vrot.slane %v1569, 6
  %v1690 = vrot.slane %v1570, 6
  %v1691 = vrot.slane %v1566, 7
  %v1692 = vrot.slane %v1567, 7
  %v1693 = vrot.slane %v1568, 7
  %v1694 = vrot.slane %v1569, 7
  %v1695 = vrot.slane %v1570, 7
  %v1701 = vrot.slane %v1571, 1
  %v1702 = vrot.slane %v1572, 1
  %v1703 = vrot.slane %v1573, 1
  %v1704 = vrot.slane %v1574, 1
  %v1705 = vrot.slane %v1575, 1
  %v1706 = vrot.slane %v1571, 2
  %v1707 = vrot.slane %v1572, 2
  %v1708 = vrot.slane %v1573, 2
  %v1709 = vrot.slane %v1574, 2
  %v1710 = vrot.slane %v1575, 2
  %v1711 = vrot.slane %v1571, 3
  %v1712 = vrot.slane %v1572, 3
  %v1713 = vrot.slane %v1573, 3
  %v1714 = vrot.slane %v1574, 3
  %v1715 = vrot.slane %v1575, 3
  %v1716 = vrot.slane %v1571, 4
  %v1717 = vrot.slane %v1572, 4
  %v1718 = vrot.slane %v1573, 4
  %v1719 = vrot.slane %v1574, 4
  %v1720 = vrot.slane %v1575, 4
  %v1721 = vrot.slane %v1571, 5
  %v1722 = vrot.slane %v1572, 5
  %v1723 = vrot.slane %v1573, 5
  %v1724 = vrot.slane %v1574, 5
  %v1725 = vrot.slane %v1575, 5
  %v1726 = vrot.slane %v1571, 6
  %v1727 = vrot.slane %v1572, 6
  %v1728 = vrot.slane %v1573, 6
  %v1729 = vrot.slane %v1574, 6
  %v1730 = vrot.slane %v1575, 6
  %v1731 = vrot.slane %v1571, 7
  %v1732 = vrot.slane %v1572, 7
  %v1733 = vrot.slane %v1573, 7
  %v1734 = vrot.slane %v1574, 7
  %v1735 = vrot.slane %v1575, 7
  %v1741 = vrot.slane %v1576, 1
  %v1742 = vrot.slane %v1577, 1
  %v1743 = vrot.slane %v1578, 1
  %v1744 = vrot.slane %v1579, 1
  %v1745 = vrot.slane %v1580, 1
  %v1746 = vrot.slane %v1576, 2
  %v1747 = vrot.slane %v1577, 2
  %v1748 = vrot.slane %v1578, 2
  %v1749 = vrot.slane %v1579, 2
  %v1750 = vrot.slane %v1580, 2
  %v1751 = vrot.slane %v1576, 3
  %v1752 = vrot.slane %v1577, 3
  %v1753 = vrot.slane %v1578, 3
  %v1754 = vrot.slane %v1579, 3
  %v1755 = vrot.slane %v1580, 3
  %v1756 = vrot.slane %v1576, 4
  %v1757 = vrot.slane %v1577, 4
  %v1758 = vrot.slane %v1578, 4
  %v1759 = vrot.slane %v1579, 4
  %v1760 = vrot.slane %v1580, 4
  %v1761 = vrot.slane %v1576, 5
  %v1762 = vrot.slane %v1577, 5
  %v1763 = vrot.slane %v1578, 5
  %v1764 = vrot.slane %v1579, 5
  %v1765 = vrot.slane %v1580, 5
  %v1766 = vrot.slane %v1576, 6
  %v1767 = vrot.slane %v1577, 6
  %v1768 = vrot.slane %v1578, 6
  %v1769 = vrot.slane %v1579, 6
  %v1770 = vrot.slane %v1580, 6
  %v1771 = vrot.slane %v1576, 7
  %v1772 = vrot.slane %v1577, 7
  %v1773 = vrot.slane %v1578, 7
  %v1774 = vrot.slane %v1579, 7
  %v1775 = vrot.slane %v1580, 7
  %v1776 = vrot.slane %v1661, 7
  %v1777 = vrot.slane %v1662, 7
  %v1778 = vrot.slane %v1663, 7
  %v1779 = vrot.slane %v1664, 7
  %v1780 = vrot.slane %v1665, 7
  %v1781 = vrot.slane %v1666, 7
  %v1782 = vrot.slane %v1667, 7
  %v1783 = vrot.slane %v1668, 7
  %v1784 = vrot.slane %v1669, 7
  %v1785 = vrot.slane %v1670, 7
  %v1786 = vrot.slane %v1671, 7
  %v1787 = vrot.slane %v1672, 7
  %v1788 = vrot.slane %v1673, 7
  %v1789 = vrot.slane %v1674, 7
  %v1790 = vrot.slane %v1675, 7
  %v1791 = vrot.slane %v1676, 7
  %v1792 = vrot.slane %v1677, 7
  %v1793 = vrot.slane %v1678, 7
  %v1794 = vrot.slane %v1679, 7
  %v1795 = vrot.slane %v1680, 7
  %v1796 = vrot.slane %v1681, 7
  %v1797 = vrot.slane %v1682, 7
  %v1798 = vrot.slane %v1683, 7
  %v1799 = vrot.slane %v1684, 7
  %v1800 = vrot.slane %v1685, 7
  %v1801 = vrot.slane %v1686, 7
  %v1802 = vrot.slane %v1687, 7
  %v1803 = vrot.slane %v1688, 7
  %v1804 = vrot.slane %v1689, 7
  %v1805 = vrot.slane %v1690, 7
  %v1806 = vrot.slane %v1691, 7
  %v1807 = vrot.slane %v1692, 7
  %v1808 = vrot.slane %v1693, 7
  %v1809 = vrot.slane %v1694, 7
  %v1810 = vrot.slane %v1695, 7
  %v1851 = vrot.slane %v1701, 6
  %v1852 = vrot.slane %v1702, 6
  %v1853 = vrot.slane %v1703, 6
  %v1854 = vrot.slane %v1704, 6
  %v1855 = vrot.slane %v1705, 6
  %v1856 = vrot.slane %v1706, 6
  %v1857 = vrot.slane %v1707, 6
  %v1858 = vrot.slane %v1708, 6
  %v1859 = vrot.slane %v1709, 6
  %v1860 = vrot.slane %v1710, 6
  %v1861 = vrot.slane %v1711, 6
  %v1862 = vrot.slane %v1712, 6
  %v1863 = vrot.slane %v1713, 6
  %v1864 = vrot.slane %v1714, 6
  %v1865 = vrot.slane %v1715, 6
  %v1866 = vrot.slane %v1716, 6
  %v1867 = vrot.slane %v1717, 6
  %v1868 = vrot.slane %v1718, 6
  %v1869 = vrot.slane %v1719, 6
  %v1870 = vrot.slane %v1720, 6
  %v1871 = vrot.slane %v1721, 6
  %v1872 = vrot.slane %v1722, 6
  %v1873 = vrot.slane %v1723, 6
  %v1874 = vrot.slane %v1724, 6
  %v1875 = vrot.slane %v1725, 6
  %v1876 = vrot.slane %v1726, 6
  %v1877 = vrot.slane %v1727, 6
  %v1878 = vrot.slane %v1728, 6
  %v1879 = vrot.slane %v1729, 6
  %v1880 = vrot.slane %v1730, 6
  %v1881 = vrot.slane %v1731, 6
  %v1882 = vrot.slane %v1732, 6
  %v1883 = vrot.slane %v1733, 6
  %v1884 = vrot.slane %v1734, 6
  %v1885 = vrot.slane %v1735, 6
  %v1926 = vrot.slane %v1741, 5
  %v1927 = vrot.slane %v1742, 5
  %v1928 = vrot.slane %v1743, 5
  %v1929 = vrot.slane %v1744, 5
  %v1930 = vrot.slane %v1745, 5
  %v1931 = vrot.slane %v1746, 5
  %v1932 = vrot.slane %v1747, 5
  %v1933 = vrot.slane %v1748, 5
  %v1934 = vrot.slane %v1749, 5
  %v1935 = vrot.slane %v1750, 5
  %v1936 = vrot.slane %v1751, 5
  %v1937 = vrot.slane %v1752, 5
  %v1938 = vrot.slane %v1753, 5
  %v1939 = vrot.slane %v1754, 5
  %v1940 = vrot.slane %v1755, 5
  %v1941 = vrot.slane %v1756, 5
  %v1942 = vrot.slane %v1757, 5
  %v1943 = vrot.slane %v1758, 5
  %v1944 = vrot.slane %v1759, 5
  %v1945 = vrot.slane %v1760, 5
  %v1946 = vrot.slane %v1761, 5
  %v1947 = vrot.slane %v1762, 5
  %v1948 = vrot.slane %v1763, 5
  %v1949 = vrot.slane %v1764, 5
  %v1950 = vrot.slane %v1765, 5
  %v1951 = vrot.slane %v1766, 5
  %v1952 = vrot.slane %v1767, 5
  %v1953 = vrot.slane %v1768, 5
  %v1954 = vrot.slane %v1769, 5
  %v1955 = vrot.slane %v1770, 5
  %v1956 = vrot.slane %v1771, 5
  %v1957 = vrot.slane %v1772, 5
  %v1958 = vrot.slane %v1773, 5
  %v1959 = vrot.slane %v1774, 5
  %v1960 = vrot.slane %v1775, 5
  %vm2001 = vcmask 1040384
  %v2002 = vsel %vm2001, %v1561, %v1691
  %v2003 = vsel %vm2001, %v1562, %v1692
  %v2004 = vsel %vm2001, %v1563, %v1693
  %v2005 = vsel %vm2001, %v1564, %v1694
  %v2006 = vsel %vm2001, %v1565, %v1695
  %v2007 = vsel %vm2001, %v1586, %v1776
  %v2008 = vsel %vm2001, %v1587, %v1777
  %v2009 = vsel %vm2001, %v1588, %v1778
  %v2010 = vsel %vm2001, %v1589, %v1779
  %v2011 = vsel %vm2001, %v1590, %v1780
  %v2012 = vsel %vm2001, %v1596, %v1781
  %v2013 = vsel %vm2001, %v1597, %v1782
  %v2014 = vsel %vm2001, %v1598, %v1783
  %v2015 = vsel %vm2001, %v1599, %v1784
  %v2016 = vsel %vm2001, %v1600, %v1785
  %v2017 = vsel %vm2001, %v1606, %v1786
  %v2018 = vsel %vm2001, %v1607, %v1787
  %v2019 = vsel %vm2001, %v1608, %v1788
  %v2020 = vsel %vm2001, %v1609, %v1789
  %v2021 = vsel %vm2001, %v1610, %v1790
  %v2022 = vsel %vm2001, %v1616, %v1791
  %v2023 = vsel %vm2001, %v1617, %v1792
  %v2024 = vsel %vm2001, %v1618, %v1793
  %v2025 = vsel %vm2001, %v1619, %v1794
  %v2026 = vsel %vm2001, %v1620, %v1795
  %v2027 = vsel %vm2001, %v1626, %v1796
  %v2028 = vsel %vm2001, %v1627, %v1797
  %v2029 = vsel %vm2001, %v1628, %v1798
  %v2030 = vsel %vm2001, %v1629, %v1799
  %v2031 = vsel %vm2001, %v1630, %v1800
  %v2032 = vsel %vm2001, %v1636, %v1801
  %v2033 = vsel %vm2001, %v1637, %v1802
  %v2034 = vsel %vm2001, %v1638, %v1803
  %v2035 = vsel %vm2001, %v1639, %v1804
  %v2036 = vsel %vm2001, %v1640, %v1805
  %v2037 = vsel %vm2001, %v1646, %v1806
  %v2038 = vsel %vm2001, %v1647, %v1807
  %v2039 = vsel %vm2001, %v1648, %v1808
  %v2040 = vsel %vm2001, %v1649, %v1809
  %v2041 = vsel %vm2001, %v1650, %v1810
  %vm2042 = vcmask 1041408
  %v2043 = vsel %vm2042, %v2002, %v1726
  %v2044 = vsel %vm2042, %v2003, %v1727
  %v2045 = vsel %vm2042, %v2004, %v1728
  %v2046 = vsel %vm2042, %v2005, %v1729
  %v2047 = vsel %vm2042, %v2006, %v1730
  %v2048 = vsel %vm2042, %v2007, %v1851
  %v2049 = vsel %vm2042, %v2008, %v1852
  %v2050 = vsel %vm2042, %v2009, %v1853
  %v2051 = vsel %vm2042, %v2010, %v1854
  %v2052 = vsel %vm2042, %v2011, %v1855
  %v2053 = vsel %vm2042, %v2012, %v1856
  %v2054 = vsel %vm2042, %v2013, %v1857
  %v2055 = vsel %vm2042, %v2014, %v1858
  %v2056 = vsel %vm2042, %v2015, %v1859
  %v2057 = vsel %vm2042, %v2016, %v1860
  %v2058 = vsel %vm2042, %v2017, %v1861
  %v2059 = vsel %vm2042, %v2018, %v1862
  %v2060 = vsel %vm2042, %v2019, %v1863
  %v2061 = vsel %vm2042, %v2020, %v1864
  %v2062 = vsel %vm2042, %v2021, %v1865
  %v2063 = vsel %vm2042, %v2022, %v1866
  %v2064 = vsel %vm2042, %v2023, %v1867
  %v2065 = vsel %vm2042, %v2024, %v1868
  %v2066 = vsel %vm2042, %v2025, %v1869
  %v2067 = vsel %vm2042, %v2026, %v1870
  %v2068 = vsel %vm2042, %v2027, %v1871
  %v2069 = vsel %vm2042, %v2028, %v1872
  %v2070 = vsel %vm2042, %v2029, %v1873
  %v2071 = vsel %vm2042, %v2030, %v1874
  %v2072 = vsel %vm2042, %v2031, %v1875
  %v2073 = vsel %vm2042, %v2032, %v1876
  %v2074 = vsel %vm2042, %v2033, %v1877
  %v2075 = vsel %vm2042, %v2034, %v1878
  %v2076 = vsel %vm2042, %v2035, %v1879
  %v2077 = vsel %vm2042, %v2036, %v1880
  %v2078 = vsel %vm2042, %v2037, %v1881
  %v2079 = vsel %vm2042, %v2038, %v1882
  %v2080 = vsel %vm2042, %v2039, %v1883
  %v2081 = vsel %vm2042, %v2040, %v1884
  %v2082 = vsel %vm2042, %v2041, %v1885
  %vm2083 = vcmask 1042432
  %v2084 = vsel %vm2083, %v2043, %v1761
  %v2085 = vsel %vm2083, %v2044, %v1762
  %v2086 = vsel %vm2083, %v2045, %v1763
  %v2087 = vsel %vm2083, %v2046, %v1764
  %v2088 = vsel %vm2083, %v2047, %v1765
  %v2089 = vsel %vm2083, %v2048, %v1926
  %v2090 = vsel %vm2083, %v2049, %v1927
  %v2091 = vsel %vm2083, %v2050, %v1928
  %v2092 = vsel %vm2083, %v2051, %v1929
  %v2093 = vsel %vm2083, %v2052, %v1930
  %v2094 = vsel %vm2083, %v2053, %v1931
  %v2095 = vsel %vm2083, %v2054, %v1932
  %v2096 = vsel %vm2083, %v2055, %v1933
  %v2097 = vsel %vm2083, %v2056, %v1934
  %v2098 = vsel %vm2083, %v2057, %v1935
  %v2099 = vsel %vm2083, %v2058, %v1936
  %v2100 = vsel %vm2083, %v2059, %v1937
  %v2101 = vsel %vm2083, %v2060, %v1938
  %v2102 = vsel %vm2083, %v2061, %v1939
  %v2103 = vsel %vm2083, %v2062, %v1940
  %v2104 = vsel %vm2083, %v2063, %v1941
  %v2105 = vsel %vm2083, %v2064, %v1942
  %v2106 = vsel %vm2083, %v2065, %v1943
  %v2107 = vsel %vm2083, %v2066, %v1944
  %v2108 = vsel %vm2083, %v2067, %v1945
  %v2109 = vsel %vm2083, %v2068, %v1946
  %v2110 = vsel %vm2083, %v2069, %v1947
  %v2111 = vsel %vm2083, %v2070, %v1948
  %v2112 = vsel %vm2083, %v2071, %v1949
  %v2113 = vsel %vm2083, %v2072, %v1950
  %v2114 = vsel %vm2083, %v2073, %v1951
  %v2115 = vsel %vm2083, %v2074, %v1952
  %v2116 = vsel %vm2083, %v2075, %v1953
  %v2117 = vsel %vm2083, %v2076, %v1954
  %v2118 = vsel %vm2083, %v2077, %v1955
  %v2119 = vsel %vm2083, %v2078, %v1956
  %v2120 = vsel %vm2083, %v2079, %v1957
  %v2121 = vsel %vm2083, %v2080, %v1958
  %v2122 = vsel %vm2083, %v2081, %v1959
  %v2123 = vsel %vm2083, %v2082, %v1960
  %v2124 = vld [vmem:[%s3] sm:$0xff]
  %v2125 = vld [vmem:[%s3 + $0x8] sm:$0xff]
  %v2126 = vld [vmem:[%s3 + $0x10] sm:$0xff]
  %v2127 = vld [vmem:[%s3 + $0x18] sm:$0xff]
  %v2128 = vld [vmem:[%s3 + $0x20] sm:$0xff]
  %v2129 = vld [vmem:[%s3 + $0x28] sm:$0xff]
  %v2130 = vld [vmem:[%s3 + $0x30] sm:$0xff]
  %v2131 = vld [vmem:[%s3 + $0x38] sm:$0xff]
  %v2132 = vld [vmem:[%s3 + $0x40] sm:$0xff]
  %v2133 = vld [vmem:[%s3 + $0x48] sm:$0xff]
  %v2134 = vld [vmem:[%s3 + $0x50] sm:$0xff]
  %v2135 = vld [vmem:[%s3 + $0x58] sm:$0xff]
  %v2136 = vld [vmem:[%s3 + $0x60] sm:$0xff]
  %v2137 = vld [vmem:[%s3 + $0x68] sm:$0xff]
  %v2138 = vld [vmem:[%s3 + $0x70] sm:$0xff]
  %v2139 = vld [vmem:[%s3 + $0x78] sm:$0xff]
  %v2140 = vld [vmem:[%s3 + $0x80] sm:$0xff]
  %v2141 = vld [vmem:[%s3 + $0x88] sm:$0xff]
  %v2142 = vld [vmem:[%s3 + $0x90] sm:$0xff]
  %v2143 = vld [vmem:[%s3 + $0x98] sm:$0xff]
  %v2144 = vld [vmem:[%s3 + $0xa0] sm:$0xff]
  %v2145 = vld [vmem:[%s3 + $0xa8] sm:$0xff]
  %v2146 = vld [vmem:[%s3 + $0xb0] sm:$0xff]
  %v2147 = vld [vmem:[%s3 + $0xb8] sm:$0xff]
  %v2148 = vld [vmem:[%s3 + $0xc0] sm:$0xff]
  %v2149 = vld [vmem:[%s3 + $0xc8] sm:$0xff]
  %v2150 = vld [vmem:[%s3 + $0xd0] sm:$0xff]
  %v2151 = vld [vmem:[%s3 + $0xd8] sm:$0xff]
  %v2152 = vld [vmem:[%s3 + $0xe0] sm:$0xff]
  %v2153 = vld [vmem:[%s3 + $0xe8] sm:$0xff]
  %v2154 = vld [vmem:[%s3 + $0xf0] sm:$0xff]
  %v2155 = vld [vmem:[%s3 + $0xf8] sm:$0xff]
  %v2156 = vld [vmem:[%s3 + $0x100] sm:$0xff]
  %v2157 = vld [vmem:[%s3 + $0x108] sm:$0xff]
  %v2158 = vld [vmem:[%s3 + $0x110] sm:$0xff]
  %v2159 = vld [vmem:[%s3 + $0x118] sm:$0xff]
  %v2160 = vld [vmem:[%s3 + $0x120] sm:$0xff]
  %v2161 = vld [vmem:[%s3 + $0x128] sm:$0xff]
  %v2162 = vld [vmem:[%s3 + $0x130] sm:$0xff]
  %v2163 = vld [vmem:[%s3 + $0x138] sm:$0xff]
  %v2164 = vld [vmem:[%s3 + $0x140] sm:$0xff]
  %v2165 = vld [vmem:[%s3 + $0x148] sm:$0xff]
  %v2166 = vld [vmem:[%s3 + $0x150] sm:$0xff]
  %v2167 = vld [vmem:[%s3 + $0x158] sm:$0xff]
  %v2168 = vld [vmem:[%s3 + $0x160] sm:$0xff]
  %v2169 = vld [vmem:[%s3 + $0x168] sm:$0xff]
  %v2170 = vld [vmem:[%s3 + $0x170] sm:$0xff]
  %v2171 = vld [vmem:[%s3 + $0x178] sm:$0xff]
  %v2172 = vld [vmem:[%s3 + $0x180] sm:$0xff]
  %v2173 = vld [vmem:[%s3 + $0x188] sm:$0xff]
  %v2174 = vld [vmem:[%s3 + $0x190] sm:$0xff]
  %v2175 = vld [vmem:[%s3 + $0x198] sm:$0xff]
  %v2176 = vld [vmem:[%s3 + $0x1a0] sm:$0xff]
  %v2177 = vld [vmem:[%s3 + $0x1a8] sm:$0xff]
  %v2178 = vld [vmem:[%s3 + $0x1b0] sm:$0xff]
  %v2179 = vld [vmem:[%s3 + $0x1b8] sm:$0xff]
  %v2180 = vld [vmem:[%s3 + $0x1c0] sm:$0xff]
  %v2181 = vld [vmem:[%s3 + $0x1c8] sm:$0xff]
  %v2182 = vld [vmem:[%s3 + $0x1d0] sm:$0xff]
  %v2183 = vld [vmem:[%s3 + $0x1d8] sm:$0xff]
  %v2184 = vld [vmem:[%s3 + $0x1e0] sm:$0xff]
  %v2185 = vld [vmem:[%s3 + $0x1e8] sm:$0xff]
  %v2186 = vld [vmem:[%s3 + $0x1f0] sm:$0xff]
  %v2187 = vld [vmem:[%s3 + $0x1f8] sm:$0xff]
  %v2188 = vld [vmem:[%s3 + $0x200] sm:$0xff]
  %v2189 = vld [vmem:[%s3 + $0x208] sm:$0xff]
  %v2190 = vld [vmem:[%s3 + $0x210] sm:$0xff]
  %v2191 = vld [vmem:[%s3 + $0x218] sm:$0xff]
  %v2192 = vld [vmem:[%s3 + $0x220] sm:$0xff]
  %v2193 = vld [vmem:[%s3 + $0x228] sm:$0xff]
  %v2194 = vld [vmem:[%s3 + $0x230] sm:$0xff]
  %v2195 = vld [vmem:[%s3 + $0x238] sm:$0xff]
  %v2196 = vld [vmem:[%s3 + $0x240] sm:$0xff]
  %v2197 = vld [vmem:[%s3 + $0x248] sm:$0xff]
  %v2198 = vld [vmem:[%s3 + $0x250] sm:$0xff]
  %v2199 = vld [vmem:[%s3 + $0x258] sm:$0xff]
  %v2200 = vld [vmem:[%s3 + $0x260] sm:$0xff]
  %v2201 = vld [vmem:[%s3 + $0x268] sm:$0xff]
  %v2202 = vld [vmem:[%s3 + $0x270] sm:$0xff]
  %v2203 = vld [vmem:[%s3 + $0x278] sm:$0xff]
  %v2204 = vld [vmem:[%s3 + $0x280] sm:$0xff]
  %v2205 = vld [vmem:[%s3 + $0x288] sm:$0xff]
  %v2206 = vld [vmem:[%s3 + $0x290] sm:$0xff]
  %v2207 = vld [vmem:[%s3 + $0x298] sm:$0xff]
  %v2208 = vld [vmem:[%s3 + $0x2a0] sm:$0xff]
  %v2209 = vld [vmem:[%s3 + $0x2a8] sm:$0xff]
  %v2210 = vld [vmem:[%s3 + $0x2b0] sm:$0xff]
  %v2211 = vld [vmem:[%s3 + $0x2b8] sm:$0xff]
  %v2212 = vld [vmem:[%s3 + $0x2c0] sm:$0xff]
  %v2213 = vld [vmem:[%s3 + $0x2c8] sm:$0xff]
  %v2214 = vld [vmem:[%s3 + $0x2d0] sm:$0xff]
  %v2215 = vld [vmem:[%s3 + $0x2d8] sm:$0xff]
  %v2216 = vld [vmem:[%s3 + $0x2e0] sm:$0xff]
  %v2217 = vld [vmem:[%s3 + $0x2e8] sm:$0xff]
  %v2218 = vld [vmem:[%s3 + $0x2f0] sm:$0xff]
  %v2219 = vld [vmem:[%s3 + $0x2f8] sm:$0xff]
  %v2220 = vld [vmem:[%s3 + $0x300] sm:$0xff]
  %v2221 = vld [vmem:[%s3 + $0x308] sm:$0xff]
  %v2222 = vld [vmem:[%s3 + $0x310] sm:$0xff]
  %v2223 = vld [vmem:[%s3 + $0x318] sm:$0xff]
  %v2224 = vld [vmem:[%s3 + $0x320] sm:$0xff]
  %v2225 = vld [vmem:[%s3 + $0x328] sm:$0xff]
  %v2226 = vld [vmem:[%s3 + $0x330] sm:$0xff]
  %v2227 = vld [vmem:[%s3 + $0x338] sm:$0xff]
  %v2228 = vld [vmem:[%s3 + $0x340] sm:$0xff]
  %v2229 = vld [vmem:[%s3 + $0x348] sm:$0xff]
  %v2230 = vld [vmem:[%s3 + $0x350] sm:$0xff]
  %v2231 = vld [vmem:[%s3 + $0x358] sm:$0xff]
  %v2232 = vld [vmem:[%s3 + $0x360] sm:$0xff]
  %v2233 = vld [vmem:[%s3 + $0x368] sm:$0xff]
  %v2234 = vld [vmem:[%s3 + $0x370] sm:$0xff]
  %v2235 = vld [vmem:[%s3 + $0x378] sm:$0xff]
  %v2236 = vld [vmem:[%s3 + $0x380] sm:$0xff]
  %v2237 = vld [vmem:[%s3 + $0x388] sm:$0xff]
  %v2238 = vld [vmem:[%s3 + $0x390] sm:$0xff]
  %v2239 = vld [vmem:[%s3 + $0x398] sm:$0xff]
  %v2240 = vld [vmem:[%s3 + $0x3a0] sm:$0xff]
  %v2241 = vld [vmem:[%s3 + $0x3a8] sm:$0xff]
  %v2242 = vld [vmem:[%s3 + $0x3b0] sm:$0xff]
  %v2243 = vld [vmem:[%s3 + $0x3b8] sm:$0xff]
  %v2244 = vld [vmem:[%s3 + $0x3c0] sm:$0xff]
  %v2245 = vld [vmem:[%s3 + $0x3c8] sm:$0xff]
  %v2246 = vld [vmem:[%s3 + $0x3d0] sm:$0xff]
  %v2247 = vld [vmem:[%s3 + $0x3d8] sm:$0xff]
  %v2248 = vld [vmem:[%s3 + $0x3e0] sm:$0xff]
  %v2249 = vld [vmem:[%s3 + $0x3e8] sm:$0xff]
  %v2250 = vld [vmem:[%s3 + $0x3f0] sm:$0xff]
  %v2251 = vld [vmem:[%s3 + $0x3f8] sm:$0xff]
  %v2252 = vld [vmem:[%s3 + $0x400] sm:$0xff]
  %v2253 = vld [vmem:[%s3 + $0x408] sm:$0xff]
  %v2254 = vld [vmem:[%s3 + $0x410] sm:$0xff]
  %v2255 = vld [vmem:[%s3 + $0x418] sm:$0xff]
  %v2256 = vld [vmem:[%s3 + $0x420] sm:$0xff]
  %v2257 = vld [vmem:[%s3 + $0x428] sm:$0xff]
  %v2258 = vld [vmem:[%s3 + $0x430] sm:$0xff]
  %v2259 = vld [vmem:[%s3 + $0x438] sm:$0xff]
  %v2260 = vld [vmem:[%s3 + $0x440] sm:$0xff]
  %v2261 = vld [vmem:[%s3 + $0x448] sm:$0xff]
  %v2262 = vld [vmem:[%s3 + $0x450] sm:$0xff]
  %v2263 = vld [vmem:[%s3 + $0x458] sm:$0xff]
  %v2264 = vld [vmem:[%s3 + $0x460] sm:$0xff]
  %v2265 = vld [vmem:[%s3 + $0x468] sm:$0xff]
  %v2266 = vld [vmem:[%s3 + $0x470] sm:$0xff]
  %v2267 = vld [vmem:[%s3 + $0x478] sm:$0xff]
  %v2268 = vld [vmem:[%s3 + $0x480] sm:$0xff]
  %v2269 = vld [vmem:[%s3 + $0x488] sm:$0xff]
  %v2270 = vld [vmem:[%s3 + $0x490] sm:$0xff]
  %v2271 = vld [vmem:[%s3 + $0x498] sm:$0xff]
  %v2272 = vld [vmem:[%s3 + $0x4a0] sm:$0xff]
  %v2273 = vld [vmem:[%s3 + $0x4a8] sm:$0xff]
  %v2274 = vld [vmem:[%s3 + $0x4b0] sm:$0xff]
  %v2275 = vld [vmem:[%s3 + $0x4b8] sm:$0xff]
  %v2276 = vld [vmem:[%s3 + $0x4c0] sm:$0xff]
  %v2277 = vld [vmem:[%s3 + $0x4c8] sm:$0xff]
  %v2278 = vld [vmem:[%s3 + $0x4d0] sm:$0xff]
  %v2279 = vld [vmem:[%s3 + $0x4d8] sm:$0xff]
  %v2280 = vld [vmem:[%s3 + $0x4e0] sm:$0xff]
  %v2281 = vld [vmem:[%s3 + $0x4e8] sm:$0xff]
  %v2282 = vld [vmem:[%s3 + $0x4f0] sm:$0xff]
  %v2283 = vld [vmem:[%s3 + $0x4f8] sm:$0xff]
  %v2284 = vld [vmem:[%s3 + $0x500] sm:$0xff]
  %v2285 = vld [vmem:[%s3 + $0x508] sm:$0xff]
  %v2286 = vld [vmem:[%s3 + $0x510] sm:$0xff]
  %v2287 = vld [vmem:[%s3 + $0x518] sm:$0xff]
  %v2288 = vld [vmem:[%s3 + $0x520] sm:$0xff]
  %v2289 = vld [vmem:[%s3 + $0x528] sm:$0xff]
  %v2290 = vld [vmem:[%s3 + $0x530] sm:$0xff]
  %v2291 = vld [vmem:[%s3 + $0x538] sm:$0xff]
  %v2292 = vld [vmem:[%s3 + $0x540] sm:$0xff]
  %v2293 = vld [vmem:[%s3 + $0x548] sm:$0xff]
  %v2294 = vld [vmem:[%s3 + $0x550] sm:$0xff]
  %v2295 = vld [vmem:[%s3 + $0x558] sm:$0xff]
  %v2296 = vld [vmem:[%s3 + $0x560] sm:$0xff]
  %v2297 = vld [vmem:[%s3 + $0x568] sm:$0xff]
  %v2298 = vld [vmem:[%s3 + $0x570] sm:$0xff]
  %v2299 = vld [vmem:[%s3 + $0x578] sm:$0xff]
  %v2300 = vld [vmem:[%s3 + $0x580] sm:$0xff]
  %v2301 = vld [vmem:[%s3 + $0x588] sm:$0xff]
  %v2302 = vld [vmem:[%s3 + $0x590] sm:$0xff]
  %v2303 = vld [vmem:[%s3 + $0x598] sm:$0xff]
  %v2304 = vld [vmem:[%s3 + $0x5a0] sm:$0xff]
  %v2305 = vld [vmem:[%s3 + $0x5a8] sm:$0xff]
  %v2306 = vld [vmem:[%s3 + $0x5b0] sm:$0xff]
  %v2307 = vld [vmem:[%s3 + $0x5b8] sm:$0xff]
  %v2308 = vld [vmem:[%s3 + $0x5c0] sm:$0xff]
  %v2309 = vld [vmem:[%s3 + $0x5c8] sm:$0xff]
  %v2310 = vld [vmem:[%s3 + $0x5d0] sm:$0xff]
  %v2311 = vld [vmem:[%s3 + $0x5d8] sm:$0xff]
  %v2312 = vld [vmem:[%s3 + $0x5e0] sm:$0xff]
  %v2313 = vld [vmem:[%s3 + $0x5e8] sm:$0xff]
  %v2314 = vld [vmem:[%s3 + $0x5f0] sm:$0xff]
  %v2315 = vld [vmem:[%s3 + $0x5f8] sm:$0xff]
  %v2316 = vld [vmem:[%s3 + $0x600] sm:$0xff]
  %v2317 = vld [vmem:[%s3 + $0x608] sm:$0xff]
  %v2318 = vld [vmem:[%s3 + $0x610] sm:$0xff]
  %v2319 = vld [vmem:[%s3 + $0x618] sm:$0xff]
  %v2320 = vld [vmem:[%s3 + $0x620] sm:$0xff]
  %v2321 = vld [vmem:[%s3 + $0x628] sm:$0xff]
  %v2322 = vld [vmem:[%s3 + $0x630] sm:$0xff]
  %v2323 = vld [vmem:[%s3 + $0x638] sm:$0xff]
  %v2324 = vld [vmem:[%s3 + $0x640] sm:$0xff]
  %v2325 = vld [vmem:[%s3 + $0x648] sm:$0xff]
  %v2326 = vld [vmem:[%s3 + $0x650] sm:$0xff]
  %v2327 = vld [vmem:[%s3 + $0x658] sm:$0xff]
  %v2328 = vld [vmem:[%s3 + $0x660] sm:$0xff]
  %v2329 = vld [vmem:[%s3 + $0x668] sm:$0xff]
  %v2330 = vld [vmem:[%s3 + $0x670] sm:$0xff]
  %v2331 = vld [vmem:[%s3 + $0x678] sm:$0xff]
  %v2332 = vld [vmem:[%s3 + $0x680] sm:$0xff]
  %v2333 = vld [vmem:[%s3 + $0x688] sm:$0xff]
  %v2334 = vld [vmem:[%s3 + $0x690] sm:$0xff]
  %v2335 = vld [vmem:[%s3 + $0x698] sm:$0xff]
  %v2336 = vld [vmem:[%s3 + $0x6a0] sm:$0xff]
  %v2337 = vld [vmem:[%s3 + $0x6a8] sm:$0xff]
  %v2338 = vld [vmem:[%s3 + $0x6b0] sm:$0xff]
  %v2339 = vld [vmem:[%s3 + $0x6b8] sm:$0xff]
  %v2340 = vld [vmem:[%s3 + $0x6c0] sm:$0xff]
  %v2341 = vld [vmem:[%s3 + $0x6c8] sm:$0xff]
  %v2342 = vld [vmem:[%s3 + $0x6d0] sm:$0xff]
  %v2343 = vld [vmem:[%s3 + $0x6d8] sm:$0xff]
  %v2344 = vld [vmem:[%s3 + $0x6e0] sm:$0xff]
  %v2345 = vld [vmem:[%s3 + $0x6e8] sm:$0xff]
  %v2346 = vld [vmem:[%s3 + $0x6f0] sm:$0xff]
  %v2347 = vld [vmem:[%s3 + $0x6f8] sm:$0xff]
  %v2348 = vld [vmem:[%s3 + $0x700] sm:$0xff]
  %v2349 = vld [vmem:[%s3 + $0x708] sm:$0xff]
  %v2350 = vld [vmem:[%s3 + $0x710] sm:$0xff]
  %v2351 = vld [vmem:[%s3 + $0x718] sm:$0xff]
  %v2352 = vld [vmem:[%s3 + $0x720] sm:$0xff]
  %v2353 = vld [vmem:[%s3 + $0x728] sm:$0xff]
  %v2354 = vld [vmem:[%s3 + $0x730] sm:$0xff]
  %v2355 = vld [vmem:[%s3 + $0x738] sm:$0xff]
  %v2356 = vld [vmem:[%s3 + $0x740] sm:$0xff]
  %v2357 = vld [vmem:[%s3 + $0x748] sm:$0xff]
  %v2358 = vld [vmem:[%s3 + $0x750] sm:$0xff]
  %v2359 = vld [vmem:[%s3 + $0x758] sm:$0xff]
  %v2360 = vld [vmem:[%s3 + $0x760] sm:$0xff]
  %v2361 = vld [vmem:[%s3 + $0x768] sm:$0xff]
  %v2362 = vld [vmem:[%s3 + $0x770] sm:$0xff]
  %v2363 = vld [vmem:[%s3 + $0x778] sm:$0xff]
  %v2364 = vld [vmem:[%s3 + $0x780] sm:$0xff]
  %v2365 = vld [vmem:[%s3 + $0x788] sm:$0xff]
  %v2366 = vld [vmem:[%s3 + $0x790] sm:$0xff]
  %v2367 = vld [vmem:[%s3 + $0x798] sm:$0xff]
  %v2368 = vld [vmem:[%s3 + $0x7a0] sm:$0xff]
  %v2369 = vld [vmem:[%s3 + $0x7a8] sm:$0xff]
  %v2370 = vld [vmem:[%s3 + $0x7b0] sm:$0xff]
  %v2371 = vld [vmem:[%s3 + $0x7b8] sm:$0xff]
  %v2372 = vld [vmem:[%s3 + $0x7c0] sm:$0xff]
  %v2373 = vld [vmem:[%s3 + $0x7c8] sm:$0xff]
  %v2374 = vld [vmem:[%s3 + $0x7d0] sm:$0xff]
  %v2375 = vld [vmem:[%s3 + $0x7d8] sm:$0xff]
  %v2376 = vld [vmem:[%s3 + $0x7e0] sm:$0xff]
  %v2377 = vld [vmem:[%s3 + $0x7e8] sm:$0xff]
  %v2378 = vld [vmem:[%s3 + $0x7f0] sm:$0xff]
  %v2379 = vld [vmem:[%s3 + $0x7f8] sm:$0xff]
  %v2380 = vld [vmem:[%s3 + $0x800] sm:$0xff]
  %v2381 = vld [vmem:[%s3 + $0x808] sm:$0xff]
  %v2382 = vld [vmem:[%s3 + $0x810] sm:$0xff]
  %v2383 = vld [vmem:[%s3 + $0x818] sm:$0xff]
  %v2384 = vld [vmem:[%s3 + $0x820] sm:$0xff]
  %v2385 = vld [vmem:[%s3 + $0x828] sm:$0xff]
  %v2386 = vld [vmem:[%s3 + $0x830] sm:$0xff]
  %v2387 = vld [vmem:[%s3 + $0x838] sm:$0xff]
  %v2388 = vld [vmem:[%s3 + $0x840] sm:$0xff]
  %v2389 = vld [vmem:[%s3 + $0x848] sm:$0xff]
  %v2390 = vld [vmem:[%s3 + $0x850] sm:$0xff]
  %v2391 = vld [vmem:[%s3 + $0x858] sm:$0xff]
  %v2392 = vld [vmem:[%s3 + $0x860] sm:$0xff]
  %v2393 = vld [vmem:[%s3 + $0x868] sm:$0xff]
  %v2394 = vld [vmem:[%s3 + $0x870] sm:$0xff]
  %v2395 = vld [vmem:[%s3 + $0x878] sm:$0xff]
  %v2396 = vld [vmem:[%s3 + $0x880] sm:$0xff]
  %v2397 = vld [vmem:[%s3 + $0x888] sm:$0xff]
  %v2398 = vld [vmem:[%s3 + $0x890] sm:$0xff]
  %v2399 = vld [vmem:[%s3 + $0x898] sm:$0xff]
  %v2400 = vld [vmem:[%s3 + $0x8a0] sm:$0xff]
  %v2401 = vld [vmem:[%s3 + $0x8a8] sm:$0xff]
  %v2402 = vld [vmem:[%s3 + $0x8b0] sm:$0xff]
  %v2403 = vld [vmem:[%s3 + $0x8b8] sm:$0xff]
  %v2404 = vld [vmem:[%s3 + $0x8c0] sm:$0xff]
  %v2405 = vld [vmem:[%s3 + $0x8c8] sm:$0xff]
  %v2406 = vld [vmem:[%s3 + $0x8d0] sm:$0xff]
  %v2407 = vld [vmem:[%s3 + $0x8d8] sm:$0xff]
  %v2408 = vld [vmem:[%s3 + $0x8e0] sm:$0xff]
  %v2409 = vld [vmem:[%s3 + $0x8e8] sm:$0xff]
  %v2410 = vld [vmem:[%s3 + $0x8f0] sm:$0xff]
  %v2411 = vld [vmem:[%s3 + $0x8f8] sm:$0xff]
  %v2412 = vld [vmem:[%s3 + $0x900] sm:$0xff]
  %v2413 = vld [vmem:[%s3 + $0x908] sm:$0xff]
  %v2414 = vld [vmem:[%s3 + $0x910] sm:$0xff]
  %v2415 = vld [vmem:[%s3 + $0x918] sm:$0xff]
  %v2416 = vld [vmem:[%s3 + $0x920] sm:$0xff]
  %v2417 = vld [vmem:[%s3 + $0x928] sm:$0xff]
  %v2418 = vld [vmem:[%s3 + $0x930] sm:$0xff]
  %v2419 = vld [vmem:[%s3 + $0x938] sm:$0xff]
  %v2420 = vld [vmem:[%s3 + $0x940] sm:$0xff]
  %v2421 = vld [vmem:[%s3 + $0x948] sm:$0xff]
  %v2422 = vld [vmem:[%s3 + $0x950] sm:$0xff]
  %v2423 = vld [vmem:[%s3 + $0x958] sm:$0xff]
  %v2424 = vld [vmem:[%s3 + $0x960] sm:$0xff]
  %v2425 = vld [vmem:[%s3 + $0x968] sm:$0xff]
  %v2426 = vld [vmem:[%s3 + $0x970] sm:$0xff]
  %v2427 = vld [vmem:[%s3 + $0x978] sm:$0xff]
  %v2428 = vld [vmem:[%s3 + $0x980] sm:$0xff]
  %v2429 = vld [vmem:[%s3 + $0x988] sm:$0xff]
  %v2430 = vld [vmem:[%s3 + $0x990] sm:$0xff]
  %v2431 = vld [vmem:[%s3 + $0x998] sm:$0xff]
  %v2432 = vld [vmem:[%s3 + $0x9a0] sm:$0xff]
  %v2433 = vld [vmem:[%s3 + $0x9a8] sm:$0xff]
  %v2434 = vld [vmem:[%s3 + $0x9b0] sm:$0xff]
  %v2435 = vld [vmem:[%s3 + $0x9b8] sm:$0xff]
  %v2436 = vld [vmem:[%s3 + $0x9c0] sm:$0xff]
  %v2437 = vld [vmem:[%s3 + $0x9c8] sm:$0xff]
  %v2438 = vld [vmem:[%s3 + $0x9d0] sm:$0xff]
  %v2439 = vld [vmem:[%s3 + $0x9d8] sm:$0xff]
  %v2440 = vld [vmem:[%s3 + $0x9e0] sm:$0xff]
  %v2441 = vld [vmem:[%s3 + $0x9e8] sm:$0xff]
  %v2442 = vld [vmem:[%s3 + $0x9f0] sm:$0xff]
  %v2443 = vld [vmem:[%s3 + $0x9f8] sm:$0xff]
  %v2444 = vld [vmem:[%s3 + $0xa00] sm:$0xff]
  %v2445 = vld [vmem:[%s3 + $0xa08] sm:$0xff]
  %v2446 = vld [vmem:[%s3 + $0xa10] sm:$0xff]
  %v2447 = vld [vmem:[%s3 + $0xa18] sm:$0xff]
  %v2448 = vld [vmem:[%s3 + $0xa20] sm:$0xff]
  %v2449 = vld [vmem:[%s3 + $0xa28] sm:$0xff]
  %v2450 = vld [vmem:[%s3 + $0xa30] sm:$0xff]
  %v2451 = vld [vmem:[%s3 + $0xa38] sm:$0xff]
  %v2452 = vld [vmem:[%s3 + $0xa40] sm:$0xff]
  %v2453 = vld [vmem:[%s3 + $0xa48] sm:$0xff]
  %v2454 = vld [vmem:[%s3 + $0xa50] sm:$0xff]
  %v2455 = vld [vmem:[%s3 + $0xa58] sm:$0xff]
  %v2456 = vld [vmem:[%s3 + $0xa60] sm:$0xff]
  %v2457 = vld [vmem:[%s3 + $0xa68] sm:$0xff]
  %v2458 = vld [vmem:[%s3 + $0xa70] sm:$0xff]
  %v2459 = vld [vmem:[%s3 + $0xa78] sm:$0xff]
  %v2460 = vld [vmem:[%s3 + $0xa80] sm:$0xff]
  %v2461 = vld [vmem:[%s3 + $0xa88] sm:$0xff]
  %v2462 = vld [vmem:[%s3 + $0xa90] sm:$0xff]
  %v2463 = vld [vmem:[%s3 + $0xa98] sm:$0xff]
  %v2464 = vld [vmem:[%s3 + $0xaa0] sm:$0xff]
  %v2465 = vld [vmem:[%s3 + $0xaa8] sm:$0xff]
  %v2466 = vld [vmem:[%s3 + $0xab0] sm:$0xff]
  %v2467 = vld [vmem:[%s3 + $0xab8] sm:$0xff]
  %v2468 = vld [vmem:[%s3 + $0xac0] sm:$0xff]
  %v2469 = vld [vmem:[%s3 + $0xac8] sm:$0xff]
  %v2470 = vld [vmem:[%s3 + $0xad0] sm:$0xff]
  %v2471 = vld [vmem:[%s3 + $0xad8] sm:$0xff]
  %v2472 = vld [vmem:[%s3 + $0xae0] sm:$0xff]
  %v2473 = vld [vmem:[%s3 + $0xae8] sm:$0xff]
  %v2474 = vld [vmem:[%s3 + $0xaf0] sm:$0xff]
  %v2475 = vld [vmem:[%s3 + $0xaf8] sm:$0xff]
  %v2476 = vld [vmem:[%s3 + $0xb00] sm:$0xff]
  %v2477 = vld [vmem:[%s3 + $0xb08] sm:$0xff]
  %v2478 = vld [vmem:[%s3 + $0xb10] sm:$0xff]
  %v2479 = vld [vmem:[%s3 + $0xb18] sm:$0xff]
  %v2480 = vld [vmem:[%s3 + $0xb20] sm:$0xff]
  %v2481 = vld [vmem:[%s3 + $0xb28] sm:$0xff]
  %v2482 = vld [vmem:[%s3 + $0xb30] sm:$0xff]
  %v2483 = vld [vmem:[%s3 + $0xb38] sm:$0xff]
  %v2484 = vld [vmem:[%s3 + $0xb40] sm:$0xff]
  %v2485 = vld [vmem:[%s3 + $0xb48] sm:$0xff]
  %v2486 = vld [vmem:[%s3 + $0xb50] sm:$0xff]
  %v2487 = vld [vmem:[%s3 + $0xb58] sm:$0xff]
  %v2488 = vld [vmem:[%s3 + $0xb60] sm:$0xff]
  %v2489 = vld [vmem:[%s3 + $0xb68] sm:$0xff]
  %v2490 = vld [vmem:[%s3 + $0xb70] sm:$0xff]
  %v2491 = vld [vmem:[%s3 + $0xb78] sm:$0xff]
  %v2492 = vld [vmem:[%s3 + $0xb80] sm:$0xff]
  %v2493 = vld [vmem:[%s3 + $0xb88] sm:$0xff]
  %v2494 = vld [vmem:[%s3 + $0xb90] sm:$0xff]
  %v2495 = vld [vmem:[%s3 + $0xb98] sm:$0xff]
  %v2496 = vld [vmem:[%s3 + $0xba0] sm:$0xff]
  %v2497 = vld [vmem:[%s3 + $0xba8] sm:$0xff]
  %v2498 = vld [vmem:[%s3 + $0xbb0] sm:$0xff]
  %v2499 = vld [vmem:[%s3 + $0xbb8] sm:$0xff]
  %v2500 = vld [vmem:[%s3 + $0xbc0] sm:$0xff]
  %v2501 = vld [vmem:[%s3 + $0xbc8] sm:$0xff]
  %v2502 = vld [vmem:[%s3 + $0xbd0] sm:$0xff]
  %v2503 = vld [vmem:[%s3 + $0xbd8] sm:$0xff]
  %v2504 = vld [vmem:[%s3 + $0xbe0] sm:$0xff]
  %v2505 = vld [vmem:[%s3 + $0xbe8] sm:$0xff]
  %v2506 = vld [vmem:[%s3 + $0xbf0] sm:$0xff]
  %v2507 = vld [vmem:[%s3 + $0xbf8] sm:$0xff]
  %v2508 = vld [vmem:[%s3 + $0xc00] sm:$0xff]
  %v2509 = vld [vmem:[%s3 + $0xc08] sm:$0xff]
  %v2510 = vld [vmem:[%s3 + $0xc10] sm:$0xff]
  %v2511 = vld [vmem:[%s3 + $0xc18] sm:$0xff]
  %v2512 = vld [vmem:[%s3 + $0xc20] sm:$0xff]
  %v2513 = vld [vmem:[%s3 + $0xc28] sm:$0xff]
  %v2514 = vld [vmem:[%s3 + $0xc30] sm:$0xff]
  %v2515 = vld [vmem:[%s3 + $0xc38] sm:$0xff]
  %v2516 = vld [vmem:[%s3 + $0xc40] sm:$0xff]
  %v2517 = vld [vmem:[%s3 + $0xc48] sm:$0xff]
  %v2518 = vld [vmem:[%s3 + $0xc50] sm:$0xff]
  %v2519 = vld [vmem:[%s3 + $0xc58] sm:$0xff]
  %v2520 = vld [vmem:[%s3 + $0xc60] sm:$0xff]
  %v2521 = vld [vmem:[%s3 + $0xc68] sm:$0xff]
  %v2522 = vld [vmem:[%s3 + $0xc70] sm:$0xff]
  %v2523 = vld [vmem:[%s3 + $0xc78] sm:$0xff]
  %v2524 = vld [vmem:[%s3 + $0xc80] sm:$0xff]
  %v2525 = vld [vmem:[%s3 + $0xc88] sm:$0xff]
  %v2526 = vld [vmem:[%s3 + $0xc90] sm:$0xff]
  %v2527 = vld [vmem:[%s3 + $0xc98] sm:$0xff]
  %v2528 = vld [vmem:[%s3 + $0xca0] sm:$0xff]
  %v2529 = vld [vmem:[%s3 + $0xca8] sm:$0xff]
  %v2530 = vld [vmem:[%s3 + $0xcb0] sm:$0xff]
  %v2531 = vld [vmem:[%s3 + $0xcb8] sm:$0xff]
  %v2532 = vld [vmem:[%s3 + $0xcc0] sm:$0xff]
  %v2533 = vld [vmem:[%s3 + $0xcc8] sm:$0xff]
  %v2534 = vld [vmem:[%s3 + $0xcd0] sm:$0xff]
  %v2535 = vld [vmem:[%s3 + $0xcd8] sm:$0xff]
  %v2536 = vld [vmem:[%s3 + $0xce0] sm:$0xff]
  %v2537 = vld [vmem:[%s3 + $0xce8] sm:$0xff]
  %v2538 = vld [vmem:[%s3 + $0xcf0] sm:$0xff]
  %v2539 = vld [vmem:[%s3 + $0xcf8] sm:$0xff]
  %v2540 = vld [vmem:[%s3 + $0xd00] sm:$0xff]
  %v2541 = vld [vmem:[%s3 + $0xd08] sm:$0xff]
  %v2542 = vld [vmem:[%s3 + $0xd10] sm:$0xff]
  %v2543 = vld [vmem:[%s3 + $0xd18] sm:$0xff]
  %v2544 = vld [vmem:[%s3 + $0xd20] sm:$0xff]
  %v2545 = vld [vmem:[%s3 + $0xd28] sm:$0xff]
  %v2546 = vld [vmem:[%s3 + $0xd30] sm:$0xff]
  %v2547 = vld [vmem:[%s3 + $0xd38] sm:$0xff]
  %v2548 = vld [vmem:[%s3 + $0xd40] sm:$0xff]
  %v2549 = vld [vmem:[%s3 + $0xd48] sm:$0xff]
  %v2550 = vld [vmem:[%s3 + $0xd50] sm:$0xff]
  %v2551 = vld [vmem:[%s3 + $0xd58] sm:$0xff]
  %v2552 = vld [vmem:[%s3 + $0xd60] sm:$0xff]
  %v2553 = vld [vmem:[%s3 + $0xd68] sm:$0xff]
  %v2554 = vld [vmem:[%s3 + $0xd70] sm:$0xff]
  %v2555 = vld [vmem:[%s3 + $0xd78] sm:$0xff]
  %v2556 = vld [vmem:[%s3 + $0xd80] sm:$0xff]
  %v2557 = vld [vmem:[%s3 + $0xd88] sm:$0xff]
  %v2558 = vld [vmem:[%s3 + $0xd90] sm:$0xff]
  %v2559 = vld [vmem:[%s3 + $0xd98] sm:$0xff]
  %v2560 = vld [vmem:[%s3 + $0xda0] sm:$0xff]
  %v2561 = vld [vmem:[%s3 + $0xda8] sm:$0xff]
  %v2562 = vld [vmem:[%s3 + $0xdb0] sm:$0xff]
  %v2563 = vld [vmem:[%s3 + $0xdb8] sm:$0xff]
  %v2564 = vld [vmem:[%s3 + $0xdc0] sm:$0xff]
  %v2565 = vld [vmem:[%s3 + $0xdc8] sm:$0xff]
  %v2566 = vld [vmem:[%s3 + $0xdd0] sm:$0xff]
  %v2567 = vld [vmem:[%s3 + $0xdd8] sm:$0xff]
  %v2568 = vld [vmem:[%s3 + $0xde0] sm:$0xff]
  %v2569 = vld [vmem:[%s3 + $0xde8] sm:$0xff]
  %v2570 = vld [vmem:[%s3 + $0xdf0] sm:$0xff]
  %v2571 = vld [vmem:[%s3 + $0xdf8] sm:$0xff]
  %v2572 = vld [vmem:[%s3 + $0xe00] sm:$0xff]
  %v2573 = vld [vmem:[%s3 + $0xe08] sm:$0xff]
  %v2574 = vld [vmem:[%s3 + $0xe10] sm:$0xff]
  %v2575 = vld [vmem:[%s3 + $0xe18] sm:$0xff]
  %v2576 = vld [vmem:[%s3 + $0xe20] sm:$0xff]
  %v2577 = vld [vmem:[%s3 + $0xe28] sm:$0xff]
  %v2578 = vld [vmem:[%s3 + $0xe30] sm:$0xff]
  %v2579 = vld [vmem:[%s3 + $0xe38] sm:$0xff]
  %v2580 = vld [vmem:[%s3 + $0xe40] sm:$0xff]
  %v2581 = vld [vmem:[%s3 + $0xe48] sm:$0xff]
  %v2582 = vld [vmem:[%s3 + $0xe50] sm:$0xff]
  %v2583 = vld [vmem:[%s3 + $0xe58] sm:$0xff]
  %v2584 = vld [vmem:[%s3 + $0xe60] sm:$0xff]
  %v2585 = vld [vmem:[%s3 + $0xe68] sm:$0xff]
  %v2586 = vld [vmem:[%s3 + $0xe70] sm:$0xff]
  %v2587 = vld [vmem:[%s3 + $0xe78] sm:$0xff]
  %v2588 = vld [vmem:[%s3 + $0xe80] sm:$0xff]
  %v2589 = vld [vmem:[%s3 + $0xe88] sm:$0xff]
  %v2590 = vld [vmem:[%s3 + $0xe90] sm:$0xff]
  %v2591 = vld [vmem:[%s3 + $0xe98] sm:$0xff]
  %v2592 = vld [vmem:[%s3 + $0xea0] sm:$0xff]
  %v2593 = vld [vmem:[%s3 + $0xea8] sm:$0xff]
  %v2594 = vld [vmem:[%s3 + $0xeb0] sm:$0xff]
  %v2595 = vld [vmem:[%s3 + $0xeb8] sm:$0xff]
  %v2596 = vld [vmem:[%s3 + $0xec0] sm:$0xff]
  %v2597 = vld [vmem:[%s3 + $0xec8] sm:$0xff]
  %v2598 = vld [vmem:[%s3 + $0xed0] sm:$0xff]
  %v2599 = vld [vmem:[%s3 + $0xed8] sm:$0xff]
  %v2600 = vld [vmem:[%s3 + $0xee0] sm:$0xff]
  %v2601 = vld [vmem:[%s3 + $0xee8] sm:$0xff]
  %v2602 = vld [vmem:[%s3 + $0xef0] sm:$0xff]
  %v2603 = vld [vmem:[%s3 + $0xef8] sm:$0xff]
  %v2604 = vld [vmem:[%s3 + $0xf00] sm:$0xff]
  %v2605 = vld [vmem:[%s3 + $0xf08] sm:$0xff]
  %v2606 = vld [vmem:[%s3 + $0xf10] sm:$0xff]
  %v2607 = vld [vmem:[%s3 + $0xf18] sm:$0xff]
  %v2608 = vld [vmem:[%s3 + $0xf20] sm:$0xff]
  %v2609 = vld [vmem:[%s3 + $0xf28] sm:$0xff]
  %v2610 = vld [vmem:[%s3 + $0xf30] sm:$0xff]
  %v2611 = vld [vmem:[%s3 + $0xf38] sm:$0xff]
  %v2612 = vld [vmem:[%s3 + $0xf40] sm:$0xff]
  %v2613 = vld [vmem:[%s3 + $0xf48] sm:$0xff]
  %v2614 = vld [vmem:[%s3 + $0xf50] sm:$0xff]
  %v2615 = vld [vmem:[%s3 + $0xf58] sm:$0xff]
  %v2616 = vld [vmem:[%s3 + $0xf60] sm:$0xff]
  %v2617 = vld [vmem:[%s3 + $0xf68] sm:$0xff]
  %v2618 = vld [vmem:[%s3 + $0xf70] sm:$0xff]
  %v2619 = vld [vmem:[%s3 + $0xf78] sm:$0xff]
  %v2620 = vld [vmem:[%s3 + $0xf80] sm:$0xff]
  %v2621 = vld [vmem:[%s3 + $0xf88] sm:$0xff]
  %v2622 = vld [vmem:[%s3 + $0xf90] sm:$0xff]
  %v2623 = vld [vmem:[%s3 + $0xf98] sm:$0xff]
  %v2624 = vld [vmem:[%s3 + $0xfa0] sm:$0xff]
  %v2625 = vld [vmem:[%s3 + $0xfa8] sm:$0xff]
  %v2626 = vld [vmem:[%s3 + $0xfb0] sm:$0xff]
  %v2627 = vld [vmem:[%s3 + $0xfb8] sm:$0xff]
  %v2628 = vld [vmem:[%s3 + $0xfc0] sm:$0xff]
  %v2629 = vld [vmem:[%s3 + $0xfc8] sm:$0xff]
  %v2630 = vld [vmem:[%s3 + $0xfd0] sm:$0xff]
  %v2631 = vld [vmem:[%s3 + $0xfd8] sm:$0xff]
  %v2632 = vld [vmem:[%s3 + $0xfe0] sm:$0xff]
  %v2633 = vld [vmem:[%s3 + $0xfe8] sm:$0xff]
  %v2634 = vld [vmem:[%s3 + $0xff0] sm:$0xff]
  %v2635 = vld [vmem:[%s3 + $0xff8] sm:$0xff]
  %v2636 = vld [vmem:[%s3 + $0x1000] sm:$0xff]
  %v2637 = vld [vmem:[%s3 + $0x1008] sm:$0xff]
  %v2638 = vld [vmem:[%s3 + $0x1010] sm:$0xff]
  %v2639 = vld [vmem:[%s3 + $0x1018] sm:$0xff]
  %v2640 = vld [vmem:[%s3 + $0x1020] sm:$0xff]
  %v2641 = vld [vmem:[%s3 + $0x1028] sm:$0xff]
  %v2642 = vld [vmem:[%s3 + $0x1030] sm:$0xff]
  %v2643 = vld [vmem:[%s3 + $0x1038] sm:$0xff]
  %v2644 = vld [vmem:[%s3 + $0x1040] sm:$0xff]
  %v2645 = vld [vmem:[%s3 + $0x1048] sm:$0xff]
  %v2646 = vld [vmem:[%s3 + $0x1050] sm:$0xff]
  %v2647 = vld [vmem:[%s3 + $0x1058] sm:$0xff]
  %v2648 = vld [vmem:[%s3 + $0x1060] sm:$0xff]
  %v2649 = vld [vmem:[%s3 + $0x1068] sm:$0xff]
  %v2650 = vld [vmem:[%s3 + $0x1070] sm:$0xff]
  %v2651 = vld [vmem:[%s3 + $0x1078] sm:$0xff]
  %v2652 = vld [vmem:[%s3 + $0x1080] sm:$0xff]
  %v2653 = vld [vmem:[%s3 + $0x1088] sm:$0xff]
  %v2654 = vld [vmem:[%s3 + $0x1090] sm:$0xff]
  %v2655 = vld [vmem:[%s3 + $0x1098] sm:$0xff]
  %v2656 = vld [vmem:[%s3 + $0x10a0] sm:$0xff]
  %v2657 = vld [vmem:[%s3 + $0x10a8] sm:$0xff]
  %v2658 = vld [vmem:[%s3 + $0x10b0] sm:$0xff]
  %v2659 = vld [vmem:[%s3 + $0x10b8] sm:$0xff]
  %v2660 = vld [vmem:[%s3 + $0x10c0] sm:$0xff]
  %v2661 = vld [vmem:[%s3 + $0x10c8] sm:$0xff]
  %v2662 = vld [vmem:[%s3 + $0x10d0] sm:$0xff]
  %v2663 = vld [vmem:[%s3 + $0x10d8] sm:$0xff]
  %v2664 = vld [vmem:[%s3 + $0x10e0] sm:$0xff]
  %v2665 = vld [vmem:[%s3 + $0x10e8] sm:$0xff]
  %v2666 = vld [vmem:[%s3 + $0x10f0] sm:$0xff]
  %v2667 = vld [vmem:[%s3 + $0x10f8] sm:$0xff]
  %v2668 = vld [vmem:[%s3 + $0x1100] sm:$0xff]
  %v2669 = vld [vmem:[%s3 + $0x1108] sm:$0xff]
  %v2670 = vld [vmem:[%s3 + $0x1110] sm:$0xff]
  %v2671 = vld [vmem:[%s3 + $0x1118] sm:$0xff]
  %v2672 = vld [vmem:[%s3 + $0x1120] sm:$0xff]
  %v2673 = vld [vmem:[%s3 + $0x1128] sm:$0xff]
  %v2674 = vld [vmem:[%s3 + $0x1130] sm:$0xff]
  %v2675 = vld [vmem:[%s3 + $0x1138] sm:$0xff]
  %v2676 = vld [vmem:[%s3 + $0x1140] sm:$0xff]
  %v2677 = vld [vmem:[%s3 + $0x1148] sm:$0xff]
  %v2678 = vld [vmem:[%s3 + $0x1150] sm:$0xff]
  %v2679 = vld [vmem:[%s3 + $0x1158] sm:$0xff]
  %v2680 = vld [vmem:[%s3 + $0x1160] sm:$0xff]
  %v2681 = vld [vmem:[%s3 + $0x1168] sm:$0xff]
  %v2682 = vld [vmem:[%s3 + $0x1170] sm:$0xff]
  %v2683 = vld [vmem:[%s3 + $0x1178] sm:$0xff]
  %v2684 = vld [vmem:[%s3 + $0x1180] sm:$0xff]
  %v2685 = vld [vmem:[%s3 + $0x1188] sm:$0xff]
  %v2686 = vld [vmem:[%s3 + $0x1190] sm:$0xff]
  %v2687 = vld [vmem:[%s3 + $0x1198] sm:$0xff]
  %v2688 = vld [vmem:[%s3 + $0x11a0] sm:$0xff]
  %v2689 = vld [vmem:[%s3 + $0x11a8] sm:$0xff]
  %v2690 = vld [vmem:[%s3 + $0x11b0] sm:$0xff]
  %v2691 = vld [vmem:[%s3 + $0x11b8] sm:$0xff]
  %v2692 = vld [vmem:[%s3 + $0x11c0] sm:$0xff]
  %v2693 = vld [vmem:[%s3 + $0x11c8] sm:$0xff]
  %v2694 = vld [vmem:[%s3 + $0x11d0] sm:$0xff]
  %v2695 = vld [vmem:[%s3 + $0x11d8] sm:$0xff]
  %v2696 = vld [vmem:[%s3 + $0x11e0] sm:$0xff]
  %v2697 = vld [vmem:[%s3 + $0x11e8] sm:$0xff]
  %v2698 = vld [vmem:[%s3 + $0x11f0] sm:$0xff]
  %v2699 = vld [vmem:[%s3 + $0x11f8] sm:$0xff]
  %v2700 = vld [vmem:[%s3 + $0x1200] sm:$0xff]
  %v2701 = vld [vmem:[%s3 + $0x1208] sm:$0xff]
  %v2702 = vld [vmem:[%s3 + $0x1210] sm:$0xff]
  %v2703 = vld [vmem:[%s3 + $0x1218] sm:$0xff]
  %v2704 = vld [vmem:[%s3 + $0x1220] sm:$0xff]
  %v2705 = vld [vmem:[%s3 + $0x1228] sm:$0xff]
  %v2706 = vld [vmem:[%s3 + $0x1230] sm:$0xff]
  %v2707 = vld [vmem:[%s3 + $0x1238] sm:$0xff]
  %v2708 = vld [vmem:[%s3 + $0x1240] sm:$0xff]
  %v2709 = vld [vmem:[%s3 + $0x1248] sm:$0xff]
  %v2710 = vld [vmem:[%s3 + $0x1250] sm:$0xff]
  %v2711 = vld [vmem:[%s3 + $0x1258] sm:$0xff]
  %v2712 = vld [vmem:[%s3 + $0x1260] sm:$0xff]
  %v2713 = vld [vmem:[%s3 + $0x1268] sm:$0xff]
  %v2714 = vld [vmem:[%s3 + $0x1270] sm:$0xff]
  %v2715 = vld [vmem:[%s3 + $0x1278] sm:$0xff]
  %v2716 = vld [vmem:[%s3 + $0x1280] sm:$0xff]
  %v2717 = vld [vmem:[%s3 + $0x1288] sm:$0xff]
  %v2718 = vld [vmem:[%s3 + $0x1290] sm:$0xff]
  %v2719 = vld [vmem:[%s3 + $0x1298] sm:$0xff]
  %v2720 = vld [vmem:[%s3 + $0x12a0] sm:$0xff]
  %v2721 = vld [vmem:[%s3 + $0x12a8] sm:$0xff]
  %v2722 = vld [vmem:[%s3 + $0x12b0] sm:$0xff]
  %v2723 = vld [vmem:[%s3 + $0x12b8] sm:$0xff]
  %v2724 = vld [vmem:[%s3 + $0x12c0] sm:$0xff]
  %v2725 = vld [vmem:[%s3 + $0x12c8] sm:$0xff]
  %v2726 = vld [vmem:[%s3 + $0x12d0] sm:$0xff]
  %v2727 = vld [vmem:[%s3 + $0x12d8] sm:$0xff]
  %v2728 = vld [vmem:[%s3 + $0x12e0] sm:$0xff]
  %v2729 = vld [vmem:[%s3 + $0x12e8] sm:$0xff]
  %v2730 = vld [vmem:[%s3 + $0x12f0] sm:$0xff]
  %v2731 = vld [vmem:[%s3 + $0x12f8] sm:$0xff]
  %v2732 = vld [vmem:[%s3 + $0x1300] sm:$0xff]
  %v2733 = vld [vmem:[%s3 + $0x1308] sm:$0xff]
  %v2734 = vld [vmem:[%s3 + $0x1310] sm:$0xff]
  %v2735 = vld [vmem:[%s3 + $0x1318] sm:$0xff]
  %v2736 = vld [vmem:[%s3 + $0x1320] sm:$0xff]
  %v2737 = vld [vmem:[%s3 + $0x1328] sm:$0xff]
  %v2738 = vld [vmem:[%s3 + $0x1330] sm:$0xff]
  %v2739 = vld [vmem:[%s3 + $0x1338] sm:$0xff]
  %v2740 = vld [vmem:[%s3 + $0x1340] sm:$0xff]
  %v2741 = vld [vmem:[%s3 + $0x1348] sm:$0xff]
  %v2742 = vld [vmem:[%s3 + $0x1350] sm:$0xff]
  %v2743 = vld [vmem:[%s3 + $0x1358] sm:$0xff]
  %v2744 = vld [vmem:[%s3 + $0x1360] sm:$0xff]
  %v2745 = vld [vmem:[%s3 + $0x1368] sm:$0xff]
  %v2746 = vld [vmem:[%s3 + $0x1370] sm:$0xff]
  %v2747 = vld [vmem:[%s3 + $0x1378] sm:$0xff]
  %v2748 = vld [vmem:[%s3 + $0x1380] sm:$0xff]
  %v2749 = vld [vmem:[%s3 + $0x1388] sm:$0xff]
  %v2750 = vld [vmem:[%s3 + $0x1390] sm:$0xff]
  %v2751 = vld [vmem:[%s3 + $0x1398] sm:$0xff]
  %v2752 = vld [vmem:[%s3 + $0x13a0] sm:$0xff]
  %v2753 = vld [vmem:[%s3 + $0x13a8] sm:$0xff]
  %v2754 = vld [vmem:[%s3 + $0x13b0] sm:$0xff]
  %v2755 = vld [vmem:[%s3 + $0x13b8] sm:$0xff]
  %v2756 = vld [vmem:[%s3 + $0x13c0] sm:$0xff]
  %v2757 = vld [vmem:[%s3 + $0x13c8] sm:$0xff]
  %v2758 = vld [vmem:[%s3 + $0x13d0] sm:$0xff]
  %v2759 = vld [vmem:[%s3 + $0x13d8] sm:$0xff]
  %v2760 = vld [vmem:[%s3 + $0x13e0] sm:$0xff]
  %v2761 = vld [vmem:[%s3 + $0x13e8] sm:$0xff]
  %v2762 = vld [vmem:[%s3 + $0x13f0] sm:$0xff]
  %v2763 = vld [vmem:[%s3 + $0x13f8] sm:$0xff]
  %v2764 = vld [vmem:[%s4] sm:$0x1]
  %v2766 = vperm.slane %v2764, 0
  %2768 = vmatpush.msra.mxu0 %v2139
  %2769 = vmatpush.msra.mxu0 %v2138
  %2770 = vmatpush.msra.mxu0 %v2137
  %2771 = vmatpush.msra.mxu0 %v2136
  %2772 = vmatpush.msra.mxu0 %v2135
  %2773 = vmatpush.msra.mxu0 %v2134
  %2774 = vmatpush.msra.mxu0 %v2133
  %2775 = vmatpush.msra.mxu0 %v2132
  %2776 = vmatpush.msra.mxu0 %v2131
  %2777 = vmatpush.msra.mxu0 %v2130
  %2778 = vmatpush.msra.mxu0 %v2129
  %2779 = vmatpush.msra.mxu0 %v2128
  %2780 = vmatpush.msra.mxu0 %v2127
  %2781 = vmatpush.msra.mxu0 %v2126
  %2782 = vmatpush.msra.mxu0 %v2125
  %2783 = vmatpush.msra.mxu0 %v2124
  %2784 = vmatmul.f32.gmra.mxu0 %v2084
  %v2785 = vpop.f32.mrf.mxu0
  %v2786 = vadd.f32 %v2766, %v2785
  %2787 = vdwg.mxu0
  %2788 = vmatpush.msra.mxu0 %v2155
  %2789 = vmatpush.msra.mxu0 %v2154
  %2790 = vmatpush.msra.mxu0 %v2153
  %2791 = vmatpush.msra.mxu0 %v2152
  %2792 = vmatpush.msra.mxu0 %v2151
  %2793 = vmatpush.msra.mxu0 %v2150
  %2794 = vmatpush.msra.mxu0 %v2149
  %2795 = vmatpush.msra.mxu0 %v2148
  %2796 = vmatpush.msra.mxu0 %v2147
  %2797 = vmatpush.msra.mxu0 %v2146
  %2798 = vmatpush.msra.mxu0 %v2145
  %2799 = vmatpush.msra.mxu0 %v2144
  %2800 = vmatpush.msra.mxu0 %v2143
  %2801 = vmatpush.msra.mxu0 %v2142
  %2802 = vmatpush.msra.mxu0 %v2141
  %2803 = vmatpush.msra.mxu0 %v2140
  %2804 = vmatmul.f32.gmra.mxu0 %v2085
  %v2805 = vpop.f32.mrf.mxu0
  %v2806 = vadd.f32 %v2786, %v2805
  %2807 = vdwg.mxu0
  %2808 = vmatpush.msra.mxu0 %v2171
  %2809 = vmatpush.msra.mxu0 %v2170
  %2810 = vmatpush.msra.mxu0 %v2169
  %2811 = vmatpush.msra.mxu0 %v2168
  %2812 = vmatpush.msra.mxu0 %v2167
  %2813 = vmatpush.msra.mxu0 %v2166
  %2814 = vmatpush.msra.mxu0 %v2165
  %2815 = vmatpush.msra.mxu0 %v2164
  %2816 = vmatpush.msra.mxu0 %v2163
  %2817 = vmatpush.msra.mxu0 %v2162
  %2818 = vmatpush.msra.mxu0 %v2161
  %2819 = vmatpush.msra.mxu0 %v2160
  %2820 = vmatpush.msra.mxu0 %v2159
  %2821 = vmatpush.msra.mxu0 %v2158
  %2822 = vmatpush.msra.mxu0 %v2157
  %2823 = vmatpush.msra.mxu0 %v2156
  %2824 = vmatmul.f32.gmra.mxu0 %v2086
  %v2825 = vpop.f32.mrf.mxu0
  %v2826 = vadd.f32 %v2806, %v2825
  %2827 = vdwg.mxu0
  %2828 = vmatpush.msra.mxu0 %v2187
  %2829 = vmatpush.msra.mxu0 %v2186
  %2830 = vmatpush.msra.mxu0 %v2185
  %2831 = vmatpush.msra.mxu0 %v2184
  %2832 = vmatpush.msra.mxu0 %v2183
  %2833 = vmatpush.msra.mxu0 %v2182
  %2834 = vmatpush.msra.mxu0 %v2181
  %2835 = vmatpush.msra.mxu0 %v2180
  %2836 = vmatpush.msra.mxu0 %v2179
  %2837 = vmatpush.msra.mxu0 %v2178
  %2838 = vmatpush.msra.mxu0 %v2177
  %2839 = vmatpush.msra.mxu0 %v2176
  %2840 = vmatpush.msra.mxu0 %v2175
  %2841 = vmatpush.msra.mxu0 %v2174
  %2842 = vmatpush.msra.mxu0 %v2173
  %2843 = vmatpush.msra.mxu0 %v2172
  %2844 = vmatmul.f32.gmra.mxu0 %v2087
  %v2845 = vpop.f32.mrf.mxu0
  %v2846 = vadd.f32 %v2826, %v2845
  %2847 = vdwg.mxu0
  %2848 = vmatpush.msra.mxu0 %v2203
  %2849 = vmatpush.msra.mxu0 %v2202
  %2850 = vmatpush.msra.mxu0 %v2201
  %2851 = vmatpush.msra.mxu0 %v2200
  %2852 = vmatpush.msra.mxu0 %v2199
  %2853 = vmatpush.msra.mxu0 %v2198
  %2854 = vmatpush.msra.mxu0 %v2197
  %2855 = vmatpush.msra.mxu0 %v2196
  %2856 = vmatpush.msra.mxu0 %v2195
  %2857 = vmatpush.msra.mxu0 %v2194
  %2858 = vmatpush.msra.mxu0 %v2193
  %2859 = vmatpush.msra.mxu0 %v2192
  %2860 = vmatpush.msra.mxu0 %v2191
  %2861 = vmatpush.msra.mxu0 %v2190
  %2862 = vmatpush.msra.mxu0 %v2189
  %2863 = vmatpush.msra.mxu0 %v2188
  %2864 = vmatmul.f32.gmra.mxu0 %v2088
  %v2865 = vpop.f32.mrf.mxu0
  %v2866 = vadd.f32 %v2846, %v2865
  %2867 = vdwg.mxu0
  %2868 = vmatpush.msra.mxu0 %v2219
  %2869 = vmatpush.msra.mxu0 %v2218
  %2870 = vmatpush.msra.mxu0 %v2217
  %2871 = vmatpush.msra.mxu0 %v2216
  %2872 = vmatpush.msra.mxu0 %v2215
  %2873 = vmatpush.msra.mxu0 %v2214
  %2874 = vmatpush.msra.mxu0 %v2213
  %2875 = vmatpush.msra.mxu0 %v2212
  %2876 = vmatpush.msra.mxu0 %v2211
  %2877 = vmatpush.msra.mxu0 %v2210
  %2878 = vmatpush.msra.mxu0 %v2209
  %2879 = vmatpush.msra.mxu0 %v2208
  %2880 = vmatpush.msra.mxu0 %v2207
  %2881 = vmatpush.msra.mxu0 %v2206
  %2882 = vmatpush.msra.mxu0 %v2205
  %2883 = vmatpush.msra.mxu0 %v2204
  %2884 = vmatmul.f32.gmra.mxu0 %v2089
  %v2885 = vpop.f32.mrf.mxu0
  %v2886 = vadd.f32 %v2866, %v2885
  %2887 = vdwg.mxu0
  %2888 = vmatpush.msra.mxu0 %v2235
  %2889 = vmatpush.msra.mxu0 %v2234
  %2890 = vmatpush.msra.mxu0 %v2233
  %2891 = vmatpush.msra.mxu0 %v2232
  %2892 = vmatpush.msra.mxu0 %v2231
  %2893 = vmatpush.msra.mxu0 %v2230
  %2894 = vmatpush.msra.mxu0 %v2229
  %2895 = vmatpush.msra.mxu0 %v2228
  %2896 = vmatpush.msra.mxu0 %v2227
  %2897 = vmatpush.msra.mxu0 %v2226
  %2898 = vmatpush.msra.mxu0 %v2225
  %2899 = vmatpush.msra.mxu0 %v2224
  %2900 = vmatpush.msra.mxu0 %v2223
  %2901 = vmatpush.msra.mxu0 %v2222
  %2902 = vmatpush.msra.mxu0 %v2221
  %2903 = vmatpush.msra.mxu0 %v2220
  %2904 = vmatmul.f32.gmra.mxu0 %v2090
  %v2905 = vpop.f32.mrf.mxu0
  %v2906 = vadd.f32 %v2886, %v2905
  %2907 = vdwg.mxu0
  %2908 = vmatpush.msra.mxu0 %v2251
  %2909 = vmatpush.msra.mxu0 %v2250
  %2910 = vmatpush.msra.mxu0 %v2249
  %2911 = vmatpush.msra.mxu0 %v2248
  %2912 = vmatpush.msra.mxu0 %v2247
  %2913 = vmatpush.msra.mxu0 %v2246
  %2914 = vmatpush.msra.mxu0 %v2245
  %2915 = vmatpush.msra.mxu0 %v2244
  %2916 = vmatpush.msra.mxu0 %v2243
  %2917 = vmatpush.msra.mxu0 %v2242
  %2918 = vmatpush.msra.mxu0 %v2241
  %2919 = vmatpush.msra.mxu0 %v2240
  %2920 = vmatpush.msra.mxu0 %v2239
  %2921 = vmatpush.msra.mxu0 %v2238
  %2922 = vmatpush.msra.mxu0 %v2237
  %2923 = vmatpush.msra.mxu0 %v2236
  %2924 = vmatmul.f32.gmra.mxu0 %v2091
  %v2925 = vpop.f32.mrf.mxu0
  %v2926 = vadd.f32 %v2906, %v2925
  %2927 = vdwg.mxu0
  %2928 = vmatpush.msra.mxu0 %v2267
  %2929 = vmatpush.msra.mxu0 %v2266
  %2930 = vmatpush.msra.mxu0 %v2265
  %2931 = vmatpush.msra.mxu0 %v2264
  %2932 = vmatpush.msra.mxu0 %v2263
  %2933 = vmatpush.msra.mxu0 %v2262
  %2934 = vmatpush.msra.mxu0 %v2261
  %2935 = vmatpush.msra.mxu0 %v2260
  %2936 = vmatpush.msra.mxu0 %v2259
  %2937 = vmatpush.msra.mxu0 %v2258
  %2938 = vmatpush.msra.mxu0 %v2257
  %2939 = vmatpush.msra.mxu0 %v2256
  %2940 = vmatpush.msra.mxu0 %v2255
  %2941 = vmatpush.msra.mxu0 %v2254
  %2942 = vmatpush.msra.mxu0 %v2253
  %2943 = vmatpush.msra.mxu0 %v2252
  %2944 = vmatmul.f32.gmra.mxu0 %v2092
  %v2945 = vpop.f32.mrf.mxu0
  %v2946 = vadd.f32 %v2926, %v2945
  %2947 = vdwg.mxu0
  %2948 = vmatpush.msra.mxu0 %v2283
  %2949 = vmatpush.msra.mxu0 %v2282
  %2950 = vmatpush.msra.mxu0 %v2281
  %2951 = vmatpush.msra.mxu0 %v2280
  %2952 = vmatpush.msra.mxu0 %v2279
  %2953 = vmatpush.msra.mxu0 %v2278
  %2954 = vmatpush.msra.mxu0 %v2277
  %2955 = vmatpush.msra.mxu0 %v2276
  %2956 = vmatpush.msra.mxu0 %v2275
  %2957 = vmatpush.msra.mxu0 %v2274
  %2958 = vmatpush.msra.mxu0 %v2273
  %2959 = vmatpush.msra.mxu0 %v2272
  %2960 = vmatpush.msra.mxu0 %v2271
  %2961 = vmatpush.msra.mxu0 %v2270
  %2962 = vmatpush.msra.mxu0 %v2269
  %2963 = vmatpush.msra.mxu0 %v2268
  %2964 = vmatmul.f32.gmra.mxu0 %v2093
  %v2965 = vpop.f32.mrf.mxu0
  %v2966 = vadd.f32 %v2946, %v2965
  %2967 = vdwg.mxu0
  %2968 = vmatpush.msra.mxu0 %v2299
  %2969 = vmatpush.msra.mxu0 %v2298
  %2970 = vmatpush.msra.mxu0 %v2297
  %2971 = vmatpush.msra.mxu0 %v2296
  %2972 = vmatpush.msra.mxu0 %v2295
  %2973 = vmatpush.msra.mxu0 %v2294
  %2974 = vmatpush.msra.mxu0 %v2293
  %2975 = vmatpush.msra.mxu0 %v2292
  %2976 = vmatpush.msra.mxu0 %v2291
  %2977 = vmatpush.msra.mxu0 %v2290
  %2978 = vmatpush.msra.mxu0 %v2289
  %2979 = vmatpush.msra.mxu0 %v2288
  %2980 = vmatpush.msra.mxu0 %v2287
  %2981 = vmatpush.msra.mxu0 %v2286
  %2982 = vmatpush.msra.mxu0 %v2285
  %2983 = vmatpush.msra.mxu0 %v2284
  %2984 = vmatmul.f32.gmra.mxu0 %v2094
  %v2985 = vpop.f32.mrf.mxu0
  %v2986 = vadd.f32 %v2966, %v2985
  %2987 = vdwg.mxu0
  %2988 = vmatpush.msra.mxu0 %v2315
  %2989 = vmatpush.msra.mxu0 %v2314
  %2990 = vmatpush.msra.mxu0 %v2313
  %2991 = vmatpush.msra.mxu0 %v2312
  %2992 = vmatpush.msra.mxu0 %v2311
  %2993 = vmatpush.msra.mxu0 %v2310
  %2994 = vmatpush.msra.mxu0 %v2309
  %2995 = vmatpush.msra.mxu0 %v2308
  %2996 = vmatpush.msra.mxu0 %v2307
  %2997 = vmatpush.msra.mxu0 %v2306
  %2998 = vmatpush.msra.mxu0 %v2305
  %2999 = vmatpush.msra.mxu0 %v2304
  %3000 = vmatpush.msra.mxu0 %v2303
  %3001 = vmatpush.msra.mxu0 %v2302
  %3002 = vmatpush.msra.mxu0 %v2301
  %3003 = vmatpush.msra.mxu0 %v2300
  %3004 = vmatmul.f32.gmra.mxu0 %v2095
  %v3005 = vpop.f32.mrf.mxu0
  %v3006 = vadd.f32 %v2986, %v3005
  %3007 = vdwg.mxu0
  %3008 = vmatpush.msra.mxu0 %v2331
  %3009 = vmatpush.msra.mxu0 %v2330
  %3010 = vmatpush.msra.mxu0 %v2329
  %3011 = vmatpush.msra.mxu0 %v2328
  %3012 = vmatpush.msra.mxu0 %v2327
  %3013 = vmatpush.msra.mxu0 %v2326
  %3014 = vmatpush.msra.mxu0 %v2325
  %3015 = vmatpush.msra.mxu0 %v2324
  %3016 = vmatpush.msra.mxu0 %v2323
  %3017 = vmatpush.msra.mxu0 %v2322
  %3018 = vmatpush.msra.mxu0 %v2321
  %3019 = vmatpush.msra.mxu0 %v2320
  %3020 = vmatpush.msra.mxu0 %v2319
  %3021 = vmatpush.msra.mxu0 %v2318
  %3022 = vmatpush.msra.mxu0 %v2317
  %3023 = vmatpush.msra.mxu0 %v2316
  %3024 = vmatmul.f32.gmra.mxu0 %v2096
  %v3025 = vpop.f32.mrf.mxu0
  %v3026 = vadd.f32 %v3006, %v3025
  %3027 = vdwg.mxu0
  %3028 = vmatpush.msra.mxu0 %v2347
  %3029 = vmatpush.msra.mxu0 %v2346
  %3030 = vmatpush.msra.mxu0 %v2345
  %3031 = vmatpush.msra.mxu0 %v2344
  %3032 = vmatpush.msra.mxu0 %v2343
  %3033 = vmatpush.msra.mxu0 %v2342
  %3034 = vmatpush.msra.mxu0 %v2341
  %3035 = vmatpush.msra.mxu0 %v2340
  %3036 = vmatpush.msra.mxu0 %v2339
  %3037 = vmatpush.msra.mxu0 %v2338
  %3038 = vmatpush.msra.mxu0 %v2337
  %3039 = vmatpush.msra.mxu0 %v2336
  %3040 = vmatpush.msra.mxu0 %v2335
  %3041 = vmatpush.msra.mxu0 %v2334
  %3042 = vmatpush.msra.mxu0 %v2333
  %3043 = vmatpush.msra.mxu0 %v2332
  %3044 = vmatmul.f32.gmra.mxu0 %v2097
  %v3045 = vpop.f32.mrf.mxu0
  %v3046 = vadd.f32 %v3026, %v3045
  %3047 = vdwg.mxu0
  %3048 = vmatpush.msra.mxu0 %v2363
  %3049 = vmatpush.msra.mxu0 %v2362
  %3050 = vmatpush.msra.mxu0 %v2361
  %3051 = vmatpush.msra.mxu0 %v2360
  %3052 = vmatpush.msra.mxu0 %v2359
  %3053 = vmatpush.msra.mxu0 %v2358
  %3054 = vmatpush.msra.mxu0 %v2357
  %3055 = vmatpush.msra.mxu0 %v2356
  %3056 = vmatpush.msra.mxu0 %v2355
  %3057 = vmatpush.msra.mxu0 %v2354
  %3058 = vmatpush.msra.mxu0 %v2353
  %3059 = vmatpush.msra.mxu0 %v2352
  %3060 = vmatpush.msra.mxu0 %v2351
  %3061 = vmatpush.msra.mxu0 %v2350
  %3062 = vmatpush.msra.mxu0 %v2349
  %3063 = vmatpush.msra.mxu0 %v2348
  %3064 = vmatmul.f32.gmra.mxu0 %v2098
  %v3065 = vpop.f32.mrf.mxu0
  %v3066 = vadd.f32 %v3046, %v3065
  %3067 = vdwg.mxu0
  %3068 = vmatpush.msra.mxu0 %v2379
  %3069 = vmatpush.msra.mxu0 %v2378
  %3070 = vmatpush.msra.mxu0 %v2377
  %3071 = vmatpush.msra.mxu0 %v2376
  %3072 = vmatpush.msra.mxu0 %v2375
  %3073 = vmatpush.msra.mxu0 %v2374
  %3074 = vmatpush.msra.mxu0 %v2373
  %3075 = vmatpush.msra.mxu0 %v2372
  %3076 = vmatpush.msra.mxu0 %v2371
  %3077 = vmatpush.msra.mxu0 %v2370
  %3078 = vmatpush.msra.mxu0 %v2369
  %3079 = vmatpush.msra.mxu0 %v2368
  %3080 = vmatpush.msra.mxu0 %v2367
  %3081 = vmatpush.msra.mxu0 %v2366
  %3082 = vmatpush.msra.mxu0 %v2365
  %3083 = vmatpush.msra.mxu0 %v2364
  %3084 = vmatmul.f32.gmra.mxu0 %v2099
  %v3085 = vpop.f32.mrf.mxu0
  %v3086 = vadd.f32 %v3066, %v3085
  %3087 = vdwg.mxu0
  %3088 = vmatpush.msra.mxu0 %v2395
  %3089 = vmatpush.msra.mxu0 %v2394
  %3090 = vmatpush.msra.mxu0 %v2393
  %3091 = vmatpush.msra.mxu0 %v2392
  %3092 = vmatpush.msra.mxu0 %v2391
  %3093 = vmatpush.msra.mxu0 %v2390
  %3094 = vmatpush.msra.mxu0 %v2389
  %3095 = vmatpush.msra.mxu0 %v2388
  %3096 = vmatpush.msra.mxu0 %v2387
  %3097 = vmatpush.msra.mxu0 %v2386
  %3098 = vmatpush.msra.mxu0 %v2385
  %3099 = vmatpush.msra.mxu0 %v2384
  %3100 = vmatpush.msra.mxu0 %v2383
  %3101 = vmatpush.msra.mxu0 %v2382
  %3102 = vmatpush.msra.mxu0 %v2381
  %3103 = vmatpush.msra.mxu0 %v2380
  %3104 = vmatmul.f32.gmra.mxu0 %v2100
  %v3105 = vpop.f32.mrf.mxu0
  %v3106 = vadd.f32 %v3086, %v3105
  %3107 = vdwg.mxu0
  %3108 = vmatpush.msra.mxu0 %v2411
  %3109 = vmatpush.msra.mxu0 %v2410
  %3110 = vmatpush.msra.mxu0 %v2409
  %3111 = vmatpush.msra.mxu0 %v2408
  %3112 = vmatpush.msra.mxu0 %v2407
  %3113 = vmatpush.msra.mxu0 %v2406
  %3114 = vmatpush.msra.mxu0 %v2405
  %3115 = vmatpush.msra.mxu0 %v2404
  %3116 = vmatpush.msra.mxu0 %v2403
  %3117 = vmatpush.msra.mxu0 %v2402
  %3118 = vmatpush.msra.mxu0 %v2401
  %3119 = vmatpush.msra.mxu0 %v2400
  %3120 = vmatpush.msra.mxu0 %v2399
  %3121 = vmatpush.msra.mxu0 %v2398
  %3122 = vmatpush.msra.mxu0 %v2397
  %3123 = vmatpush.msra.mxu0 %v2396
  %3124 = vmatmul.f32.gmra.mxu0 %v2101
  %v3125 = vpop.f32.mrf.mxu0
  %v3126 = vadd.f32 %v3106, %v3125
  %3127 = vdwg.mxu0
  %3128 = vmatpush.msra.mxu0 %v2427
  %3129 = vmatpush.msra.mxu0 %v2426
  %3130 = vmatpush.msra.mxu0 %v2425
  %3131 = vmatpush.msra.mxu0 %v2424
  %3132 = vmatpush.msra.mxu0 %v2423
  %3133 = vmatpush.msra.mxu0 %v2422
  %3134 = vmatpush.msra.mxu0 %v2421
  %3135 = vmatpush.msra.mxu0 %v2420
  %3136 = vmatpush.msra.mxu0 %v2419
  %3137 = vmatpush.msra.mxu0 %v2418
  %3138 = vmatpush.msra.mxu0 %v2417
  %3139 = vmatpush.msra.mxu0 %v2416
  %3140 = vmatpush.msra.mxu0 %v2415
  %3141 = vmatpush.msra.mxu0 %v2414
  %3142 = vmatpush.msra.mxu0 %v2413
  %3143 = vmatpush.msra.mxu0 %v2412
  %3144 = vmatmul.f32.gmra.mxu0 %v2102
  %v3145 = vpop.f32.mrf.mxu0
  %v3146 = vadd.f32 %v3126, %v3145
  %3147 = vdwg.mxu0
  %3148 = vmatpush.msra.mxu0 %v2443
  %3149 = vmatpush.msra.mxu0 %v2442
  %3150 = vmatpush.msra.mxu0 %v2441
  %3151 = vmatpush.msra.mxu0 %v2440
  %3152 = vmatpush.msra.mxu0 %v2439
  %3153 = vmatpush.msra.mxu0 %v2438
  %3154 = vmatpush.msra.mxu0 %v2437
  %3155 = vmatpush.msra.mxu0 %v2436
  %3156 = vmatpush.msra.mxu0 %v2435
  %3157 = vmatpush.msra.mxu0 %v2434
  %3158 = vmatpush.msra.mxu0 %v2433
  %3159 = vmatpush.msra.mxu0 %v2432
  %3160 = vmatpush.msra.mxu0 %v2431
  %3161 = vmatpush.msra.mxu0 %v2430
  %3162 = vmatpush.msra.mxu0 %v2429
  %3163 = vmatpush.msra.mxu0 %v2428
  %3164 = vmatmul.f32.gmra.mxu0 %v2103
  %v3165 = vpop.f32.mrf.mxu0
  %v3166 = vadd.f32 %v3146, %v3165
  %3167 = vdwg.mxu0
  %3168 = vmatpush.msra.mxu0 %v2459
  %3169 = vmatpush.msra.mxu0 %v2458
  %3170 = vmatpush.msra.mxu0 %v2457
  %3171 = vmatpush.msra.mxu0 %v2456
  %3172 = vmatpush.msra.mxu0 %v2455
  %3173 = vmatpush.msra.mxu0 %v2454
  %3174 = vmatpush.msra.mxu0 %v2453
  %3175 = vmatpush.msra.mxu0 %v2452
  %3176 = vmatpush.msra.mxu0 %v2451
  %3177 = vmatpush.msra.mxu0 %v2450
  %3178 = vmatpush.msra.mxu0 %v2449
  %3179 = vmatpush.msra.mxu0 %v2448
  %3180 = vmatpush.msra.mxu0 %v2447
  %3181 = vmatpush.msra.mxu0 %v2446
  %3182 = vmatpush.msra.mxu0 %v2445
  %3183 = vmatpush.msra.mxu0 %v2444
  %3184 = vmatmul.f32.gmra.mxu0 %v2104
  %v3185 = vpop.f32.mrf.mxu0
  %v3186 = vadd.f32 %v3166, %v3185
  %3187 = vdwg.mxu0
  %3188 = vmatpush.msra.mxu0 %v2475
  %3189 = vmatpush.msra.mxu0 %v2474
  %3190 = vmatpush.msra.mxu0 %v2473
  %3191 = vmatpush.msra.mxu0 %v2472
  %3192 = vmatpush.msra.mxu0 %v2471
  %3193 = vmatpush.msra.mxu0 %v2470
  %3194 = vmatpush.msra.mxu0 %v2469
  %3195 = vmatpush.msra.mxu0 %v2468
  %3196 = vmatpush.msra.mxu0 %v2467
  %3197 = vmatpush.msra.mxu0 %v2466
  %3198 = vmatpush.msra.mxu0 %v2465
  %3199 = vmatpush.msra.mxu0 %v2464
  %3200 = vmatpush.msra.mxu0 %v2463
  %3201 = vmatpush.msra.mxu0 %v2462
  %3202 = vmatpush.msra.mxu0 %v2461
  %3203 = vmatpush.msra.mxu0 %v2460
  %3204 = vmatmul.f32.gmra.mxu0 %v2105
  %v3205 = vpop.f32.mrf.mxu0
  %v3206 = vadd.f32 %v3186, %v3205
  %3207 = vdwg.mxu0
  %3208 = vmatpush.msra.mxu0 %v2491
  %3209 = vmatpush.msra.mxu0 %v2490
  %3210 = vmatpush.msra.mxu0 %v2489
  %3211 = vmatpush.msra.mxu0 %v2488
  %3212 = vmatpush.msra.mxu0 %v2487
  %3213 = vmatpush.msra.mxu0 %v2486
  %3214 = vmatpush.msra.mxu0 %v2485
  %3215 = vmatpush.msra.mxu0 %v2484
  %3216 = vmatpush.msra.mxu0 %v2483
  %3217 = vmatpush.msra.mxu0 %v2482
  %3218 = vmatpush.msra.mxu0 %v2481
  %3219 = vmatpush.msra.mxu0 %v2480
  %3220 = vmatpush.msra.mxu0 %v2479
  %3221 = vmatpush.msra.mxu0 %v2478
  %3222 = vmatpush.msra.mxu0 %v2477
  %3223 = vmatpush.msra.mxu0 %v2476
  %3224 = vmatmul.f32.gmra.mxu0 %v2106
  %v3225 = vpop.f32.mrf.mxu0
  %v3226 = vadd.f32 %v3206, %v3225
  %3227 = vdwg.mxu0
  %3228 = vmatpush.msra.mxu0 %v2507
  %3229 = vmatpush.msra.mxu0 %v2506
  %3230 = vmatpush.msra.mxu0 %v2505
  %3231 = vmatpush.msra.mxu0 %v2504
  %3232 = vmatpush.msra.mxu0 %v2503
  %3233 = vmatpush.msra.mxu0 %v2502
  %3234 = vmatpush.msra.mxu0 %v2501
  %3235 = vmatpush.msra.mxu0 %v2500
  %3236 = vmatpush.msra.mxu0 %v2499
  %3237 = vmatpush.msra.mxu0 %v2498
  %3238 = vmatpush.msra.mxu0 %v2497
  %3239 = vmatpush.msra.mxu0 %v2496
  %3240 = vmatpush.msra.mxu0 %v2495
  %3241 = vmatpush.msra.mxu0 %v2494
  %3242 = vmatpush.msra.mxu0 %v2493
  %3243 = vmatpush.msra.mxu0 %v2492
  %3244 = vmatmul.f32.gmra.mxu0 %v2107
  %v3245 = vpop.f32.mrf.mxu0
  %v3246 = vadd.f32 %v3226, %v3245
  %3247 = vdwg.mxu0
  %3248 = vmatpush.msra.mxu0 %v2523
  %3249 = vmatpush.msra.mxu0 %v2522
  %3250 = vmatpush.msra.mxu0 %v2521
  %3251 = vmatpush.msra.mxu0 %v2520
  %3252 = vmatpush.msra.mxu0 %v2519
  %3253 = vmatpush.msra.mxu0 %v2518
  %3254 = vmatpush.msra.mxu0 %v2517
  %3255 = vmatpush.msra.mxu0 %v2516
  %3256 = vmatpush.msra.mxu0 %v2515
  %3257 = vmatpush.msra.mxu0 %v2514
  %3258 = vmatpush.msra.mxu0 %v2513
  %3259 = vmatpush.msra.mxu0 %v2512
  %3260 = vmatpush.msra.mxu0 %v2511
  %3261 = vmatpush.msra.mxu0 %v2510
  %3262 = vmatpush.msra.mxu0 %v2509
  %3263 = vmatpush.msra.mxu0 %v2508
  %3264 = vmatmul.f32.gmra.mxu0 %v2108
  %v3265 = vpop.f32.mrf.mxu0
  %v3266 = vadd.f32 %v3246, %v3265
  %3267 = vdwg.mxu0
  %3268 = vmatpush.msra.mxu0 %v2539
  %3269 = vmatpush.msra.mxu0 %v2538
  %3270 = vmatpush.msra.mxu0 %v2537
  %3271 = vmatpush.msra.mxu0 %v2536
  %3272 = vmatpush.msra.mxu0 %v2535
  %3273 = vmatpush.msra.mxu0 %v2534
  %3274 = vmatpush.msra.mxu0 %v2533
  %3275 = vmatpush.msra.mxu0 %v2532
  %3276 = vmatpush.msra.mxu0 %v2531
  %3277 = vmatpush.msra.mxu0 %v2530
  %3278 = vmatpush.msra.mxu0 %v2529
  %3279 = vmatpush.msra.mxu0 %v2528
  %3280 = vmatpush.msra.mxu0 %v2527
  %3281 = vmatpush.msra.mxu0 %v2526
  %3282 = vmatpush.msra.mxu0 %v2525
  %3283 = vmatpush.msra.mxu0 %v2524
  %3284 = vmatmul.f32.gmra.mxu0 %v2109
  %v3285 = vpop.f32.mrf.mxu0
  %v3286 = vadd.f32 %v3266, %v3285
  %3287 = vdwg.mxu0
  %3288 = vmatpush.msra.mxu0 %v2555
  %3289 = vmatpush.msra.mxu0 %v2554
  %3290 = vmatpush.msra.mxu0 %v2553
  %3291 = vmatpush.msra.mxu0 %v2552
  %3292 = vmatpush.msra.mxu0 %v2551
  %3293 = vmatpush.msra.mxu0 %v2550
  %3294 = vmatpush.msra.mxu0 %v2549
  %3295 = vmatpush.msra.mxu0 %v2548
  %3296 = vmatpush.msra.mxu0 %v2547
  %3297 = vmatpush.msra.mxu0 %v2546
  %3298 = vmatpush.msra.mxu0 %v2545
  %3299 = vmatpush.msra.mxu0 %v2544
  %3300 = vmatpush.msra.mxu0 %v2543
  %3301 = vmatpush.msra.mxu0 %v2542
  %3302 = vmatpush.msra.mxu0 %v2541
  %3303 = vmatpush.msra.mxu0 %v2540
  %3304 = vmatmul.f32.gmra.mxu0 %v2110
  %v3305 = vpop.f32.mrf.mxu0
  %v3306 = vadd.f32 %v3286, %v3305
  %3307 = vdwg.mxu0
  %3308 = vmatpush.msra.mxu0 %v2571
  %3309 = vmatpush.msra.mxu0 %v2570
  %3310 = vmatpush.msra.mxu0 %v2569
  %3311 = vmatpush.msra.mxu0 %v2568
  %3312 = vmatpush.msra.mxu0 %v2567
  %3313 = vmatpush.msra.mxu0 %v2566
  %3314 = vmatpush.msra.mxu0 %v2565
  %3315 = vmatpush.msra.mxu0 %v2564
  %3316 = vmatpush.msra.mxu0 %v2563
  %3317 = vmatpush.msra.mxu0 %v2562
  %3318 = vmatpush.msra.mxu0 %v2561
  %3319 = vmatpush.msra.mxu0 %v2560
  %3320 = vmatpush.msra.mxu0 %v2559
  %3321 = vmatpush.msra.mxu0 %v2558
  %3322 = vmatpush.msra.mxu0 %v2557
  %3323 = vmatpush.msra.mxu0 %v2556
  %3324 = vmatmul.f32.gmra.mxu0 %v2111
  %v3325 = vpop.f32.mrf.mxu0
  %v3326 = vadd.f32 %v3306, %v3325
  %3327 = vdwg.mxu0
  %3328 = vmatpush.msra.mxu0 %v2587
  %3329 = vmatpush.msra.mxu0 %v2586
  %3330 = vmatpush.msra.mxu0 %v2585
  %3331 = vmatpush.msra.mxu0 %v2584
  %3332 = vmatpush.msra.mxu0 %v2583
  %3333 = vmatpush.msra.mxu0 %v2582
  %3334 = vmatpush.msra.mxu0 %v2581
  %3335 = vmatpush.msra.mxu0 %v2580
  %3336 = vmatpush.msra.mxu0 %v2579
  %3337 = vmatpush.msra.mxu0 %v2578
  %3338 = vmatpush.msra.mxu0 %v2577
  %3339 = vmatpush.msra.mxu0 %v2576
  %3340 = vmatpush.msra.mxu0 %v2575
  %3341 = vmatpush.msra.mxu0 %v2574
  %3342 = vmatpush.msra.mxu0 %v2573
  %3343 = vmatpush.msra.mxu0 %v2572
  %3344 = vmatmul.f32.gmra.mxu0 %v2112
  %v3345 = vpop.f32.mrf.mxu0
  %v3346 = vadd.f32 %v3326, %v3345
  %3347 = vdwg.mxu0
  %3348 = vmatpush.msra.mxu0 %v2603
  %3349 = vmatpush.msra.mxu0 %v2602
  %3350 = vmatpush.msra.mxu0 %v2601
  %3351 = vmatpush.msra.mxu0 %v2600
  %3352 = vmatpush.msra.mxu0 %v2599
  %3353 = vmatpush.msra.mxu0 %v2598
  %3354 = vmatpush.msra.mxu0 %v2597
  %3355 = vmatpush.msra.mxu0 %v2596
  %3356 = vmatpush.msra.mxu0 %v2595
  %3357 = vmatpush.msra.mxu0 %v2594
  %3358 = vmatpush.msra.mxu0 %v2593
  %3359 = vmatpush.msra.mxu0 %v2592
  %3360 = vmatpush.msra.mxu0 %v2591
  %3361 = vmatpush.msra.mxu0 %v2590
  %3362 = vmatpush.msra.mxu0 %v2589
  %3363 = vmatpush.msra.mxu0 %v2588
  %3364 = vmatmul.f32.gmra.mxu0 %v2113
  %v3365 = vpop.f32.mrf.mxu0
  %v3366 = vadd.f32 %v3346, %v3365
  %3367 = vdwg.mxu0
  %3368 = vmatpush.msra.mxu0 %v2619
  %3369 = vmatpush.msra.mxu0 %v2618
  %3370 = vmatpush.msra.mxu0 %v2617
  %3371 = vmatpush.msra.mxu0 %v2616
  %3372 = vmatpush.msra.mxu0 %v2615
  %3373 = vmatpush.msra.mxu0 %v2614
  %3374 = vmatpush.msra.mxu0 %v2613
  %3375 = vmatpush.msra.mxu0 %v2612
  %3376 = vmatpush.msra.mxu0 %v2611
  %3377 = vmatpush.msra.mxu0 %v2610
  %3378 = vmatpush.msra.mxu0 %v2609
  %3379 = vmatpush.msra.mxu0 %v2608
  %3380 = vmatpush.msra.mxu0 %v2607
  %3381 = vmatpush.msra.mxu0 %v2606
  %3382 = vmatpush.msra.mxu0 %v2605
  %3383 = vmatpush.msra.mxu0 %v2604
  %3384 = vmatmul.f32.gmra.mxu0 %v2114
  %v3385 = vpop.f32.mrf.mxu0
  %v3386 = vadd.f32 %v3366, %v3385
  %3387 = vdwg.mxu0
  %3388 = vmatpush.msra.mxu0 %v2635
  %3389 = vmatpush.msra.mxu0 %v2634
  %3390 = vmatpush.msra.mxu0 %v2633
  %3391 = vmatpush.msra.mxu0 %v2632
  %3392 = vmatpush.msra.mxu0 %v2631
  %3393 = vmatpush.msra.mxu0 %v2630
  %3394 = vmatpush.msra.mxu0 %v2629
  %3395 = vmatpush.msra.mxu0 %v2628
  %3396 = vmatpush.msra.mxu0 %v2627
  %3397 = vmatpush.msra.mxu0 %v2626
  %3398 = vmatpush.msra.mxu0 %v2625
  %3399 = vmatpush.msra.mxu0 %v2624
  %3400 = vmatpush.msra.mxu0 %v2623
  %3401 = vmatpush.msra.mxu0 %v2622
  %3402 = vmatpush.msra.mxu0 %v2621
  %3403 = vmatpush.msra.mxu0 %v2620
  %3404 = vmatmul.f32.gmra.mxu0 %v2115
  %v3405 = vpop.f32.mrf.mxu0
  %v3406 = vadd.f32 %v3386, %v3405
  %3407 = vdwg.mxu0
  %3408 = vmatpush.msra.mxu0 %v2651
  %3409 = vmatpush.msra.mxu0 %v2650
  %3410 = vmatpush.msra.mxu0 %v2649
  %3411 = vmatpush.msra.mxu0 %v2648
  %3412 = vmatpush.msra.mxu0 %v2647
  %3413 = vmatpush.msra.mxu0 %v2646
  %3414 = vmatpush.msra.mxu0 %v2645
  %3415 = vmatpush.msra.mxu0 %v2644
  %3416 = vmatpush.msra.mxu0 %v2643
  %3417 = vmatpush.msra.mxu0 %v2642
  %3418 = vmatpush.msra.mxu0 %v2641
  %3419 = vmatpush.msra.mxu0 %v2640
  %3420 = vmatpush.msra.mxu0 %v2639
  %3421 = vmatpush.msra.mxu0 %v2638
  %3422 = vmatpush.msra.mxu0 %v2637
  %3423 = vmatpush.msra.mxu0 %v2636
  %3424 = vmatmul.f32.gmra.mxu0 %v2116
  %v3425 = vpop.f32.mrf.mxu0
  %v3426 = vadd.f32 %v3406, %v3425
  %3427 = vdwg.mxu0
  %3428 = vmatpush.msra.mxu0 %v2667
  %3429 = vmatpush.msra.mxu0 %v2666
  %3430 = vmatpush.msra.mxu0 %v2665
  %3431 = vmatpush.msra.mxu0 %v2664
  %3432 = vmatpush.msra.mxu0 %v2663
  %3433 = vmatpush.msra.mxu0 %v2662
  %3434 = vmatpush.msra.mxu0 %v2661
  %3435 = vmatpush.msra.mxu0 %v2660
  %3436 = vmatpush.msra.mxu0 %v2659
  %3437 = vmatpush.msra.mxu0 %v2658
  %3438 = vmatpush.msra.mxu0 %v2657
  %3439 = vmatpush.msra.mxu0 %v2656
  %3440 = vmatpush.msra.mxu0 %v2655
  %3441 = vmatpush.msra.mxu0 %v2654
  %3442 = vmatpush.msra.mxu0 %v2653
  %3443 = vmatpush.msra.mxu0 %v2652
  %3444 = vmatmul.f32.gmra.mxu0 %v2117
  %v3445 = vpop.f32.mrf.mxu0
  %v3446 = vadd.f32 %v3426, %v3445
  %3447 = vdwg.mxu0
  %3448 = vmatpush.msra.mxu0 %v2683
  %3449 = vmatpush.msra.mxu0 %v2682
  %3450 = vmatpush.msra.mxu0 %v2681
  %3451 = vmatpush.msra.mxu0 %v2680
  %3452 = vmatpush.msra.mxu0 %v2679
  %3453 = vmatpush.msra.mxu0 %v2678
  %3454 = vmatpush.msra.mxu0 %v2677
  %3455 = vmatpush.msra.mxu0 %v2676
  %3456 = vmatpush.msra.mxu0 %v2675
  %3457 = vmatpush.msra.mxu0 %v2674
  %3458 = vmatpush.msra.mxu0 %v2673
  %3459 = vmatpush.msra.mxu0 %v2672
  %3460 = vmatpush.msra.mxu0 %v2671
  %3461 = vmatpush.msra.mxu0 %v2670
  %3462 = vmatpush.msra.mxu0 %v2669
  %3463 = vmatpush.msra.mxu0 %v2668
  %3464 = vmatmul.f32.gmra.mxu0 %v2118
  %v3465 = vpop.f32.mrf.mxu0
  %v3466 = vadd.f32 %v3446, %v3465
  %3467 = vdwg.mxu0
  %3468 = vmatpush.msra.mxu0 %v2699
  %3469 = vmatpush.msra.mxu0 %v2698
  %3470 = vmatpush.msra.mxu0 %v2697
  %3471 = vmatpush.msra.mxu0 %v2696
  %3472 = vmatpush.msra.mxu0 %v2695
  %3473 = vmatpush.msra.mxu0 %v2694
  %3474 = vmatpush.msra.mxu0 %v2693
  %3475 = vmatpush.msra.mxu0 %v2692
  %3476 = vmatpush.msra.mxu0 %v2691
  %3477 = vmatpush.msra.mxu0 %v2690
  %3478 = vmatpush.msra.mxu0 %v2689
  %3479 = vmatpush.msra.mxu0 %v2688
  %3480 = vmatpush.msra.mxu0 %v2687
  %3481 = vmatpush.msra.mxu0 %v2686
  %3482 = vmatpush.msra.mxu0 %v2685
  %3483 = vmatpush.msra.mxu0 %v2684
  %3484 = vmatmul.f32.gmra.mxu0 %v2119
  %v3485 = vpop.f32.mrf.mxu0
  %v3486 = vadd.f32 %v3466, %v3485
  %3487 = vdwg.mxu0
  %3488 = vmatpush.msra.mxu0 %v2715
  %3489 = vmatpush.msra.mxu0 %v2714
  %3490 = vmatpush.msra.mxu0 %v2713
  %3491 = vmatpush.msra.mxu0 %v2712
  %3492 = vmatpush.msra.mxu0 %v2711
  %3493 = vmatpush.msra.mxu0 %v2710
  %3494 = vmatpush.msra.mxu0 %v2709
  %3495 = vmatpush.msra.mxu0 %v2708
  %3496 = vmatpush.msra.mxu0 %v2707
  %3497 = vmatpush.msra.mxu0 %v2706
  %3498 = vmatpush.msra.mxu0 %v2705
  %3499 = vmatpush.msra.mxu0 %v2704
  %3500 = vmatpush.msra.mxu0 %v2703
  %3501 = vmatpush.msra.mxu0 %v2702
  %3502 = vmatpush.msra.mxu0 %v2701
  %3503 = vmatpush.msra.mxu0 %v2700
  %3504 = vmatmul.f32.gmra.mxu0 %v2120
  %v3505 = vpop.f32.mrf.mxu0
  %v3506 = vadd.f32 %v3486, %v3505
  %3507 = vdwg.mxu0
  %3508 = vmatpush.msra.mxu0 %v2731
  %3509 = vmatpush.msra.mxu0 %v2730
  %3510 = vmatpush.msra.mxu0 %v2729
  %3511 = vmatpush.msra.mxu0 %v2728
  %3512 = vmatpush.msra.mxu0 %v2727
  %3513 = vmatpush.msra.mxu0 %v2726
  %3514 = vmatpush.msra.mxu0 %v2725
  %3515 = vmatpush.msra.mxu0 %v2724
  %3516 = vmatpush.msra.mxu0 %v2723
  %3517 = vmatpush.msra.mxu0 %v2722
  %3518 = vmatpush.msra.mxu0 %v2721
  %3519 = vmatpush.msra.mxu0 %v2720
  %3520 = vmatpush.msra.mxu0 %v2719
  %3521 = vmatpush.msra.mxu0 %v2718
  %3522 = vmatpush.msra.mxu0 %v2717
  %3523 = vmatpush.msra.mxu0 %v2716
  %3524 = vmatmul.f32.gmra.mxu0 %v2121
  %v3525 = vpop.f32.mrf.mxu0
  %v3526 = vadd.f32 %v3506, %v3525
  %3527 = vdwg.mxu0
  %3528 = vmatpush.msra.mxu0 %v2747
  %3529 = vmatpush.msra.mxu0 %v2746
  %3530 = vmatpush.msra.mxu0 %v2745
  %3531 = vmatpush.msra.mxu0 %v2744
  %3532 = vmatpush.msra.mxu0 %v2743
  %3533 = vmatpush.msra.mxu0 %v2742
  %3534 = vmatpush.msra.mxu0 %v2741
  %3535 = vmatpush.msra.mxu0 %v2740
  %3536 = vmatpush.msra.mxu0 %v2739
  %3537 = vmatpush.msra.mxu0 %v2738
  %3538 = vmatpush.msra.mxu0 %v2737
  %3539 = vmatpush.msra.mxu0 %v2736
  %3540 = vmatpush.msra.mxu0 %v2735
  %3541 = vmatpush.msra.mxu0 %v2734
  %3542 = vmatpush.msra.mxu0 %v2733
  %3543 = vmatpush.msra.mxu0 %v2732
  %3544 = vmatmul.f32.gmra.mxu0 %v2122
  %v3545 = vpop.f32.mrf.mxu0
  %v3546 = vadd.f32 %v3526, %v3545
  %3547 = vdwg.mxu0
  %3548 = vmatpush.msra.mxu0 %v2763
  %3549 = vmatpush.msra.mxu0 %v2762
  %3550 = vmatpush.msra.mxu0 %v2761
  %3551 = vmatpush.msra.mxu0 %v2760
  %3552 = vmatpush.msra.mxu0 %v2759
  %3553 = vmatpush.msra.mxu0 %v2758
  %3554 = vmatpush.msra.mxu0 %v2757
  %3555 = vmatpush.msra.mxu0 %v2756
  %3556 = vmatpush.msra.mxu0 %v2755
  %3557 = vmatpush.msra.mxu0 %v2754
  %3558 = vmatpush.msra.mxu0 %v2753
  %3559 = vmatpush.msra.mxu0 %v2752
  %3560 = vmatpush.msra.mxu0 %v2751
  %3561 = vmatpush.msra.mxu0 %v2750
  %3562 = vmatpush.msra.mxu0 %v2749
  %3563 = vmatpush.msra.mxu0 %v2748
  %3564 = vmatmul.f32.gmra.mxu0 %v2123
  %v3565 = vpop.f32.mrf.mxu0
  %v3566 = vadd.f32 %v3546, %v3565
  %3567 = vdwg.mxu0
  %v3568 = vld [vmem:[%s5] sm:$0xff]
  %v3569 = vld [vmem:[%s5 + $0x8] sm:$0xff]
  %v3570 = vld [vmem:[%s5 + $0x10] sm:$0xff]
  %v3571 = vld [vmem:[%s5 + $0x18] sm:$0xff]
  %v3572 = vld [vmem:[%s6] sm:$0x1]
  %v3574 = vperm.slane %v3572, 0
  %vm3576 = vcmask 261120
  %v3578 = vsel %vm3576, %v3566, 0
  %3580 = vmatpush.msra.mxu0 0.0
  %3581 = vmatpush.msra.mxu0 0.0
  %3582 = vmatpush.msra.mxu0 0.0
  %3583 = vmatpush.msra.mxu0 0.0
  %3584 = vmatpush.msra.mxu0 0.0
  %3585 = vmatpush.msra.mxu0 0.0
  %3586 = vmatpush.msra.mxu0 0.0
  %3587 = vmatpush.msra.mxu0 0.0
  %3588 = vmatpush.msra.mxu0 0.0
  %3589 = vmatpush.msra.mxu0 0.0
  %3590 = vmatpush.msra.mxu0 0.0
  %3591 = vmatpush.msra.mxu0 0.0
  %3592 = vmatpush.msra.mxu0 %v3571
  %3593 = vmatpush.msra.mxu0 %v3570
  %3594 = vmatpush.msra.mxu0 %v3569
  %3595 = vmatpush.msra.mxu0 %v3568
  %3596 = vmatmul.f32.gmra.mxu0 %v3578
  %v3597 = vpop.f32.mrf.mxu0
  %v3598 = vadd.f32 %v3574, %v3597
  %3599 = vdwg.mxu0
  %v3600 = vxor.u32 %v3598, 2147483648
  %v3601 = vmul.f32 %v3600, 1.442695
  %v3602 = vpow.pop %v3601
  %v3603 = vadd.f32 %v3602, 1.0
  %v3604 = vrcp.pop %v3603
  %v3605 = vmul.f32 %v3603, %v3604
  %v3606 = vsub.f32 1.0, %v3605
  %v3607 = vmul.f32 %v3604, %v3606
  %v3608 = vadd.f32 %v3604, %v3607
  %vm3609 = vweird.f32 %v3603
  %vm3610 = vweird.f32 %v3604
  %vm3611 = vmor %vm3609, %vm3610
  %v3612 = vsel %vm3611, %v3604, %v3608
  %v3613 = vand.u32 2147483647, %v3603
  %vm3614 = vcmp.eq.f32.partialorder %v3613, 8.507059e+37
  %v3615 = vand.u32 %v3603, 2147483648
  %v3616 = vor.u32 1.1754944e-38, %v3615
  %v3617 = vsel %vm3614, %v3616, %v3612
  %v3618 = vmul.f32 1.0, %v3617
  %3619 = vst [vmem:[%s7] sm:$0xf] %v3618
  // Predicated region
  $region30: #{siamese_forward.1} parent=0 // pred_check
    _
  $region31: #{siamese_forward.1} parent=0 // pred_check_branch
    %3621 = sbr.rel (0) target = $region33
  $region32: #{siamese_forward.1} parent=0 // pred_region
    _
  $region33: #{siamese_forward.1} parent=0 // pred_fallthru
    _
  // Predicated region
  $region34: #{siamese_forward.1} parent=0 // pred_check
    _
  $region35: #{siamese_forward.1} parent=0 // pred_check_branch
    %3623 = sbr.rel (0) target = $region37
  $region36: #{siamese_forward.1} parent=0 // pred_region
    _
  $region37: #{siamese_forward.1} parent=0 // pred_fallthru
    _

</llo_original>
